<compile_context>
chip_gen: v7x
topology: tpu7x:2x2x1
jax: 0.10.0
libtpu: 0.0.40
codegen_flags: <defaults>
</compile_context>

<pallas_src>
import functools

import jax
import jax.numpy as jnp
from jax.experimental import pallas as pl
from jax.experimental.pallas import tpu as pltpu

# ---------------- model dims (input_dim=32, compressed_dim=16, hidden_dim=32) --------
INPUT_DIM = 32
HIDDEN = 32              # hidden_dim == input_dim -> encoder `expand` branch is identity
H8 = HIDDEN // 8         # 4  (attention bottleneck, zero-padded to 32 in the slab)
H2 = HIDDEN // 2         # 16 (zero-padded to 32 in the slab)
COMP = 16                # compressed_dim
LN_EPS = 1e-5
NEG_SLOPE = 0.2
GAIN = 0.7

# ---------------- lane-packing geometry ----------------------------------------------
PACK = 4                 # samples packed per vreg row
SEG = 32                 # lanes per sample
LANES = PACK * SEG       # 128  = full vreg lane width

BATCH = 256              # example batch; wrapper pads any batch to a legal size

# ---------------- packed parameter layout --------------------------------------------
# weight slab: 13 block-diagonal linear blocks + 2 LayerNorm reduction blocks,
# each (128, 128), stacked along sublanes -> (1920, 128) f32 (~0.94 MiB).
W_BLOCKS = ["e1", "e2", "ae_d", "ae_u", "ef", "mu", "lv",
            "df", "dr1a", "dr1b", "ad_d", "ad_u", "dfin", "M32", "M16"]
W_OFF = {n: i * LANES for i, n in enumerate(W_BLOCKS)}
W_ROWS = len(W_BLOCKS) * LANES          # 1920

# vector slab: one 128-lane row per bias / LN gamma / LN beta (padded to 32 lanes per
# sample, tiled 4x across the segments), padded to 32 rows for sublane alignment.
V_NAMES = ["b_e1", "g_e1", "be_e1", "b_e2", "g_e2", "be_e2",
           "b_ae_d", "b_ae_u",
           "b_ef", "g_ef", "be_ef", "b_mu", "b_lv",
           "b_df", "g_df", "be_df",
           "b_dr1a", "g_dr1a", "be_dr1a", "b_dr1b", "g_dr1b", "be_dr1b",
           "b_ad_d", "b_ad_u", "b_dfin"]
V_ROW = {n: i for i, n in enumerate(V_NAMES)}
V_ROWS = 32

LIN_SHAPES = {
    "e1": (INPUT_DIM, HIDDEN), "e2": (HIDDEN, HIDDEN),
    "ae_d": (HIDDEN, H8), "ae_u": (H8, HIDDEN),
    "ef": (HIDDEN, H2), "mu": (H2, COMP), "lv": (H2, COMP),
    "df": (COMP, H2), "dr1a": (H2, HIDDEN), "dr1b": (HIDDEN, HIDDEN),
    "ad_d": (HIDDEN, H8), "ad_u": (H8, HIDDEN), "dfin": (HIDDEN, INPUT_DIM),
}
LN_LAYERS = ["e1", "e2", "ef", "df", "dr1a", "dr1b"]


# ---------------- parameter init (PyTorch-equivalent) + packing ----------------------
def init_params(key):
    """xavier_normal_(gain=0.7) Linear weights stored as (in, out), zero biases,
    LayerNorm weight=1 / bias=0.  Raw (unpacked) params; used by the reference."""
    params = {}
    keys = jax.random.split(key, len(LIN_SHAPES))
    for k, (name, (fi, fo)) in zip(keys, LIN_SHAPES.items()):
        std = GAIN * (2.0 / (fi + fo)) ** 0.5
        params[name + "_w"] = std * jax.random.normal(k, (fi, fo), jnp.float32)
        params[name + "_b"] = jnp.zeros((fo,), jnp.float32)
    for name in LN_LAYERS:
        width = LIN_SHAPES[name][1]
        params[name + "_g"] = jnp.ones((width,), jnp.float32)
        params[name + "_be"] = jnp.zeros((width,), jnp.float32)
    return params


def pack_params(params):
    """Pack raw params into the two VMEM-resident slabs used by the kernel.
    Pad regions are EXACTLY zero (required for the zero-padding tricks)."""
    eye4 = jnp.eye(PACK, dtype=jnp.float32)
    seg_id = jnp.arange(LANES) // SEG
    same_seg = (seg_id[:, None] == seg_id[None, :]).astype(jnp.float32)
    real16 = ((jnp.arange(LANES) % SEG) < H2).astype(jnp.float32)

    blocks = []
    for name in W_BLOCKS:
        if name == "M32":          # per-sample mean over 32 real lanes
            blocks.append(same_seg / float(HIDDEN))
        elif name == "M16":        # per-sample mean over the 16 real lanes only
            blocks.append(same_seg * real16[:, None] / float(H2))
        else:                      # zero-pad to (32,32), then 4x block-diagonal
            w = params[name + "_w"]
            wpad = jnp.zeros((SEG, SEG), jnp.float32).at[:w.shape[0], :w.shape[1]].set(w)
            blocks.append(jnp.kron(eye4, wpad))
    w_slab = jnp.concatenate(blocks, axis=0)               # (W_ROWS, 128)

    def tile_vec(v):
        vp = jnp.zeros((SEG,), jnp.float32).at[:v.shape[0]].set(v)
        return jnp.tile(vp, PACK)                           # (128,)

    suffix = {"b": "_b", "g": "_g", "be": "_be"}
    rows = []
    for vname in V_NAMES:
        kind, layer = vname.split("_", 1)
        rows.append(tile_vec(params[layer + suffix[kind]]))
    v_slab = jnp.zeros((V_ROWS, LANES), jnp.float32).at[:len(V_NAMES)].set(
        jnp.stack(rows, axis=0))
    return w_slab, v_slab


# ------------------------------- Pallas kernel ---------------------------------------
def vae_kernel(xe_ref, w_ref, v_ref, out_ref):
    xe = xe_ref[...]                       # (tile_r, 256)
    x = xe[:, :LANES]                      # packed input: 32 lanes per sample
    eps = xe[:, LANES:]                    # packed noise: lanes 0..15 per sample, else 0

    def wblock(name):                      # (128,128) sublane-aligned static slice
        off = W_OFF[name]
        return w_ref[off:off + LANES, :]

    def vrow(name):                        # (1,128); broadcast on add (single use each)
        r = V_ROW[name]
        return v_ref[r:r + 1, :]

    def lin(h, wname, bname):
        return jnp.dot(h, wblock(wname), preferred_element_type=jnp.float32) + vrow(bname)

    def ln(h, red_name, gname, bname):
        # exact two-pass segmented LayerNorm; M encodes per-sample 1/width averaging
        m_mat = wblock(red_name)
        mean = jnp.dot(h, m_mat, preferred_element_type=jnp.float32)
        c = h - mean
        var = jnp.dot(c * c, m_mat, preferred_element_type=jnp.float32)
        return c * jax.lax.rsqrt(var + LN_EPS) * vrow(gname) + vrow(bname)

    def lrelu(h):
        return jnp.where(h > 0, h, NEG_SLOPE * h)

    def sig(h):                            # exact sigmoid, single EUP op (tanh)
        return 0.5 * (1.0 + jnp.tanh(0.5 * h))

    # ---- encode ----
    r = lrelu(ln(lin(x, "e1", "b_e1"), "M32", "g_e1", "be_e1"))
    r = ln(lin(r, "e2", "b_e2"), "M32", "g_e2", "be_e2")       # encoder_res1 out
    h = x + r                                                  # input_dim == hidden_dim
    att = sig(lin(lrelu(lin(h, "ae_d", "b_ae_d")), "ae_u", "b_ae_u"))
    h = h * att
    h = lrelu(ln(lin(h, "ef", "b_ef"), "M16", "g_ef", "be_ef"))  # encoder_final
    mu = lin(h, "mu", "b_mu")              # lanes 0..15 per sample real, 16..31 == 0
    lv = lin(h, "lv", "b_lv")

    # ---- reparameterize (eps is 0 in pad lanes -> z pad lanes stay exactly 0) ----
    z = mu + eps * jnp.exp(0.5 * lv)

    # ---- decode ----
    d = lrelu(ln(lin(z, "df", "b_df"), "M16", "g_df", "be_df"))          # decoder_first
    r = lrelu(ln(lin(d, "dr1a", "b_dr1a"), "M32", "g_dr1a", "be_dr1a"))
    r = ln(lin(r, "dr1b", "b_dr1b"), "M32", "g_dr1b", "be_dr1b")         # decoder_res1
    h = r                                  # PyTorch discards the expand: x = res1_out
    att = sig(lin(lrelu(lin(h, "ad_d", "b_ad_d")), "ad_u", "b_ad_u"))
    h = h * att
    recon = lin(h, "dfin", "b_dfin")

    # single lane-dense (tile_r, 384) output slab, 128-lane-aligned slice stores
    out_ref[:, 0:LANES] = recon
    out_ref[:, LANES:2 * LANES] = mu
    out_ref[:, 2 * LANES:3 * LANES] = lv


# ------------------------------- wrapper ----------------------------------------------
def pick_num_blocks():
    """1 block (whole batch) on single-TC v5e/v6e; 2 parallel blocks on 2-TC v7x."""
    try:
        kind = jax.devices()[0].device_kind.lower()
    except Exception:
        kind = ""
    return 2 if "7" in kind else 1


@functools.partial(jax.jit, static_argnames=("num_blocks",))
def vae_forward(x, eps, w_slab, v_slab, num_blocks=1):
    B = x.shape[0]
    mult = PACK * 8 * num_blocks                       # rows per block must be a mult of 8
    Bp = ((B + mult - 1) // mult) * mult
    x_p = jnp.pad(x, ((0, Bp - B), (0, 0)))
    eps_p = jnp.pad(eps, ((0, Bp - B), (0, SEG - COMP)))   # noise in lanes 0..15, else 0
    R = Bp // PACK
    tile_r = R // num_blocks

    # fused single input: [x_packed (128) | eps_packed (128)]  ->  (R, 256)
    xe = jnp.concatenate([x_p.reshape(R, LANES), eps_p.reshape(R, LANES)], axis=-1)

    packed = pl.pallas_call(
        vae_kernel,
        out_shape=jax.ShapeDtypeStruct((R, 3 * LANES), jnp.float32),
        grid=(num_blocks,),
        in_specs=[
            pl.BlockSpec((tile_r, 2 * LANES), lambda i: (i, 0)),
            pl.BlockSpec((W_ROWS, LANES), lambda i: (0, 0)),   # weight slab: fetched once
            pl.BlockSpec((V_ROWS, LANES), lambda i: (0, 0)),   # vector slab: fetched once
        ],
        out_specs=pl.BlockSpec((tile_r, 3 * LANES), lambda i: (i, 0)),
        compiler_params=pltpu.CompilerParams(
            dimension_semantics=("parallel",)),
    )(xe, w_slab, v_slab)

    recon = packed[:, 0:LANES].reshape(Bp, SEG)[:B, :INPUT_DIM]
    mu = packed[:, LANES:2 * LANES].reshape(Bp, SEG)[:B, :COMP]
    logvar = packed[:, 2 * LANES:3 * LANES].reshape(Bp, SEG)[:B, :COMP]
    return recon, mu, logvar


# ------------------------- pure-JAX reference (PyTorch semantics) ---------------------
def vae_reference(params, x, eps):
    def lin(h, name):
        return h @ params[name + "_w"] + params[name + "_b"]

    def ln(h, name):
        m = jnp.mean(h, axis=-1, keepdims=True)
        v = jnp.mean((h - m) ** 2, axis=-1, keepdims=True)
        return (h - m) / jnp.sqrt(v + LN_EPS) * params[name + "_g"] + params[name + "_be"]

    lrelu = lambda h: jnp.where(h > 0, h, NEG_SLOPE * h)
    sig = jax.nn.sigmoid

    r = lrelu(ln(lin(x, "e1"), "e1"))
    r = ln(lin(r, "e2"), "e2")
    h = x + r
    h = h * sig(lin(lrelu(lin(h, "ae_d")), "ae_u"))
    h = lrelu(ln(lin(h, "ef"), "ef"))
    mu, logvar = lin(h, "mu"), lin(h, "lv")
    z = mu + eps * jnp.exp(0.5 * logvar)
    d = lrelu(ln(lin(z, "df"), "df"))
    r = lrelu(ln(lin(d, "dr1a"), "dr1a"))
    r = ln(lin(r, "dr1b"), "dr1b")
    h = r * sig(lin(lrelu(lin(r, "ad_d")), "ad_u"))
    return lin(h, "dfin"), mu, logvar


if __name__ == "__main__":
    key = jax.random.PRNGKey(0)
    k_param, k_x, k_eps = jax.random.split(key, 3)

    params = init_params(k_param)
    w_slab, v_slab = pack_params(params)
    x = jax.random.normal(k_x, (BATCH, INPUT_DIM), dtype=jnp.float32)
    eps = jax.random.normal(k_eps, (BATCH, COMP), dtype=jnp.float32)

    num_blocks = pick_num_blocks()
    recon, mu, logvar = vae_forward(x, eps, w_slab, v_slab, num_blocks=num_blocks)
    jax.block_until_ready((recon, mu, logvar))

    assert recon.shape == (BATCH, INPUT_DIM)
    assert mu.shape == (BATCH, COMP) and logvar.shape == (BATCH, COMP)

    # Sanity check against the pure-JAX reference.  The kernel math is now exact
    # (two-pass LN, tanh-form sigmoid); residual tolerance covers default
    # (reduced-precision) MXU matmul rounding differences between the two paths.
    r_ref, mu_ref, lv_ref = vae_reference(params, x, eps)
    assert jnp.allclose(recon, r_ref, atol=2e-2, rtol=2e-2)
    assert jnp.allclose(mu, mu_ref, atol=2e-2, rtol=2e-2)
    assert jnp.allclose(logvar, lv_ref, atol=2e-2, rtol=2e-2)

    print("KERNEL_OK")
</pallas_src>

<mosaic_0001>
module attributes {stable_mosaic.version = 11 : i64} {
  func.func @vae_kernel(%arg0: i32, %arg1: memref<64x256xf32, #tpu.memory_space<vmem>>, %arg2: memref<1920x128xf32, #tpu.memory_space<vmem>>, %arg3: memref<32x128xf32, #tpu.memory_space<vmem>>, %arg4: memref<64x384xf32, #tpu.memory_space<vmem>>) attributes {dimension_semantics = [#tpu.dimension_semantics<parallel>], iteration_bounds = array<i64: 1>, scalar_prefetch = 0 : i64, scratch_operands = 0 : i64, tpu.core_type = #tpu.core_type<tc>, window_params = [{transform_indices = @transform_0, window_bounds = array<i64: 64, 256>}, {pipeline_mode = #tpu.pipeline_mode<synchronous>, transform_indices = @transform_1, window_bounds = array<i64: 1920, 128>}, {pipeline_mode = #tpu.pipeline_mode<synchronous>, transform_indices = @transform_2, window_bounds = array<i64: 32, 128>}, {transform_indices = @transform_3, window_bounds = array<i64: 64, 384>}]} {
    %c0 = arith.constant 0 : index
    %c0_0 = arith.constant 0 : index
    %0 = vector.load %arg1[%c0, %c0_0] : memref<64x256xf32, #tpu.memory_space<vmem>>, vector<64x256xf32>
    %1 = vector.extract_strided_slice %0 {offsets = [0, 0], sizes = [64, 128], strides = [1, 1]} : vector<64x256xf32> to vector<64x128xf32>
    %2 = vector.extract_strided_slice %0 {offsets = [0, 128], sizes = [64, 128], strides = [1, 1]} : vector<64x256xf32> to vector<64x128xf32>
    %c0_1 = arith.constant 0 : index
    %c0_2 = arith.constant 0 : index
    %3 = vector.load %arg2[%c0_1, %c0_2] : memref<1920x128xf32, #tpu.memory_space<vmem>>, vector<128x128xf32>
    %cst = arith.constant dense<0.000000e+00> : vector<64x128xf32>
    %4 = tpu.matmul %1, %3, %cst {dimension_numbers = #tpu.dot_dimension_numbers<[1], [0], [0], [1], [0, 0, 1, 1], [], []>} : vector<64x128xf32>, vector<128x128xf32>, vector<64x128xf32> -> vector<64x128xf32>
    %c0_3 = arith.constant 0 : index
    %c0_4 = arith.constant 0 : index
    %5 = vector.load %arg3[%c0_3, %c0_4] : memref<32x128xf32, #tpu.memory_space<vmem>>, vector<1x128xf32>
    %6 = vector.broadcast %5 : vector<1x128xf32> to vector<64x128xf32>
    %7 = arith.addf %4, %6 : vector<64x128xf32>
    %c1664 = arith.constant 1664 : index
    %c0_5 = arith.constant 0 : index
    %8 = vector.load %arg2[%c1664, %c0_5] : memref<1920x128xf32, #tpu.memory_space<vmem>>, vector<128x128xf32>
    %cst_6 = arith.constant dense<0.000000e+00> : vector<64x128xf32>
    %9 = tpu.matmul %7, %8, %cst_6 {dimension_numbers = #tpu.dot_dimension_numbers<[1], [0], [0], [1], [0, 0, 1, 1], [], []>} : vector<64x128xf32>, vector<128x128xf32>, vector<64x128xf32> -> vector<64x128xf32>
    %10 = arith.subf %7, %9 : vector<64x128xf32>
    %11 = arith.mulf %10, %10 : vector<64x128xf32>
    %cst_7 = arith.constant dense<0.000000e+00> : vector<64x128xf32>
    %12 = tpu.matmul %11, %8, %cst_7 {dimension_numbers = #tpu.dot_dimension_numbers<[1], [0], [0], [1], [0, 0, 1, 1], [], []>} : vector<64x128xf32>, vector<128x128xf32>, vector<64x128xf32> -> vector<64x128xf32>
    %cst_8 = arith.constant 9.99999974E-6 : f32
    %13 = vector.broadcast %cst_8 : f32 to vector<64x128xf32>
    %14 = arith.addf %12, %13 : vector<64x128xf32>
    %15 = math.rsqrt %14 : vector<64x128xf32>
    %16 = arith.mulf %10, %15 : vector<64x128xf32>
    %c1 = arith.constant 1 : index
    %c0_9 = arith.constant 0 : index
    %17 = vector.load %arg3[%c1, %c0_9] : memref<32x128xf32, #tpu.memory_space<vmem>>, vector<1x128xf32>
    %18 = vector.broadcast %17 : vector<1x128xf32> to vector<64x128xf32>
    %19 = arith.mulf %16, %18 : vector<64x128xf32>
    %c2 = arith.constant 2 : index
    %c0_10 = arith.constant 0 : index
    %20 = vector.load %arg3[%c2, %c0_10] : memref<32x128xf32, #tpu.memory_space<vmem>>, vector<1x128xf32>
    %21 = vector.broadcast %20 : vector<1x128xf32> to vector<64x128xf32>
    %22 = arith.addf %19, %21 : vector<64x128xf32>
    %cst_11 = arith.constant 0.000000e+00 : f32
    %23 = vector.broadcast %cst_11 : f32 to vector<64x128xf32>
    %24 = arith.cmpf ogt, %22, %23 : vector<64x128xf32>
    %cst_12 = arith.constant 2.000000e-01 : f32
    %25 = vector.broadcast %cst_12 : f32 to vector<64x128xf32>
    %26 = arith.mulf %25, %22 : vector<64x128xf32>
    %27 = arith.select %24, %22, %26 : vector<64x128xi1>, vector<64x128xf32>
    %c128 = arith.constant 128 : index
    %c0_13 = arith.constant 0 : index
    %28 = vector.load %arg2[%c128, %c0_13] : memref<1920x128xf32, #tpu.memory_space<vmem>>, vector<128x128xf32>
    %cst_14 = arith.constant dense<0.000000e+00> : vector<64x128xf32>
    %29 = tpu.matmul %27, %28, %cst_14 {dimension_numbers = #tpu.dot_dimension_numbers<[1], [0], [0], [1], [0, 0, 1, 1], [], []>} : vector<64x128xf32>, vector<128x128xf32>, vector<64x128xf32> -> vector<64x128xf32>
    %c3 = arith.constant 3 : index
    %c0_15 = arith.constant 0 : index
    %30 = vector.load %arg3[%c3, %c0_15] : memref<32x128xf32, #tpu.memory_space<vmem>>, vector<1x128xf32>
    %31 = vector.broadcast %30 : vector<1x128xf32> to vector<64x128xf32>
    %32 = arith.addf %29, %31 : vector<64x128xf32>
    %c1664_16 = arith.constant 1664 : index
    %c0_17 = arith.constant 0 : index
    %33 = vector.load %arg2[%c1664_16, %c0_17] : memref<1920x128xf32, #tpu.memory_space<vmem>>, vector<128x128xf32>
    %cst_18 = arith.constant dense<0.000000e+00> : vector<64x128xf32>
    %34 = tpu.matmul %32, %33, %cst_18 {dimension_numbers = #tpu.dot_dimension_numbers<[1], [0], [0], [1], [0, 0, 1, 1], [], []>} : vector<64x128xf32>, vector<128x128xf32>, vector<64x128xf32> -> vector<64x128xf32>
    %35 = arith.subf %32, %34 : vector<64x128xf32>
    %36 = arith.mulf %35, %35 : vector<64x128xf32>
    %cst_19 = arith.constant dense<0.000000e+00> : vector<64x128xf32>
    %37 = tpu.matmul %36, %33, %cst_19 {dimension_numbers = #tpu.dot_dimension_numbers<[1], [0], [0], [1], [0, 0, 1, 1], [], []>} : vector<64x128xf32>, vector<128x128xf32>, vector<64x128xf32> -> vector<64x128xf32>
    %cst_20 = arith.constant 9.99999974E-6 : f32
    %38 = vector.broadcast %cst_20 : f32 to vector<64x128xf32>
    %39 = arith.addf %37, %38 : vector<64x128xf32>
    %40 = math.rsqrt %39 : vector<64x128xf32>
    %41 = arith.mulf %35, %40 : vector<64x128xf32>
    %c4 = arith.constant 4 : index
    %c0_21 = arith.constant 0 : index
    %42 = vector.load %arg3[%c4, %c0_21] : memref<32x128xf32, #tpu.memory_space<vmem>>, vector<1x128xf32>
    %43 = vector.broadcast %42 : vector<1x128xf32> to vector<64x128xf32>
    %44 = arith.mulf %41, %43 : vector<64x128xf32>
    %c5 = arith.constant 5 : index
    %c0_22 = arith.constant 0 : index
    %45 = vector.load %arg3[%c5, %c0_22] : memref<32x128xf32, #tpu.memory_space<vmem>>, vector<1x128xf32>
    %46 = vector.broadcast %45 : vector<1x128xf32> to vector<64x128xf32>
    %47 = arith.addf %44, %46 : vector<64x128xf32>
    %48 = arith.addf %1, %47 : vector<64x128xf32>
    %c256 = arith.constant 256 : index
    %c0_23 = arith.constant 0 : index
    %49 = vector.load %arg2[%c256, %c0_23] : memref<1920x128xf32, #tpu.memory_space<vmem>>, vector<128x128xf32>
    %cst_24 = arith.constant dense<0.000000e+00> : vector<64x128xf32>
    %50 = tpu.matmul %48, %49, %cst_24 {dimension_numbers = #tpu.dot_dimension_numbers<[1], [0], [0], [1], [0, 0, 1, 1], [], []>} : vector<64x128xf32>, vector<128x128xf32>, vector<64x128xf32> -> vector<64x128xf32>
    %c6 = arith.constant 6 : index
    %c0_25 = arith.constant 0 : index
    %51 = vector.load %arg3[%c6, %c0_25] : memref<32x128xf32, #tpu.memory_space<vmem>>, vector<1x128xf32>
    %52 = vector.broadcast %51 : vector<1x128xf32> to vector<64x128xf32>
    %53 = arith.addf %50, %52 : vector<64x128xf32>
    %cst_26 = arith.constant 0.000000e+00 : f32
    %54 = vector.broadcast %cst_26 : f32 to vector<64x128xf32>
    %55 = arith.cmpf ogt, %53, %54 : vector<64x128xf32>
    %cst_27 = arith.constant 2.000000e-01 : f32
    %56 = vector.broadcast %cst_27 : f32 to vector<64x128xf32>
    %57 = arith.mulf %56, %53 : vector<64x128xf32>
    %58 = arith.select %55, %53, %57 : vector<64x128xi1>, vector<64x128xf32>
    %c384 = arith.constant 384 : index
    %c0_28 = arith.constant 0 : index
    %59 = vector.load %arg2[%c384, %c0_28] : memref<1920x128xf32, #tpu.memory_space<vmem>>, vector<128x128xf32>
    %cst_29 = arith.constant dense<0.000000e+00> : vector<64x128xf32>
    %60 = tpu.matmul %58, %59, %cst_29 {dimension_numbers = #tpu.dot_dimension_numbers<[1], [0], [0], [1], [0, 0, 1, 1], [], []>} : vector<64x128xf32>, vector<128x128xf32>, vector<64x128xf32> -> vector<64x128xf32>
    %c7 = arith.constant 7 : index
    %c0_30 = arith.constant 0 : index
    %61 = vector.load %arg3[%c7, %c0_30] : memref<32x128xf32, #tpu.memory_space<vmem>>, vector<1x128xf32>
    %62 = vector.broadcast %61 : vector<1x128xf32> to vector<64x128xf32>
    %63 = arith.addf %60, %62 : vector<64x128xf32>
    %cst_31 = arith.constant 5.000000e-01 : f32
    %64 = vector.broadcast %cst_31 : f32 to vector<64x128xf32>
    %65 = arith.mulf %64, %63 : vector<64x128xf32>
    %66 = math.tanh %65 : vector<64x128xf32>
    %cst_32 = arith.constant 1.000000e+00 : f32
    %67 = vector.broadcast %cst_32 : f32 to vector<64x128xf32>
    %68 = arith.addf %67, %66 : vector<64x128xf32>
    %cst_33 = arith.constant 5.000000e-01 : f32
    %69 = vector.broadcast %cst_33 : f32 to vector<64x128xf32>
    %70 = arith.mulf %69, %68 : vector<64x128xf32>
    %71 = arith.mulf %48, %70 : vector<64x128xf32>
    %c512 = arith.constant 512 : index
    %c0_34 = arith.constant 0 : index
    %72 = vector.load %arg2[%c512, %c0_34] : memref<1920x128xf32, #tpu.memory_space<vmem>>, vector<128x128xf32>
    %cst_35 = arith.constant dense<0.000000e+00> : vector<64x128xf32>
    %73 = tpu.matmul %71, %72, %cst_35 {dimension_numbers = #tpu.dot_dimension_numbers<[1], [0], [0], [1], [0, 0, 1, 1], [], []>} : vector<64x128xf32>, vector<128x128xf32>, vector<64x128xf32> -> vector<64x128xf32>
    %c8 = arith.constant 8 : index
    %c0_36 = arith.constant 0 : index
    %74 = vector.load %arg3[%c8, %c0_36] : memref<32x128xf32, #tpu.memory_space<vmem>>, vector<1x128xf32>
    %75 = vector.broadcast %74 : vector<1x128xf32> to vector<64x128xf32>
    %76 = arith.addf %73, %75 : vector<64x128xf32>
    %c1792 = arith.constant 1792 : index
    %c0_37 = arith.constant 0 : index
    %77 = vector.load %arg2[%c1792, %c0_37] : memref<1920x128xf32, #tpu.memory_space<vmem>>, vector<128x128xf32>
    %cst_38 = arith.constant dense<0.000000e+00> : vector<64x128xf32>
    %78 = tpu.matmul %76, %77, %cst_38 {dimension_numbers = #tpu.dot_dimension_numbers<[1], [0], [0], [1], [0, 0, 1, 1], [], []>} : vector<64x128xf32>, vector<128x128xf32>, vector<64x128xf32> -> vector<64x128xf32>
    %79 = arith.subf %76, %78 : vector<64x128xf32>
    %80 = arith.mulf %79, %79 : vector<64x128xf32>
    %cst_39 = arith.constant dense<0.000000e+00> : vector<64x128xf32>
    %81 = tpu.matmul %80, %77, %cst_39 {dimension_numbers = #tpu.dot_dimension_numbers<[1], [0], [0], [1], [0, 0, 1, 1], [], []>} : vector<64x128xf32>, vector<128x128xf32>, vector<64x128xf32> -> vector<64x128xf32>
    %cst_40 = arith.constant 9.99999974E-6 : f32
    %82 = vector.broadcast %cst_40 : f32 to vector<64x128xf32>
    %83 = arith.addf %81, %82 : vector<64x128xf32>
    %84 = math.rsqrt %83 : vector<64x128xf32>
    %85 = arith.mulf %79, %84 : vector<64x128xf32>
    %c9 = arith.constant 9 : index
    %c0_41 = arith.constant 0 : index
    %86 = vector.load %arg3[%c9, %c0_41] : memref<32x128xf32, #tpu.memory_space<vmem>>, vector<1x128xf32>
    %87 = vector.broadcast %86 : vector<1x128xf32> to vector<64x128xf32>
    %88 = arith.mulf %85, %87 : vector<64x128xf32>
    %c10 = arith.constant 10 : index
    %c0_42 = arith.constant 0 : index
    %89 = vector.load %arg3[%c10, %c0_42] : memref<32x128xf32, #tpu.memory_space<vmem>>, vector<1x128xf32>
    %90 = vector.broadcast %89 : vector<1x128xf32> to vector<64x128xf32>
    %91 = arith.addf %88, %90 : vector<64x128xf32>
    %cst_43 = arith.constant 0.000000e+00 : f32
    %92 = vector.broadcast %cst_43 : f32 to vector<64x128xf32>
    %93 = arith.cmpf ogt, %91, %92 : vector<64x128xf32>
    %cst_44 = arith.constant 2.000000e-01 : f32
    %94 = vector.broadcast %cst_44 : f32 to vector<64x128xf32>
    %95 = arith.mulf %94, %91 : vector<64x128xf32>
    %96 = arith.select %93, %91, %95 : vector<64x128xi1>, vector<64x128xf32>
    %c640 = arith.constant 640 : index
    %c0_45 = arith.constant 0 : index
    %97 = vector.load %arg2[%c640, %c0_45] : memref<1920x128xf32, #tpu.memory_space<vmem>>, vector<128x128xf32>
    %cst_46 = arith.constant dense<0.000000e+00> : vector<64x128xf32>
    %98 = tpu.matmul %96, %97, %cst_46 {dimension_numbers = #tpu.dot_dimension_numbers<[1], [0], [0], [1], [0, 0, 1, 1], [], []>} : vector<64x128xf32>, vector<128x128xf32>, vector<64x128xf32> -> vector<64x128xf32>
    %c11 = arith.constant 11 : index
    %c0_47 = arith.constant 0 : index
    %99 = vector.load %arg3[%c11, %c0_47] : memref<32x128xf32, #tpu.memory_space<vmem>>, vector<1x128xf32>
    %100 = vector.broadcast %99 : vector<1x128xf32> to vector<64x128xf32>
    %101 = arith.addf %98, %100 : vector<64x128xf32>
    %c768 = arith.constant 768 : index
    %c0_48 = arith.constant 0 : index
    %102 = vector.load %arg2[%c768, %c0_48] : memref<1920x128xf32, #tpu.memory_space<vmem>>, vector<128x128xf32>
    %cst_49 = arith.constant dense<0.000000e+00> : vector<64x128xf32>
    %103 = tpu.matmul %96, %102, %cst_49 {dimension_numbers = #tpu.dot_dimension_numbers<[1], [0], [0], [1], [0, 0, 1, 1], [], []>} : vector<64x128xf32>, vector<128x128xf32>, vector<64x128xf32> -> vector<64x128xf32>
    %c12 = arith.constant 12 : index
    %c0_50 = arith.constant 0 : index
    %104 = vector.load %arg3[%c12, %c0_50] : memref<32x128xf32, #tpu.memory_space<vmem>>, vector<1x128xf32>
    %105 = vector.broadcast %104 : vector<1x128xf32> to vector<64x128xf32>
    %106 = arith.addf %103, %105 : vector<64x128xf32>
    %cst_51 = arith.constant 5.000000e-01 : f32
    %107 = vector.broadcast %cst_51 : f32 to vector<64x128xf32>
    %108 = arith.mulf %107, %106 : vector<64x128xf32>
    %109 = math.exp %108 : vector<64x128xf32>
    %110 = arith.mulf %2, %109 : vector<64x128xf32>
    %111 = arith.addf %101, %110 : vector<64x128xf32>
    %c896 = arith.constant 896 : index
    %c0_52 = arith.constant 0 : index
    %112 = vector.load %arg2[%c896, %c0_52] : memref<1920x128xf32, #tpu.memory_space<vmem>>, vector<128x128xf32>
    %cst_53 = arith.constant dense<0.000000e+00> : vector<64x128xf32>
    %113 = tpu.matmul %111, %112, %cst_53 {dimension_numbers = #tpu.dot_dimension_numbers<[1], [0], [0], [1], [0, 0, 1, 1], [], []>} : vector<64x128xf32>, vector<128x128xf32>, vector<64x128xf32> -> vector<64x128xf32>
    %c13 = arith.constant 13 : index
    %c0_54 = arith.constant 0 : index
    %114 = vector.load %arg3[%c13, %c0_54] : memref<32x128xf32, #tpu.memory_space<vmem>>, vector<1x128xf32>
    %115 = vector.broadcast %114 : vector<1x128xf32> to vector<64x128xf32>
    %116 = arith.addf %113, %115 : vector<64x128xf32>
    %c1792_55 = arith.constant 1792 : index
    %c0_56 = arith.constant 0 : index
    %117 = vector.load %arg2[%c1792_55, %c0_56] : memref<1920x128xf32, #tpu.memory_space<vmem>>, vector<128x128xf32>
    %cst_57 = arith.constant dense<0.000000e+00> : vector<64x128xf32>
    %118 = tpu.matmul %116, %117, %cst_57 {dimension_numbers = #tpu.dot_dimension_numbers<[1], [0], [0], [1], [0, 0, 1, 1], [], []>} : vector<64x128xf32>, vector<128x128xf32>, vector<64x128xf32> -> vector<64x128xf32>
    %119 = arith.subf %116, %118 : vector<64x128xf32>
    %120 = arith.mulf %119, %119 : vector<64x128xf32>
    %cst_58 = arith.constant dense<0.000000e+00> : vector<64x128xf32>
    %121 = tpu.matmul %120, %117, %cst_58 {dimension_numbers = #tpu.dot_dimension_numbers<[1], [0], [0], [1], [0, 0, 1, 1], [], []>} : vector<64x128xf32>, vector<128x128xf32>, vector<64x128xf32> -> vector<64x128xf32>
    %cst_59 = arith.constant 9.99999974E-6 : f32
    %122 = vector.broadcast %cst_59 : f32 to vector<64x128xf32>
    %123 = arith.addf %121, %122 : vector<64x128xf32>
    %124 = math.rsqrt %123 : vector<64x128xf32>
    %125 = arith.mulf %119, %124 : vector<64x128xf32>
    %c14 = arith.constant 14 : index
    %c0_60 = arith.constant 0 : index
    %126 = vector.load %arg3[%c14, %c0_60] : memref<32x128xf32, #tpu.memory_space<vmem>>, vector<1x128xf32>
    %127 = vector.broadcast %126 : vector<1x128xf32> to vector<64x128xf32>
    %128 = arith.mulf %125, %127 : vector<64x128xf32>
    %c15 = arith.constant 15 : index
    %c0_61 = arith.constant 0 : index
    %129 = vector.load %arg3[%c15, %c0_61] : memref<32x128xf32, #tpu.memory_space<vmem>>, vector<1x128xf32>
    %130 = vector.broadcast %129 : vector<1x128xf32> to vector<64x128xf32>
    %131 = arith.addf %128, %130 : vector<64x128xf32>
    %cst_62 = arith.constant 0.000000e+00 : f32
    %132 = vector.broadcast %cst_62 : f32 to vector<64x128xf32>
    %133 = arith.cmpf ogt, %131, %132 : vector<64x128xf32>
    %cst_63 = arith.constant 2.000000e-01 : f32
    %134 = vector.broadcast %cst_63 : f32 to vector<64x128xf32>
    %135 = arith.mulf %134, %131 : vector<64x128xf32>
    %136 = arith.select %133, %131, %135 : vector<64x128xi1>, vector<64x128xf32>
    %c1024 = arith.constant 1024 : index
    %c0_64 = arith.constant 0 : index
    %137 = vector.load %arg2[%c1024, %c0_64] : memref<1920x128xf32, #tpu.memory_space<vmem>>, vector<128x128xf32>
    %cst_65 = arith.constant dense<0.000000e+00> : vector<64x128xf32>
    %138 = tpu.matmul %136, %137, %cst_65 {dimension_numbers = #tpu.dot_dimension_numbers<[1], [0], [0], [1], [0, 0, 1, 1], [], []>} : vector<64x128xf32>, vector<128x128xf32>, vector<64x128xf32> -> vector<64x128xf32>
    %c16 = arith.constant 16 : index
    %c0_66 = arith.constant 0 : index
    %139 = vector.load %arg3[%c16, %c0_66] : memref<32x128xf32, #tpu.memory_space<vmem>>, vector<1x128xf32>
    %140 = vector.broadcast %139 : vector<1x128xf32> to vector<64x128xf32>
    %141 = arith.addf %138, %140 : vector<64x128xf32>
    %c1664_67 = arith.constant 1664 : index
    %c0_68 = arith.constant 0 : index
    %142 = vector.load %arg2[%c1664_67, %c0_68] : memref<1920x128xf32, #tpu.memory_space<vmem>>, vector<128x128xf32>
    %cst_69 = arith.constant dense<0.000000e+00> : vector<64x128xf32>
    %143 = tpu.matmul %141, %142, %cst_69 {dimension_numbers = #tpu.dot_dimension_numbers<[1], [0], [0], [1], [0, 0, 1, 1], [], []>} : vector<64x128xf32>, vector<128x128xf32>, vector<64x128xf32> -> vector<64x128xf32>
    %144 = arith.subf %141, %143 : vector<64x128xf32>
    %145 = arith.mulf %144, %144 : vector<64x128xf32>
    %cst_70 = arith.constant dense<0.000000e+00> : vector<64x128xf32>
    %146 = tpu.matmul %145, %142, %cst_70 {dimension_numbers = #tpu.dot_dimension_numbers<[1], [0], [0], [1], [0, 0, 1, 1], [], []>} : vector<64x128xf32>, vector<128x128xf32>, vector<64x128xf32> -> vector<64x128xf32>
    %cst_71 = arith.constant 9.99999974E-6 : f32
    %147 = vector.broadcast %cst_71 : f32 to vector<64x128xf32>
    %148 = arith.addf %146, %147 : vector<64x128xf32>
    %149 = math.rsqrt %148 : vector<64x128xf32>
    %150 = arith.mulf %144, %149 : vector<64x128xf32>
    %c17 = arith.constant 17 : index
    %c0_72 = arith.constant 0 : index
    %151 = vector.load %arg3[%c17, %c0_72] : memref<32x128xf32, #tpu.memory_space<vmem>>, vector<1x128xf32>
    %152 = vector.broadcast %151 : vector<1x128xf32> to vector<64x128xf32>
    %153 = arith.mulf %150, %152 : vector<64x128xf32>
    %c18 = arith.constant 18 : index
    %c0_73 = arith.constant 0 : index
    %154 = vector.load %arg3[%c18, %c0_73] : memref<32x128xf32, #tpu.memory_space<vmem>>, vector<1x128xf32>
    %155 = vector.broadcast %154 : vector<1x128xf32> to vector<64x128xf32>
    %156 = arith.addf %153, %155 : vector<64x128xf32>
    %cst_74 = arith.constant 0.000000e+00 : f32
    %157 = vector.broadcast %cst_74 : f32 to vector<64x128xf32>
    %158 = arith.cmpf ogt, %156, %157 : vector<64x128xf32>
    %cst_75 = arith.constant 2.000000e-01 : f32
    %159 = vector.broadcast %cst_75 : f32 to vector<64x128xf32>
    %160 = arith.mulf %159, %156 : vector<64x128xf32>
    %161 = arith.select %158, %156, %160 : vector<64x128xi1>, vector<64x128xf32>
    %c1152 = arith.constant 1152 : index
    %c0_76 = arith.constant 0 : index
    %162 = vector.load %arg2[%c1152, %c0_76] : memref<1920x128xf32, #tpu.memory_space<vmem>>, vector<128x128xf32>
    %cst_77 = arith.constant dense<0.000000e+00> : vector<64x128xf32>
    %163 = tpu.matmul %161, %162, %cst_77 {dimension_numbers = #tpu.dot_dimension_numbers<[1], [0], [0], [1], [0, 0, 1, 1], [], []>} : vector<64x128xf32>, vector<128x128xf32>, vector<64x128xf32> -> vector<64x128xf32>
    %c19 = arith.constant 19 : index
    %c0_78 = arith.constant 0 : index
    %164 = vector.load %arg3[%c19, %c0_78] : memref<32x128xf32, #tpu.memory_space<vmem>>, vector<1x128xf32>
    %165 = vector.broadcast %164 : vector<1x128xf32> to vector<64x128xf32>
    %166 = arith.addf %163, %165 : vector<64x128xf32>
    %c1664_79 = arith.constant 1664 : index
    %c0_80 = arith.constant 0 : index
    %167 = vector.load %arg2[%c1664_79, %c0_80] : memref<1920x128xf32, #tpu.memory_space<vmem>>, vector<128x128xf32>
    %cst_81 = arith.constant dense<0.000000e+00> : vector<64x128xf32>
    %168 = tpu.matmul %166, %167, %cst_81 {dimension_numbers = #tpu.dot_dimension_numbers<[1], [0], [0], [1], [0, 0, 1, 1], [], []>} : vector<64x128xf32>, vector<128x128xf32>, vector<64x128xf32> -> vector<64x128xf32>
    %169 = arith.subf %166, %168 : vector<64x128xf32>
    %170 = arith.mulf %169, %169 : vector<64x128xf32>
    %cst_82 = arith.constant dense<0.000000e+00> : vector<64x128xf32>
    %171 = tpu.matmul %170, %167, %cst_82 {dimension_numbers = #tpu.dot_dimension_numbers<[1], [0], [0], [1], [0, 0, 1, 1], [], []>} : vector<64x128xf32>, vector<128x128xf32>, vector<64x128xf32> -> vector<64x128xf32>
    %cst_83 = arith.constant 9.99999974E-6 : f32
    %172 = vector.broadcast %cst_83 : f32 to vector<64x128xf32>
    %173 = arith.addf %171, %172 : vector<64x128xf32>
    %174 = math.rsqrt %173 : vector<64x128xf32>
    %175 = arith.mulf %169, %174 : vector<64x128xf32>
    %c20 = arith.constant 20 : index
    %c0_84 = arith.constant 0 : index
    %176 = vector.load %arg3[%c20, %c0_84] : memref<32x128xf32, #tpu.memory_space<vmem>>, vector<1x128xf32>
    %177 = vector.broadcast %176 : vector<1x128xf32> to vector<64x128xf32>
    %178 = arith.mulf %175, %177 : vector<64x128xf32>
    %c21 = arith.constant 21 : index
    %c0_85 = arith.constant 0 : index
    %179 = vector.load %arg3[%c21, %c0_85] : memref<32x128xf32, #tpu.memory_space<vmem>>, vector<1x128xf32>
    %180 = vector.broadcast %179 : vector<1x128xf32> to vector<64x128xf32>
    %181 = arith.addf %178, %180 : vector<64x128xf32>
    %c1280 = arith.constant 1280 : index
    %c0_86 = arith.constant 0 : index
    %182 = vector.load %arg2[%c1280, %c0_86] : memref<1920x128xf32, #tpu.memory_space<vmem>>, vector<128x128xf32>
    %cst_87 = arith.constant dense<0.000000e+00> : vector<64x128xf32>
    %183 = tpu.matmul %181, %182, %cst_87 {dimension_numbers = #tpu.dot_dimension_numbers<[1], [0], [0], [1], [0, 0, 1, 1], [], []>} : vector<64x128xf32>, vector<128x128xf32>, vector<64x128xf32> -> vector<64x128xf32>
    %c22 = arith.constant 22 : index
    %c0_88 = arith.constant 0 : index
    %184 = vector.load %arg3[%c22, %c0_88] : memref<32x128xf32, #tpu.memory_space<vmem>>, vector<1x128xf32>
    %185 = vector.broadcast %184 : vector<1x128xf32> to vector<64x128xf32>
    %186 = arith.addf %183, %185 : vector<64x128xf32>
    %cst_89 = arith.constant 0.000000e+00 : f32
    %187 = vector.broadcast %cst_89 : f32 to vector<64x128xf32>
    %188 = arith.cmpf ogt, %186, %187 : vector<64x128xf32>
    %cst_90 = arith.constant 2.000000e-01 : f32
    %189 = vector.broadcast %cst_90 : f32 to vector<64x128xf32>
    %190 = arith.mulf %189, %186 : vector<64x128xf32>
    %191 = arith.select %188, %186, %190 : vector<64x128xi1>, vector<64x128xf32>
    %c1408 = arith.constant 1408 : index
    %c0_91 = arith.constant 0 : index
    %192 = vector.load %arg2[%c1408, %c0_91] : memref<1920x128xf32, #tpu.memory_space<vmem>>, vector<128x128xf32>
    %cst_92 = arith.constant dense<0.000000e+00> : vector<64x128xf32>
    %193 = tpu.matmul %191, %192, %cst_92 {dimension_numbers = #tpu.dot_dimension_numbers<[1], [0], [0], [1], [0, 0, 1, 1], [], []>} : vector<64x128xf32>, vector<128x128xf32>, vector<64x128xf32> -> vector<64x128xf32>
    %c23 = arith.constant 23 : index
    %c0_93 = arith.constant 0 : index
    %194 = vector.load %arg3[%c23, %c0_93] : memref<32x128xf32, #tpu.memory_space<vmem>>, vector<1x128xf32>
    %195 = vector.broadcast %194 : vector<1x128xf32> to vector<64x128xf32>
    %196 = arith.addf %193, %195 : vector<64x128xf32>
    %cst_94 = arith.constant 5.000000e-01 : f32
    %197 = vector.broadcast %cst_94 : f32 to vector<64x128xf32>
    %198 = arith.mulf %197, %196 : vector<64x128xf32>
    %199 = math.tanh %198 : vector<64x128xf32>
    %cst_95 = arith.constant 1.000000e+00 : f32
    %200 = vector.broadcast %cst_95 : f32 to vector<64x128xf32>
    %201 = arith.addf %200, %199 : vector<64x128xf32>
    %cst_96 = arith.constant 5.000000e-01 : f32
    %202 = vector.broadcast %cst_96 : f32 to vector<64x128xf32>
    %203 = arith.mulf %202, %201 : vector<64x128xf32>
    %204 = arith.mulf %181, %203 : vector<64x128xf32>
    %c1536 = arith.constant 1536 : index
    %c0_97 = arith.constant 0 : index
    %205 = vector.load %arg2[%c1536, %c0_97] : memref<1920x128xf32, #tpu.memory_space<vmem>>, vector<128x128xf32>
    %cst_98 = arith.constant dense<0.000000e+00> : vector<64x128xf32>
    %206 = tpu.matmul %204, %205, %cst_98 {dimension_numbers = #tpu.dot_dimension_numbers<[1], [0], [0], [1], [0, 0, 1, 1], [], []>} : vector<64x128xf32>, vector<128x128xf32>, vector<64x128xf32> -> vector<64x128xf32>
    %c24 = arith.constant 24 : index
    %c0_99 = arith.constant 0 : index
    %207 = vector.load %arg3[%c24, %c0_99] : memref<32x128xf32, #tpu.memory_space<vmem>>, vector<1x128xf32>
    %208 = vector.broadcast %207 : vector<1x128xf32> to vector<64x128xf32>
    %209 = arith.addf %206, %208 : vector<64x128xf32>
    %c0_100 = arith.constant 0 : index
    %c0_101 = arith.constant 0 : index
    %210 = vector.load %arg4[%c0_100, %c0_101] : memref<64x384xf32, #tpu.memory_space<vmem>>, vector<64x128xf32>
    tpu.vector_store %arg4[%c0_100, %c0_101], %209 {strides = array<i32>} : memref<64x384xf32, #tpu.memory_space<vmem>>, vector<64x128xf32>,
    %c0_102 = arith.constant 0 : index
    %c128_103 = arith.constant 128 : index
    %211 = vector.load %arg4[%c0_102, %c128_103] : memref<64x384xf32, #tpu.memory_space<vmem>>, vector<64x128xf32>
    tpu.vector_store %arg4[%c0_102, %c128_103], %101 {strides = array<i32>} : memref<64x384xf32, #tpu.memory_space<vmem>>, vector<64x128xf32>,
    %c0_104 = arith.constant 0 : index
    %c256_105 = arith.constant 256 : index
    %212 = vector.load %arg4[%c0_104, %c256_105] : memref<64x384xf32, #tpu.memory_space<vmem>>, vector<64x128xf32>
    tpu.vector_store %arg4[%c0_104, %c256_105], %106 {strides = array<i32>} : memref<64x384xf32, #tpu.memory_space<vmem>>, vector<64x128xf32>,
    return
  }
  func.func @transform_0(%arg0: i32) -> (i32, i32) {
    %c0_i32 = arith.constant 0 : i32
    %c0_i32_0 = arith.constant 0 : i32
    return %arg0, %c0_i32 : i32, i32
  }
  func.func @transform_1(%arg0: i32) -> (i32, i32) {
    %c0_i32 = arith.constant 0 : i32
    %c0_i32_0 = arith.constant 0 : i32
    %c0_i32_1 = arith.constant 0 : i32
    return %c0_i32, %c0_i32_0 : i32, i32
  }
  func.func @transform_2(%arg0: i32) -> (i32, i32) {
    %c0_i32 = arith.constant 0 : i32
    %c0_i32_0 = arith.constant 0 : i32
    %c0_i32_1 = arith.constant 0 : i32
    return %c0_i32, %c0_i32_0 : i32, i32
  }
  func.func @transform_3(%arg0: i32) -> (i32, i32) {
    %c0_i32 = arith.constant 0 : i32
    %c0_i32_0 = arith.constant 0 : i32
    return %arg0, %c0_i32 : i32, i32
  }
}

</mosaic_0001>

<llo_original>
// kernel: vae_forward.1
$region0: #{vae_forward.1}
  #allocation0 [shape = 'u32[]', space=smem, size = 0x4, offset = 0x4, fixed_abs, tag = 'smem constant byte address 0x4 - core index']
  #allocation1 [shape = 'u32[144,128]{1,0:T(1,128)}', space=vmem, size = 0x12000, scoped, tag = 'internal scratch']
  %s0 = inlined_call_operand.vmem [shape: f32[64,256], index: 0, kind: input, shape index: {}]
  %s1 = inlined_call_operand.vmem [shape: f32[1920,128], index: 1, kind: input, shape index: {}]
  %s2 = inlined_call_operand.vmem [shape: f32[32,128], index: 2, kind: input, shape index: {}]
  %s3 = inlined_call_operand.vmem [shape: f32[64,384], index: 3, kind: output, shape index: {}]
  %s4 = sld [smem:[#allocation0]]
  $region22: #{vae_forward.1} parent=0
    _
  %s6 = ssub.s32 1, %s4
  %s7 = scalar_select 0, %s6, %s4
  // Predicated region
  $region2: #{vae_forward.1} parent=0 // pred_check
    _
  $region3: #{vae_forward.1} parent=0 // pred_check_branch
    %9 = sbr.rel (0) target = $region5
  $region4: #{vae_forward.1} parent=0 // pred_region
    _
  $region5: #{vae_forward.1} parent=0 // pred_fallthru
    _
  // Predicated region
  $region6: #{vae_forward.1} parent=0 // pred_check
    _
  $region7: #{vae_forward.1} parent=0 // pred_check_branch
    %11 = sbr.rel (0) target = $region9
  $region8: #{vae_forward.1} parent=0 // pred_region
    _
  $region9: #{vae_forward.1} parent=0 // pred_fallthru
    _
  // Predicated region
  $region10: #{vae_forward.1} parent=0 // pred_check
    _
  $region11: #{vae_forward.1} parent=0 // pred_check_branch
    %13 = sbr.rel (0) target = $region13
  $region12: #{vae_forward.1} parent=0 // pred_region
    _
  $region13: #{vae_forward.1} parent=0 // pred_fallthru
    _
  %v14 = vld [vmem:[%s0] sm:$0xff]
  %v15 = vld [vmem:[%s0 + $0x8] sm:$0xff]
  %v16 = vld [vmem:[%s0 + $0x10] sm:$0xff]
  %v17 = vld [vmem:[%s0 + $0x18] sm:$0xff]
  %v18 = vld [vmem:[%s0 + $0x20] sm:$0xff]
  %v19 = vld [vmem:[%s0 + $0x28] sm:$0xff]
  %v20 = vld [vmem:[%s0 + $0x30] sm:$0xff]
  %v21 = vld [vmem:[%s0 + $0x38] sm:$0xff]
  %v22 = vld [vmem:[%s0 + $0x40] sm:$0xff]
  %v23 = vld [vmem:[%s0 + $0x48] sm:$0xff]
  %v24 = vld [vmem:[%s0 + $0x50] sm:$0xff]
  %v25 = vld [vmem:[%s0 + $0x58] sm:$0xff]
  %v26 = vld [vmem:[%s0 + $0x60] sm:$0xff]
  %v27 = vld [vmem:[%s0 + $0x68] sm:$0xff]
  %v28 = vld [vmem:[%s0 + $0x70] sm:$0xff]
  %v29 = vld [vmem:[%s0 + $0x78] sm:$0xff]
  %v30 = vld [vmem:[%s1] sm:$0xff]
  %v31 = vld [vmem:[%s1 + $0x8] sm:$0xff]
  %v32 = vld [vmem:[%s1 + $0x10] sm:$0xff]
  %v33 = vld [vmem:[%s1 + $0x18] sm:$0xff]
  %v34 = vld [vmem:[%s1 + $0x20] sm:$0xff]
  %v35 = vld [vmem:[%s1 + $0x28] sm:$0xff]
  %v36 = vld [vmem:[%s1 + $0x30] sm:$0xff]
  %v37 = vld [vmem:[%s1 + $0x38] sm:$0xff]
  %v38 = vld [vmem:[%s1 + $0x40] sm:$0xff]
  %v39 = vld [vmem:[%s1 + $0x48] sm:$0xff]
  %v40 = vld [vmem:[%s1 + $0x50] sm:$0xff]
  %v41 = vld [vmem:[%s1 + $0x58] sm:$0xff]
  %v42 = vld [vmem:[%s1 + $0x60] sm:$0xff]
  %v43 = vld [vmem:[%s1 + $0x68] sm:$0xff]
  %v44 = vld [vmem:[%s1 + $0x70] sm:$0xff]
  %v45 = vld [vmem:[%s1 + $0x78] sm:$0xff]
  %v46 = vld [vmem:[%s2] sm:$0x1]
  %v47 = vlaneseq
  %v48 = vshrl.u32 %v47, 7
  %v49 = vsub.s32 0, %v48
  %v50 = vrot.slane %v46, %v49
  %51 = vmatprep.subr.mxu0 0.0
  %52 = vmatpush1.msra.mxu0 %v30
  %53 = vmatprep.subr.mxu0 0.0
  %54 = vmatpush1.msra.mxu0 %v31
  %55 = vmatprep.subr.mxu0 0.0
  %56 = vmatpush1.msra.mxu0 %v32
  %57 = vmatprep.subr.mxu0 0.0
  %58 = vmatpush1.msra.mxu0 %v33
  %59 = vmatprep.subr.mxu0 0.0
  %60 = vmatpush1.msra.mxu0 %v34
  %61 = vmatprep.subr.mxu0 0.0
  %62 = vmatpush1.msra.mxu0 %v35
  %63 = vmatprep.subr.mxu0 0.0
  %64 = vmatpush1.msra.mxu0 %v36
  %65 = vmatprep.subr.mxu0 0.0
  %66 = vmatpush1.msra.mxu0 %v37
  %67 = vmatprep.subr.mxu0 0.0
  %68 = vmatpush1.msra.mxu0 %v38
  %69 = vmatprep.subr.mxu0 0.0
  %70 = vmatpush1.msra.mxu0 %v39
  %71 = vmatprep.subr.mxu0 0.0
  %72 = vmatpush1.msra.mxu0 %v40
  %73 = vmatprep.subr.mxu0 0.0
  %74 = vmatpush1.msra.mxu0 %v41
  %75 = vmatprep.subr.mxu0 0.0
  %76 = vmatpush1.msra.mxu0 %v42
  %77 = vmatprep.subr.mxu0 0.0
  %78 = vmatpush1.msra.mxu0 %v43
  %79 = vmatprep.subr.mxu0 0.0
  %80 = vmatpush1.msra.mxu0 %v44
  %81 = vmatprep.subr.mxu0 0.0
  %82 = vmatpush1.msra.mxu0 %v45
  %83 = vmatprep.subr.mxu0 0.0
  %84 = vmatpush1.msra.mxu0 0.0
  %85 = vmatprep.subr.mxu0 0.0
  %86 = vmatpush1.msra.mxu0 0.0
  %87 = vmatprep.subr.mxu0 0.0
  %88 = vmatpush1.msra.mxu0 0.0
  %89 = vmatprep.subr.mxu0 0.0
  %90 = vmatpush1.msra.mxu0 0.0
  %91 = vmatprep.subr.mxu0 0.0
  %92 = vmatpush1.msra.mxu0 0.0
  %93 = vmatprep.subr.mxu0 0.0
  %94 = vmatpush1.msra.mxu0 0.0
  %95 = vmatprep.subr.mxu0 0.0
  %96 = vmatpush1.msra.mxu0 0.0
  %97 = vmatprep.subr.mxu0 0.0
  %98 = vmatpush1.msra.mxu0 0.0
  %99 = vmatprep.subr.mxu0 0.0
  %100 = vmatpush1.msra.mxu0 0.0
  %101 = vmatprep.subr.mxu0 0.0
  %102 = vmatpush1.msra.mxu0 0.0
  %103 = vmatprep.subr.mxu0 0.0
  %104 = vmatpush1.msra.mxu0 0.0
  %105 = vmatprep.subr.mxu0 0.0
  %106 = vmatpush1.msra.mxu0 0.0
  %107 = vmatprep.subr.mxu0 0.0
  %108 = vmatpush1.msra.mxu0 0.0
  %109 = vmatprep.subr.mxu0 0.0
  %110 = vmatpush1.msra.mxu0 0.0
  %111 = vmatprep.subr.mxu0 0.0
  %112 = vmatpush1.msra.mxu0 0.0
  %113 = vmatprep.subr.mxu0 0.0
  %114 = vmatpush1.msra.mxu0 0.0
  %115 = vmatprep.mubr.f32.mxu0 0.0
  %116 = vmatmul.mubr.f32.gmra.mrb[0].mxu0 %v14
  %v117 = vpop.f32.mrb[0].mxu0
  %v118 = vadd.f32 %v50, %v117
  %v119 = vpop.f32.mrb[0].mxu0
  %120 = vmatprep.mubr.f32.mxu0 0.0
  %121 = vmatmul.mubr.f32.gmra.mrb[0].mxu0 %v16
  %v122 = vpop.f32.mrb[0].mxu0
  %v123 = vadd.f32 %v50, %v122
  %v124 = vpop.f32.mrb[0].mxu0
  %125 = vmatprep.mubr.f32.mxu0 0.0
  %126 = vmatmul.mubr.f32.gmra.mrb[0].mxu0 %v18
  %v127 = vpop.f32.mrb[0].mxu0
  %v128 = vadd.f32 %v50, %v127
  %v129 = vpop.f32.mrb[0].mxu0
  %130 = vmatprep.mubr.f32.mxu0 0.0
  %131 = vmatmul.mubr.f32.gmra.mrb[0].mxu0 %v20
  %v132 = vpop.f32.mrb[0].mxu0
  %v133 = vadd.f32 %v50, %v132
  %v134 = vpop.f32.mrb[0].mxu0
  %135 = vmatprep.mubr.f32.mxu0 0.0
  %136 = vmatmul.mubr.f32.gmra.mrb[0].mxu0 %v22
  %v137 = vpop.f32.mrb[0].mxu0
  %v138 = vadd.f32 %v50, %v137
  %v139 = vpop.f32.mrb[0].mxu0
  %140 = vmatprep.mubr.f32.mxu0 0.0
  %141 = vmatmul.mubr.f32.gmra.mrb[0].mxu0 %v24
  %v142 = vpop.f32.mrb[0].mxu0
  %v143 = vadd.f32 %v50, %v142
  %v144 = vpop.f32.mrb[0].mxu0
  %145 = vmatprep.mubr.f32.mxu0 0.0
  %146 = vmatmul.mubr.f32.gmra.mrb[0].mxu0 %v26
  %v147 = vpop.f32.mrb[0].mxu0
  %v148 = vadd.f32 %v50, %v147
  %v149 = vpop.f32.mrb[0].mxu0
  %150 = vmatprep.mubr.f32.mxu0 0.0
  %151 = vmatmul.mubr.f32.gmra.mrb[0].mxu0 %v28
  %v152 = vpop.f32.mrb[0].mxu0
  %v153 = vadd.f32 %v50, %v152
  %v154 = vpop.f32.mrb[0].mxu0
  %155 = vdwg.mxu0
  %v156 = vld [vmem:[%s1 + $0x680] sm:$0xff]
  %v157 = vld [vmem:[%s1 + $0x688] sm:$0xff]
  %v158 = vld [vmem:[%s1 + $0x690] sm:$0xff]
  %v159 = vld [vmem:[%s1 + $0x698] sm:$0xff]
  %v160 = vld [vmem:[%s1 + $0x6a0] sm:$0xff]
  %v161 = vld [vmem:[%s1 + $0x6a8] sm:$0xff]
  %v162 = vld [vmem:[%s1 + $0x6b0] sm:$0xff]
  %v163 = vld [vmem:[%s1 + $0x6b8] sm:$0xff]
  %v164 = vld [vmem:[%s1 + $0x6c0] sm:$0xff]
  %v165 = vld [vmem:[%s1 + $0x6c8] sm:$0xff]
  %v166 = vld [vmem:[%s1 + $0x6d0] sm:$0xff]
  %v167 = vld [vmem:[%s1 + $0x6d8] sm:$0xff]
  %v168 = vld [vmem:[%s1 + $0x6e0] sm:$0xff]
  %v169 = vld [vmem:[%s1 + $0x6e8] sm:$0xff]
  %v170 = vld [vmem:[%s1 + $0x6f0] sm:$0xff]
  %v171 = vld [vmem:[%s1 + $0x6f8] sm:$0xff]
  %172 = vmatprep.subr.mxu0 0.0
  %173 = vmatpush1.msra.mxu0 %v156
  %174 = vmatprep.subr.mxu0 0.0
  %175 = vmatpush1.msra.mxu0 %v157
  %176 = vmatprep.subr.mxu0 0.0
  %177 = vmatpush1.msra.mxu0 %v158
  %178 = vmatprep.subr.mxu0 0.0
  %179 = vmatpush1.msra.mxu0 %v159
  %180 = vmatprep.subr.mxu0 0.0
  %181 = vmatpush1.msra.mxu0 %v160
  %182 = vmatprep.subr.mxu0 0.0
  %183 = vmatpush1.msra.mxu0 %v161
  %184 = vmatprep.subr.mxu0 0.0
  %185 = vmatpush1.msra.mxu0 %v162
  %186 = vmatprep.subr.mxu0 0.0
  %187 = vmatpush1.msra.mxu0 %v163
  %188 = vmatprep.subr.mxu0 0.0
  %189 = vmatpush1.msra.mxu0 %v164
  %190 = vmatprep.subr.mxu0 0.0
  %191 = vmatpush1.msra.mxu0 %v165
  %192 = vmatprep.subr.mxu0 0.0
  %193 = vmatpush1.msra.mxu0 %v166
  %194 = vmatprep.subr.mxu0 0.0
  %195 = vmatpush1.msra.mxu0 %v167
  %196 = vmatprep.subr.mxu0 0.0
  %197 = vmatpush1.msra.mxu0 %v168
  %198 = vmatprep.subr.mxu0 0.0
  %199 = vmatpush1.msra.mxu0 %v169
  %200 = vmatprep.subr.mxu0 0.0
  %201 = vmatpush1.msra.mxu0 %v170
  %202 = vmatprep.subr.mxu0 0.0
  %203 = vmatpush1.msra.mxu0 %v171
  %204 = vmatprep.subr.mxu0 0.0
  %205 = vmatpush1.msra.mxu0 0.0
  %206 = vmatprep.subr.mxu0 0.0
  %207 = vmatpush1.msra.mxu0 0.0
  %208 = vmatprep.subr.mxu0 0.0
  %209 = vmatpush1.msra.mxu0 0.0
  %210 = vmatprep.subr.mxu0 0.0
  %211 = vmatpush1.msra.mxu0 0.0
  %212 = vmatprep.subr.mxu0 0.0
  %213 = vmatpush1.msra.mxu0 0.0
  %214 = vmatprep.subr.mxu0 0.0
  %215 = vmatpush1.msra.mxu0 0.0
  %216 = vmatprep.subr.mxu0 0.0
  %217 = vmatpush1.msra.mxu0 0.0
  %218 = vmatprep.subr.mxu0 0.0
  %219 = vmatpush1.msra.mxu0 0.0
  %220 = vmatprep.subr.mxu0 0.0
  %221 = vmatpush1.msra.mxu0 0.0
  %222 = vmatprep.subr.mxu0 0.0
  %223 = vmatpush1.msra.mxu0 0.0
  %224 = vmatprep.subr.mxu0 0.0
  %225 = vmatpush1.msra.mxu0 0.0
  %226 = vmatprep.subr.mxu0 0.0
  %227 = vmatpush1.msra.mxu0 0.0
  %228 = vmatprep.subr.mxu0 0.0
  %229 = vmatpush1.msra.mxu0 0.0
  %230 = vmatprep.subr.mxu0 0.0
  %231 = vmatpush1.msra.mxu0 0.0
  %232 = vmatprep.subr.mxu0 0.0
  %233 = vmatpush1.msra.mxu0 0.0
  %234 = vmatprep.subr.mxu0 0.0
  %235 = vmatpush1.msra.mxu0 0.0
  %236 = vmatprep.mubr.f32.mxu0 0.0
  %237 = vmatmul.mubr.f32.gmra.mrb[0].mxu0 %v118
  %v238 = vpop.f32.mrb[0].mxu0
  %v239 = vadd.f32 0.0, %v238
  %v240 = vpop.f32.mrb[0].mxu0
  %241 = vmatprep.mubr.f32.mxu0 0.0
  %242 = vmatmul.mubr.f32.gmra.mrb[0].mxu0 %v123
  %v243 = vpop.f32.mrb[0].mxu0
  %v244 = vadd.f32 0.0, %v243
  %v245 = vpop.f32.mrb[0].mxu0
  %246 = vmatprep.mubr.f32.mxu0 0.0
  %247 = vmatmul.mubr.f32.gmra.mrb[0].mxu0 %v128
  %v248 = vpop.f32.mrb[0].mxu0
  %v249 = vadd.f32 0.0, %v248
  %v250 = vpop.f32.mrb[0].mxu0
  %251 = vmatprep.mubr.f32.mxu0 0.0
  %252 = vmatmul.mubr.f32.gmra.mrb[0].mxu0 %v133
  %v253 = vpop.f32.mrb[0].mxu0
  %v254 = vadd.f32 0.0, %v253
  %v255 = vpop.f32.mrb[0].mxu0
  %256 = vmatprep.mubr.f32.mxu0 0.0
  %257 = vmatmul.mubr.f32.gmra.mrb[0].mxu0 %v138
  %v258 = vpop.f32.mrb[0].mxu0
  %v259 = vadd.f32 0.0, %v258
  %v260 = vpop.f32.mrb[0].mxu0
  %261 = vmatprep.mubr.f32.mxu0 0.0
  %262 = vmatmul.mubr.f32.gmra.mrb[0].mxu0 %v143
  %v263 = vpop.f32.mrb[0].mxu0
  %v264 = vadd.f32 0.0, %v263
  %v265 = vpop.f32.mrb[0].mxu0
  %266 = vmatprep.mubr.f32.mxu0 0.0
  %267 = vmatmul.mubr.f32.gmra.mrb[0].mxu0 %v148
  %v268 = vpop.f32.mrb[0].mxu0
  %v269 = vadd.f32 0.0, %v268
  %v270 = vpop.f32.mrb[0].mxu0
  %271 = vmatprep.mubr.f32.mxu0 0.0
  %272 = vmatmul.mubr.f32.gmra.mrb[0].mxu0 %v153
  %v273 = vpop.f32.mrb[0].mxu0
  %v274 = vadd.f32 0.0, %v273
  %v275 = vpop.f32.mrb[0].mxu0
  %276 = vdwg.mxu0
  %v277 = vsub.f32 %v118, %v239
  %v278 = vsub.f32 %v123, %v244
  %v279 = vsub.f32 %v128, %v249
  %v280 = vsub.f32 %v133, %v254
  %v281 = vsub.f32 %v138, %v259
  %v282 = vsub.f32 %v143, %v264
  %v283 = vsub.f32 %v148, %v269
  %v284 = vsub.f32 %v153, %v274
  %v285 = vmul.f32 %v277, %v277
  %v286 = vmul.f32 %v278, %v278
  %v287 = vmul.f32 %v279, %v279
  %v288 = vmul.f32 %v280, %v280
  %v289 = vmul.f32 %v281, %v281
  %v290 = vmul.f32 %v282, %v282
  %v291 = vmul.f32 %v283, %v283
  %v292 = vmul.f32 %v284, %v284
  %293 = vmatprep.subr.mxu0 0.0
  %294 = vmatpush1.msra.mxu0 %v156
  %295 = vmatprep.subr.mxu0 0.0
  %296 = vmatpush1.msra.mxu0 %v157
  %297 = vmatprep.subr.mxu0 0.0
  %298 = vmatpush1.msra.mxu0 %v158
  %299 = vmatprep.subr.mxu0 0.0
  %300 = vmatpush1.msra.mxu0 %v159
  %301 = vmatprep.subr.mxu0 0.0
  %302 = vmatpush1.msra.mxu0 %v160
  %303 = vmatprep.subr.mxu0 0.0
  %304 = vmatpush1.msra.mxu0 %v161
  %305 = vmatprep.subr.mxu0 0.0
  %306 = vmatpush1.msra.mxu0 %v162
  %307 = vmatprep.subr.mxu0 0.0
  %308 = vmatpush1.msra.mxu0 %v163
  %309 = vmatprep.subr.mxu0 0.0
  %310 = vmatpush1.msra.mxu0 %v164
  %311 = vmatprep.subr.mxu0 0.0
  %312 = vmatpush1.msra.mxu0 %v165
  %313 = vmatprep.subr.mxu0 0.0
  %314 = vmatpush1.msra.mxu0 %v166
  %315 = vmatprep.subr.mxu0 0.0
  %316 = vmatpush1.msra.mxu0 %v167
  %317 = vmatprep.subr.mxu0 0.0
  %318 = vmatpush1.msra.mxu0 %v168
  %319 = vmatprep.subr.mxu0 0.0
  %320 = vmatpush1.msra.mxu0 %v169
  %321 = vmatprep.subr.mxu0 0.0
  %322 = vmatpush1.msra.mxu0 %v170
  %323 = vmatprep.subr.mxu0 0.0
  %324 = vmatpush1.msra.mxu0 %v171
  %325 = vmatprep.subr.mxu0 0.0
  %326 = vmatpush1.msra.mxu0 0.0
  %327 = vmatprep.subr.mxu0 0.0
  %328 = vmatpush1.msra.mxu0 0.0
  %329 = vmatprep.subr.mxu0 0.0
  %330 = vmatpush1.msra.mxu0 0.0
  %331 = vmatprep.subr.mxu0 0.0
  %332 = vmatpush1.msra.mxu0 0.0
  %333 = vmatprep.subr.mxu0 0.0
  %334 = vmatpush1.msra.mxu0 0.0
  %335 = vmatprep.subr.mxu0 0.0
  %336 = vmatpush1.msra.mxu0 0.0
  %337 = vmatprep.subr.mxu0 0.0
  %338 = vmatpush1.msra.mxu0 0.0
  %339 = vmatprep.subr.mxu0 0.0
  %340 = vmatpush1.msra.mxu0 0.0
  %341 = vmatprep.subr.mxu0 0.0
  %342 = vmatpush1.msra.mxu0 0.0
  %343 = vmatprep.subr.mxu0 0.0
  %344 = vmatpush1.msra.mxu0 0.0
  %345 = vmatprep.subr.mxu0 0.0
  %346 = vmatpush1.msra.mxu0 0.0
  %347 = vmatprep.subr.mxu0 0.0
  %348 = vmatpush1.msra.mxu0 0.0
  %349 = vmatprep.subr.mxu0 0.0
  %350 = vmatpush1.msra.mxu0 0.0
  %351 = vmatprep.subr.mxu0 0.0
  %352 = vmatpush1.msra.mxu0 0.0
  %353 = vmatprep.subr.mxu0 0.0
  %354 = vmatpush1.msra.mxu0 0.0
  %355 = vmatprep.subr.mxu0 0.0
  %356 = vmatpush1.msra.mxu0 0.0
  %357 = vmatprep.mubr.f32.mxu0 0.0
  %358 = vmatmul.mubr.f32.gmra.mrb[0].mxu0 %v285
  %v359 = vpop.f32.mrb[0].mxu0
  %v360 = vadd.f32 1e-05, %v359
  %v361 = vpop.f32.mrb[0].mxu0
  %362 = vmatprep.mubr.f32.mxu0 0.0
  %363 = vmatmul.mubr.f32.gmra.mrb[0].mxu0 %v286
  %v364 = vpop.f32.mrb[0].mxu0
  %v365 = vadd.f32 1e-05, %v364
  %v366 = vpop.f32.mrb[0].mxu0
  %367 = vmatprep.mubr.f32.mxu0 0.0
  %368 = vmatmul.mubr.f32.gmra.mrb[0].mxu0 %v287
  %v369 = vpop.f32.mrb[0].mxu0
  %v370 = vadd.f32 1e-05, %v369
  %v371 = vpop.f32.mrb[0].mxu0
  %372 = vmatprep.mubr.f32.mxu0 0.0
  %373 = vmatmul.mubr.f32.gmra.mrb[0].mxu0 %v288
  %v374 = vpop.f32.mrb[0].mxu0
  %v375 = vadd.f32 1e-05, %v374
  %v376 = vpop.f32.mrb[0].mxu0
  %377 = vmatprep.mubr.f32.mxu0 0.0
  %378 = vmatmul.mubr.f32.gmra.mrb[0].mxu0 %v289
  %v379 = vpop.f32.mrb[0].mxu0
  %v380 = vadd.f32 1e-05, %v379
  %v381 = vpop.f32.mrb[0].mxu0
  %382 = vmatprep.mubr.f32.mxu0 0.0
  %383 = vmatmul.mubr.f32.gmra.mrb[0].mxu0 %v290
  %v384 = vpop.f32.mrb[0].mxu0
  %v385 = vadd.f32 1e-05, %v384
  %v386 = vpop.f32.mrb[0].mxu0
  %387 = vmatprep.mubr.f32.mxu0 0.0
  %388 = vmatmul.mubr.f32.gmra.mrb[0].mxu0 %v291
  %v389 = vpop.f32.mrb[0].mxu0
  %v390 = vadd.f32 1e-05, %v389
  %v391 = vpop.f32.mrb[0].mxu0
  %392 = vmatprep.mubr.f32.mxu0 0.0
  %393 = vmatmul.mubr.f32.gmra.mrb[0].mxu0 %v292
  %v394 = vpop.f32.mrb[0].mxu0
  %v395 = vadd.f32 1e-05, %v394
  %v396 = vpop.f32.mrb[0].mxu0
  %397 = vdwg.mxu0
  %v398 = vrsqrt.pop %v360
  %v399 = vrsqrt.pop %v365
  %v400 = vrsqrt.pop %v370
  %v401 = vrsqrt.pop %v375
  %v402 = vrsqrt.pop %v380
  %v403 = vrsqrt.pop %v385
  %v404 = vrsqrt.pop %v390
  %v405 = vrsqrt.pop %v395
  %v406 = vmul.f32 %v277, %v398
  %v407 = vmul.f32 %v278, %v399
  %v408 = vmul.f32 %v279, %v400
  %v409 = vmul.f32 %v280, %v401
  %v410 = vmul.f32 %v281, %v402
  %v411 = vmul.f32 %v282, %v403
  %v412 = vmul.f32 %v283, %v404
  %v413 = vmul.f32 %v284, %v405
  %v414 = vld [vmem:[%s2 + $0x1] sm:$0x1]
  %v415 = vlaneseq
  %v416 = vshrl.u32 %v415, 7
  %v417 = vsub.s32 0, %v416
  %v418 = vrot.slane %v414, %v417
  %v419 = vmul.f32 %v406, %v418
  %v420 = vmul.f32 %v407, %v418
  %v421 = vmul.f32 %v408, %v418
  %v422 = vmul.f32 %v409, %v418
  %v423 = vmul.f32 %v410, %v418
  %v424 = vmul.f32 %v411, %v418
  %v425 = vmul.f32 %v412, %v418
  %v426 = vmul.f32 %v413, %v418
  %v427 = vld [vmem:[%s2 + $0x2] sm:$0x1]
  %v428 = vlaneseq
  %v429 = vshrl.u32 %v428, 7
  %v430 = vsub.s32 0, %v429
  %v431 = vrot.slane %v427, %v430
  %v432 = vadd.f32 %v419, %v431
  %v433 = vadd.f32 %v420, %v431
  %v434 = vadd.f32 %v421, %v431
  %v435 = vadd.f32 %v422, %v431
  %v436 = vadd.f32 %v423, %v431
  %v437 = vadd.f32 %v424, %v431
  %v438 = vadd.f32 %v425, %v431
  %v439 = vadd.f32 %v426, %v431
  %vm440 = vcmp.gt.f32.partialorder %v432, 0.0
  %vm441 = vcmp.gt.f32.partialorder %v433, 0.0
  %vm442 = vcmp.gt.f32.partialorder %v434, 0.0
  %vm443 = vcmp.gt.f32.partialorder %v435, 0.0
  %vm444 = vcmp.gt.f32.partialorder %v436, 0.0
  %vm445 = vcmp.gt.f32.partialorder %v437, 0.0
  %vm446 = vcmp.gt.f32.partialorder %v438, 0.0
  %vm447 = vcmp.gt.f32.partialorder %v439, 0.0
  %v448 = vmul.f32 %v432, 0.2
  %v449 = vmul.f32 %v433, 0.2
  %v450 = vmul.f32 %v434, 0.2
  %v451 = vmul.f32 %v435, 0.2
  %v452 = vmul.f32 %v436, 0.2
  %v453 = vmul.f32 %v437, 0.2
  %v454 = vmul.f32 %v438, 0.2
  %v455 = vmul.f32 %v439, 0.2
  %v456 = vsel %vm440, %v432, %v448
  %v457 = vsel %vm441, %v433, %v449
  %v458 = vsel %vm442, %v434, %v450
  %v459 = vsel %vm443, %v435, %v451
  %v460 = vsel %vm444, %v436, %v452
  %v461 = vsel %vm445, %v437, %v453
  %v462 = vsel %vm446, %v438, %v454
  %v463 = vsel %vm447, %v439, %v455
  %v464 = vld [vmem:[%s1 + $0x80] sm:$0xff]
  %v465 = vld [vmem:[%s1 + $0x88] sm:$0xff]
  %v466 = vld [vmem:[%s1 + $0x90] sm:$0xff]
  %v467 = vld [vmem:[%s1 + $0x98] sm:$0xff]
  %v468 = vld [vmem:[%s1 + $0xa0] sm:$0xff]
  %v469 = vld [vmem:[%s1 + $0xa8] sm:$0xff]
  %v470 = vld [vmem:[%s1 + $0xb0] sm:$0xff]
  %v471 = vld [vmem:[%s1 + $0xb8] sm:$0xff]
  %v472 = vld [vmem:[%s1 + $0xc0] sm:$0xff]
  %v473 = vld [vmem:[%s1 + $0xc8] sm:$0xff]
  %v474 = vld [vmem:[%s1 + $0xd0] sm:$0xff]
  %v475 = vld [vmem:[%s1 + $0xd8] sm:$0xff]
  %v476 = vld [vmem:[%s1 + $0xe0] sm:$0xff]
  %v477 = vld [vmem:[%s1 + $0xe8] sm:$0xff]
  %v478 = vld [vmem:[%s1 + $0xf0] sm:$0xff]
  %v479 = vld [vmem:[%s1 + $0xf8] sm:$0xff]
  %v480 = vld [vmem:[%s2 + $0x3] sm:$0x1]
  %v481 = vlaneseq
  %v482 = vshrl.u32 %v481, 7
  %v483 = vsub.s32 0, %v482
  %v484 = vrot.slane %v480, %v483
  %485 = vmatprep.subr.mxu0 0.0
  %486 = vmatpush1.msra.mxu0 %v464
  %487 = vmatprep.subr.mxu0 0.0
  %488 = vmatpush1.msra.mxu0 %v465
  %489 = vmatprep.subr.mxu0 0.0
  %490 = vmatpush1.msra.mxu0 %v466
  %491 = vmatprep.subr.mxu0 0.0
  %492 = vmatpush1.msra.mxu0 %v467
  %493 = vmatprep.subr.mxu0 0.0
  %494 = vmatpush1.msra.mxu0 %v468
  %495 = vmatprep.subr.mxu0 0.0
  %496 = vmatpush1.msra.mxu0 %v469
  %497 = vmatprep.subr.mxu0 0.0
  %498 = vmatpush1.msra.mxu0 %v470
  %499 = vmatprep.subr.mxu0 0.0
  %500 = vmatpush1.msra.mxu0 %v471
  %501 = vmatprep.subr.mxu0 0.0
  %502 = vmatpush1.msra.mxu0 %v472
  %503 = vmatprep.subr.mxu0 0.0
  %504 = vmatpush1.msra.mxu0 %v473
  %505 = vmatprep.subr.mxu0 0.0
  %506 = vmatpush1.msra.mxu0 %v474
  %507 = vmatprep.subr.mxu0 0.0
  %508 = vmatpush1.msra.mxu0 %v475
  %509 = vmatprep.subr.mxu0 0.0
  %510 = vmatpush1.msra.mxu0 %v476
  %511 = vmatprep.subr.mxu0 0.0
  %512 = vmatpush1.msra.mxu0 %v477
  %513 = vmatprep.subr.mxu0 0.0
  %514 = vmatpush1.msra.mxu0 %v478
  %515 = vmatprep.subr.mxu0 0.0
  %516 = vmatpush1.msra.mxu0 %v479
  %517 = vmatprep.subr.mxu0 0.0
  %518 = vmatpush1.msra.mxu0 0.0
  %519 = vmatprep.subr.mxu0 0.0
  %520 = vmatpush1.msra.mxu0 0.0
  %521 = vmatprep.subr.mxu0 0.0
  %522 = vmatpush1.msra.mxu0 0.0
  %523 = vmatprep.subr.mxu0 0.0
  %524 = vmatpush1.msra.mxu0 0.0
  %525 = vmatprep.subr.mxu0 0.0
  %526 = vmatpush1.msra.mxu0 0.0
  %527 = vmatprep.subr.mxu0 0.0
  %528 = vmatpush1.msra.mxu0 0.0
  %529 = vmatprep.subr.mxu0 0.0
  %530 = vmatpush1.msra.mxu0 0.0
  %531 = vmatprep.subr.mxu0 0.0
  %532 = vmatpush1.msra.mxu0 0.0
  %533 = vmatprep.subr.mxu0 0.0
  %534 = vmatpush1.msra.mxu0 0.0
  %535 = vmatprep.subr.mxu0 0.0
  %536 = vmatpush1.msra.mxu0 0.0
  %537 = vmatprep.subr.mxu0 0.0
  %538 = vmatpush1.msra.mxu0 0.0
  %539 = vmatprep.subr.mxu0 0.0
  %540 = vmatpush1.msra.mxu0 0.0
  %541 = vmatprep.subr.mxu0 0.0
  %542 = vmatpush1.msra.mxu0 0.0
  %543 = vmatprep.subr.mxu0 0.0
  %544 = vmatpush1.msra.mxu0 0.0
  %545 = vmatprep.subr.mxu0 0.0
  %546 = vmatpush1.msra.mxu0 0.0
  %547 = vmatprep.subr.mxu0 0.0
  %548 = vmatpush1.msra.mxu0 0.0
  %549 = vmatprep.mubr.f32.mxu0 0.0
  %550 = vmatmul.mubr.f32.gmra.mrb[0].mxu0 %v456
  %v551 = vpop.f32.mrb[0].mxu0
  %v552 = vadd.f32 %v484, %v551
  %v553 = vpop.f32.mrb[0].mxu0
  %554 = vmatprep.mubr.f32.mxu0 0.0
  %555 = vmatmul.mubr.f32.gmra.mrb[0].mxu0 %v457
  %v556 = vpop.f32.mrb[0].mxu0
  %v557 = vadd.f32 %v484, %v556
  %v558 = vpop.f32.mrb[0].mxu0
  %559 = vmatprep.mubr.f32.mxu0 0.0
  %560 = vmatmul.mubr.f32.gmra.mrb[0].mxu0 %v458
  %v561 = vpop.f32.mrb[0].mxu0
  %v562 = vadd.f32 %v484, %v561
  %v563 = vpop.f32.mrb[0].mxu0
  %564 = vmatprep.mubr.f32.mxu0 0.0
  %565 = vmatmul.mubr.f32.gmra.mrb[0].mxu0 %v459
  %v566 = vpop.f32.mrb[0].mxu0
  %v567 = vadd.f32 %v484, %v566
  %v568 = vpop.f32.mrb[0].mxu0
  %569 = vmatprep.mubr.f32.mxu0 0.0
  %570 = vmatmul.mubr.f32.gmra.mrb[0].mxu0 %v460
  %v571 = vpop.f32.mrb[0].mxu0
  %v572 = vadd.f32 %v484, %v571
  %v573 = vpop.f32.mrb[0].mxu0
  %574 = vmatprep.mubr.f32.mxu0 0.0
  %575 = vmatmul.mubr.f32.gmra.mrb[0].mxu0 %v461
  %v576 = vpop.f32.mrb[0].mxu0
  %v577 = vadd.f32 %v484, %v576
  %v578 = vpop.f32.mrb[0].mxu0
  %579 = vmatprep.mubr.f32.mxu0 0.0
  %580 = vmatmul.mubr.f32.gmra.mrb[0].mxu0 %v462
  %v581 = vpop.f32.mrb[0].mxu0
  %v582 = vadd.f32 %v484, %v581
  %v583 = vpop.f32.mrb[0].mxu0
  %584 = vmatprep.mubr.f32.mxu0 0.0
  %585 = vmatmul.mubr.f32.gmra.mrb[0].mxu0 %v463
  %v586 = vpop.f32.mrb[0].mxu0
  %v587 = vadd.f32 %v484, %v586
  %v588 = vpop.f32.mrb[0].mxu0
  %589 = vdwg.mxu0
  %590 = vmatprep.subr.mxu0 0.0
  %591 = vmatpush1.msra.mxu0 %v156
  %592 = vmatprep.subr.mxu0 0.0
  %593 = vmatpush1.msra.mxu0 %v157
  %594 = vmatprep.subr.mxu0 0.0
  %595 = vmatpush1.msra.mxu0 %v158
  %596 = vmatprep.subr.mxu0 0.0
  %597 = vmatpush1.msra.mxu0 %v159
  %598 = vmatprep.subr.mxu0 0.0
  %599 = vmatpush1.msra.mxu0 %v160
  %600 = vmatprep.subr.mxu0 0.0
  %601 = vmatpush1.msra.mxu0 %v161
  %602 = vmatprep.subr.mxu0 0.0
  %603 = vmatpush1.msra.mxu0 %v162
  %604 = vmatprep.subr.mxu0 0.0
  %605 = vmatpush1.msra.mxu0 %v163
  %606 = vmatprep.subr.mxu0 0.0
  %607 = vmatpush1.msra.mxu0 %v164
  %608 = vmatprep.subr.mxu0 0.0
  %609 = vmatpush1.msra.mxu0 %v165
  %610 = vmatprep.subr.mxu0 0.0
  %611 = vmatpush1.msra.mxu0 %v166
  %612 = vmatprep.subr.mxu0 0.0
  %613 = vmatpush1.msra.mxu0 %v167
  %614 = vmatprep.subr.mxu0 0.0
  %615 = vmatpush1.msra.mxu0 %v168
  %616 = vmatprep.subr.mxu0 0.0
  %617 = vmatpush1.msra.mxu0 %v169
  %618 = vmatprep.subr.mxu0 0.0
  %619 = vmatpush1.msra.mxu0 %v170
  %620 = vmatprep.subr.mxu0 0.0
  %621 = vmatpush1.msra.mxu0 %v171
  %622 = vmatprep.subr.mxu0 0.0
  %623 = vmatpush1.msra.mxu0 0.0
  %624 = vmatprep.subr.mxu0 0.0
  %625 = vmatpush1.msra.mxu0 0.0
  %626 = vmatprep.subr.mxu0 0.0
  %627 = vmatpush1.msra.mxu0 0.0
  %628 = vmatprep.subr.mxu0 0.0
  %629 = vmatpush1.msra.mxu0 0.0
  %630 = vmatprep.subr.mxu0 0.0
  %631 = vmatpush1.msra.mxu0 0.0
  %632 = vmatprep.subr.mxu0 0.0
  %633 = vmatpush1.msra.mxu0 0.0
  %634 = vmatprep.subr.mxu0 0.0
  %635 = vmatpush1.msra.mxu0 0.0
  %636 = vmatprep.subr.mxu0 0.0
  %637 = vmatpush1.msra.mxu0 0.0
  %638 = vmatprep.subr.mxu0 0.0
  %639 = vmatpush1.msra.mxu0 0.0
  %640 = vmatprep.subr.mxu0 0.0
  %641 = vmatpush1.msra.mxu0 0.0
  %642 = vmatprep.subr.mxu0 0.0
  %643 = vmatpush1.msra.mxu0 0.0
  %644 = vmatprep.subr.mxu0 0.0
  %645 = vmatpush1.msra.mxu0 0.0
  %646 = vmatprep.subr.mxu0 0.0
  %647 = vmatpush1.msra.mxu0 0.0
  %648 = vmatprep.subr.mxu0 0.0
  %649 = vmatpush1.msra.mxu0 0.0
  %650 = vmatprep.subr.mxu0 0.0
  %651 = vmatpush1.msra.mxu0 0.0
  %652 = vmatprep.subr.mxu0 0.0
  %653 = vmatpush1.msra.mxu0 0.0
  %654 = vmatprep.mubr.f32.mxu0 0.0
  %655 = vmatmul.mubr.f32.gmra.mrb[0].mxu0 %v552
  %v656 = vpop.f32.mrb[0].mxu0
  %v657 = vadd.f32 0.0, %v656
  %v658 = vpop.f32.mrb[0].mxu0
  %659 = vmatprep.mubr.f32.mxu0 0.0
  %660 = vmatmul.mubr.f32.gmra.mrb[0].mxu0 %v557
  %v661 = vpop.f32.mrb[0].mxu0
  %v662 = vadd.f32 0.0, %v661
  %v663 = vpop.f32.mrb[0].mxu0
  %664 = vmatprep.mubr.f32.mxu0 0.0
  %665 = vmatmul.mubr.f32.gmra.mrb[0].mxu0 %v562
  %v666 = vpop.f32.mrb[0].mxu0
  %v667 = vadd.f32 0.0, %v666
  %v668 = vpop.f32.mrb[0].mxu0
  %669 = vmatprep.mubr.f32.mxu0 0.0
  %670 = vmatmul.mubr.f32.gmra.mrb[0].mxu0 %v567
  %v671 = vpop.f32.mrb[0].mxu0
  %v672 = vadd.f32 0.0, %v671
  %v673 = vpop.f32.mrb[0].mxu0
  %674 = vmatprep.mubr.f32.mxu0 0.0
  %675 = vmatmul.mubr.f32.gmra.mrb[0].mxu0 %v572
  %v676 = vpop.f32.mrb[0].mxu0
  %v677 = vadd.f32 0.0, %v676
  %v678 = vpop.f32.mrb[0].mxu0
  %679 = vmatprep.mubr.f32.mxu0 0.0
  %680 = vmatmul.mubr.f32.gmra.mrb[0].mxu0 %v577
  %v681 = vpop.f32.mrb[0].mxu0
  %v682 = vadd.f32 0.0, %v681
  %v683 = vpop.f32.mrb[0].mxu0
  %684 = vmatprep.mubr.f32.mxu0 0.0
  %685 = vmatmul.mubr.f32.gmra.mrb[0].mxu0 %v582
  %v686 = vpop.f32.mrb[0].mxu0
  %v687 = vadd.f32 0.0, %v686
  %v688 = vpop.f32.mrb[0].mxu0
  %689 = vmatprep.mubr.f32.mxu0 0.0
  %690 = vmatmul.mubr.f32.gmra.mrb[0].mxu0 %v587
  %v691 = vpop.f32.mrb[0].mxu0
  %v692 = vadd.f32 0.0, %v691
  %v693 = vpop.f32.mrb[0].mxu0
  %694 = vdwg.mxu0
  %v695 = vsub.f32 %v552, %v657
  %v696 = vsub.f32 %v557, %v662
  %v697 = vsub.f32 %v562, %v667
  %v698 = vsub.f32 %v567, %v672
  %v699 = vsub.f32 %v572, %v677
  %v700 = vsub.f32 %v577, %v682
  %v701 = vsub.f32 %v582, %v687
  %v702 = vsub.f32 %v587, %v692
  %v703 = vmul.f32 %v695, %v695
  %v704 = vmul.f32 %v696, %v696
  %v705 = vmul.f32 %v697, %v697
  %v706 = vmul.f32 %v698, %v698
  %v707 = vmul.f32 %v699, %v699
  %v708 = vmul.f32 %v700, %v700
  %v709 = vmul.f32 %v701, %v701
  %v710 = vmul.f32 %v702, %v702
  %711 = vmatprep.subr.mxu0 0.0
  %712 = vmatpush1.msra.mxu0 %v156
  %713 = vmatprep.subr.mxu0 0.0
  %714 = vmatpush1.msra.mxu0 %v157
  %715 = vmatprep.subr.mxu0 0.0
  %716 = vmatpush1.msra.mxu0 %v158
  %717 = vmatprep.subr.mxu0 0.0
  %718 = vmatpush1.msra.mxu0 %v159
  %719 = vmatprep.subr.mxu0 0.0
  %720 = vmatpush1.msra.mxu0 %v160
  %721 = vmatprep.subr.mxu0 0.0
  %722 = vmatpush1.msra.mxu0 %v161
  %723 = vmatprep.subr.mxu0 0.0
  %724 = vmatpush1.msra.mxu0 %v162
  %725 = vmatprep.subr.mxu0 0.0
  %726 = vmatpush1.msra.mxu0 %v163
  %727 = vmatprep.subr.mxu0 0.0
  %728 = vmatpush1.msra.mxu0 %v164
  %729 = vmatprep.subr.mxu0 0.0
  %730 = vmatpush1.msra.mxu0 %v165
  %731 = vmatprep.subr.mxu0 0.0
  %732 = vmatpush1.msra.mxu0 %v166
  %733 = vmatprep.subr.mxu0 0.0
  %734 = vmatpush1.msra.mxu0 %v167
  %735 = vmatprep.subr.mxu0 0.0
  %736 = vmatpush1.msra.mxu0 %v168
  %737 = vmatprep.subr.mxu0 0.0
  %738 = vmatpush1.msra.mxu0 %v169
  %739 = vmatprep.subr.mxu0 0.0
  %740 = vmatpush1.msra.mxu0 %v170
  %741 = vmatprep.subr.mxu0 0.0
  %742 = vmatpush1.msra.mxu0 %v171
  %743 = vmatprep.subr.mxu0 0.0
  %744 = vmatpush1.msra.mxu0 0.0
  %745 = vmatprep.subr.mxu0 0.0
  %746 = vmatpush1.msra.mxu0 0.0
  %747 = vmatprep.subr.mxu0 0.0
  %748 = vmatpush1.msra.mxu0 0.0
  %749 = vmatprep.subr.mxu0 0.0
  %750 = vmatpush1.msra.mxu0 0.0
  %751 = vmatprep.subr.mxu0 0.0
  %752 = vmatpush1.msra.mxu0 0.0
  %753 = vmatprep.subr.mxu0 0.0
  %754 = vmatpush1.msra.mxu0 0.0
  %755 = vmatprep.subr.mxu0 0.0
  %756 = vmatpush1.msra.mxu0 0.0
  %757 = vmatprep.subr.mxu0 0.0
  %758 = vmatpush1.msra.mxu0 0.0
  %759 = vmatprep.subr.mxu0 0.0
  %760 = vmatpush1.msra.mxu0 0.0
  %761 = vmatprep.subr.mxu0 0.0
  %762 = vmatpush1.msra.mxu0 0.0
  %763 = vmatprep.subr.mxu0 0.0
  %764 = vmatpush1.msra.mxu0 0.0
  %765 = vmatprep.subr.mxu0 0.0
  %766 = vmatpush1.msra.mxu0 0.0
  %767 = vmatprep.subr.mxu0 0.0
  %768 = vmatpush1.msra.mxu0 0.0
  %769 = vmatprep.subr.mxu0 0.0
  %770 = vmatpush1.msra.mxu0 0.0
  %771 = vmatprep.subr.mxu0 0.0
  %772 = vmatpush1.msra.mxu0 0.0
  %773 = vmatprep.subr.mxu0 0.0
  %774 = vmatpush1.msra.mxu0 0.0
  %775 = vmatprep.mubr.f32.mxu0 0.0
  %776 = vmatmul.mubr.f32.gmra.mrb[0].mxu0 %v703
  %v777 = vpop.f32.mrb[0].mxu0
  %v778 = vadd.f32 1e-05, %v777
  %v779 = vpop.f32.mrb[0].mxu0
  %780 = vmatprep.mubr.f32.mxu0 0.0
  %781 = vmatmul.mubr.f32.gmra.mrb[0].mxu0 %v704
  %v782 = vpop.f32.mrb[0].mxu0
  %v783 = vadd.f32 1e-05, %v782
  %v784 = vpop.f32.mrb[0].mxu0
  %785 = vmatprep.mubr.f32.mxu0 0.0
  %786 = vmatmul.mubr.f32.gmra.mrb[0].mxu0 %v705
  %v787 = vpop.f32.mrb[0].mxu0
  %v788 = vadd.f32 1e-05, %v787
  %v789 = vpop.f32.mrb[0].mxu0
  %790 = vmatprep.mubr.f32.mxu0 0.0
  %791 = vmatmul.mubr.f32.gmra.mrb[0].mxu0 %v706
  %v792 = vpop.f32.mrb[0].mxu0
  %v793 = vadd.f32 1e-05, %v792
  %v794 = vpop.f32.mrb[0].mxu0
  %795 = vmatprep.mubr.f32.mxu0 0.0
  %796 = vmatmul.mubr.f32.gmra.mrb[0].mxu0 %v707
  %v797 = vpop.f32.mrb[0].mxu0
  %v798 = vadd.f32 1e-05, %v797
  %v799 = vpop.f32.mrb[0].mxu0
  %800 = vmatprep.mubr.f32.mxu0 0.0
  %801 = vmatmul.mubr.f32.gmra.mrb[0].mxu0 %v708
  %v802 = vpop.f32.mrb[0].mxu0
  %v803 = vadd.f32 1e-05, %v802
  %v804 = vpop.f32.mrb[0].mxu0
  %805 = vmatprep.mubr.f32.mxu0 0.0
  %806 = vmatmul.mubr.f32.gmra.mrb[0].mxu0 %v709
  %v807 = vpop.f32.mrb[0].mxu0
  %v808 = vadd.f32 1e-05, %v807
  %v809 = vpop.f32.mrb[0].mxu0
  %810 = vmatprep.mubr.f32.mxu0 0.0
  %811 = vmatmul.mubr.f32.gmra.mrb[0].mxu0 %v710
  %v812 = vpop.f32.mrb[0].mxu0
  %v813 = vadd.f32 1e-05, %v812
  %v814 = vpop.f32.mrb[0].mxu0
  %815 = vdwg.mxu0
  %v816 = vrsqrt.pop %v778
  %v817 = vrsqrt.pop %v783
  %v818 = vrsqrt.pop %v788
  %v819 = vrsqrt.pop %v793
  %v820 = vrsqrt.pop %v798
  %v821 = vrsqrt.pop %v803
  %v822 = vrsqrt.pop %v808
  %v823 = vrsqrt.pop %v813
  %v824 = vmul.f32 %v695, %v816
  %v825 = vmul.f32 %v696, %v817
  %v826 = vmul.f32 %v697, %v818
  %v827 = vmul.f32 %v698, %v819
  %v828 = vmul.f32 %v699, %v820
  %v829 = vmul.f32 %v700, %v821
  %v830 = vmul.f32 %v701, %v822
  %v831 = vmul.f32 %v702, %v823
  %v832 = vld [vmem:[%s2 + $0x4] sm:$0x1]
  %v833 = vlaneseq
  %v834 = vshrl.u32 %v833, 7
  %v835 = vsub.s32 0, %v834
  %v836 = vrot.slane %v832, %v835
  %v837 = vmul.f32 %v824, %v836
  %v838 = vmul.f32 %v825, %v836
  %v839 = vmul.f32 %v826, %v836
  %v840 = vmul.f32 %v827, %v836
  %v841 = vmul.f32 %v828, %v836
  %v842 = vmul.f32 %v829, %v836
  %v843 = vmul.f32 %v830, %v836
  %v844 = vmul.f32 %v831, %v836
  %v845 = vld [vmem:[%s2 + $0x5] sm:$0x1]
  %v846 = vlaneseq
  %v847 = vshrl.u32 %v846, 7
  %v848 = vsub.s32 0, %v847
  %v849 = vrot.slane %v845, %v848
  %v850 = vadd.f32 %v837, %v849
  %v851 = vadd.f32 %v838, %v849
  %v852 = vadd.f32 %v839, %v849
  %v853 = vadd.f32 %v840, %v849
  %v854 = vadd.f32 %v841, %v849
  %v855 = vadd.f32 %v842, %v849
  %v856 = vadd.f32 %v843, %v849
  %v857 = vadd.f32 %v844, %v849
  %v858 = vadd.f32 %v14, %v850
  %v859 = vadd.f32 %v16, %v851
  %v860 = vadd.f32 %v18, %v852
  %v861 = vadd.f32 %v20, %v853
  %v862 = vadd.f32 %v22, %v854
  %v863 = vadd.f32 %v24, %v855
  %v864 = vadd.f32 %v26, %v856
  %v865 = vadd.f32 %v28, %v857
  %v866 = vld [vmem:[%s1 + $0x100] sm:$0xff]
  %v867 = vld [vmem:[%s1 + $0x108] sm:$0xff]
  %v868 = vld [vmem:[%s1 + $0x110] sm:$0xff]
  %v869 = vld [vmem:[%s1 + $0x118] sm:$0xff]
  %v870 = vld [vmem:[%s1 + $0x120] sm:$0xff]
  %v871 = vld [vmem:[%s1 + $0x128] sm:$0xff]
  %v872 = vld [vmem:[%s1 + $0x130] sm:$0xff]
  %v873 = vld [vmem:[%s1 + $0x138] sm:$0xff]
  %v874 = vld [vmem:[%s1 + $0x140] sm:$0xff]
  %v875 = vld [vmem:[%s1 + $0x148] sm:$0xff]
  %v876 = vld [vmem:[%s1 + $0x150] sm:$0xff]
  %v877 = vld [vmem:[%s1 + $0x158] sm:$0xff]
  %v878 = vld [vmem:[%s1 + $0x160] sm:$0xff]
  %v879 = vld [vmem:[%s1 + $0x168] sm:$0xff]
  %v880 = vld [vmem:[%s1 + $0x170] sm:$0xff]
  %v881 = vld [vmem:[%s1 + $0x178] sm:$0xff]
  %v882 = vld [vmem:[%s2 + $0x6] sm:$0x1]
  %v883 = vlaneseq
  %v884 = vshrl.u32 %v883, 7
  %v885 = vsub.s32 0, %v884
  %v886 = vrot.slane %v882, %v885
  %887 = vmatprep.subr.mxu0 0.0
  %888 = vmatpush1.msra.mxu0 %v866
  %889 = vmatprep.subr.mxu0 0.0
  %890 = vmatpush1.msra.mxu0 %v867
  %891 = vmatprep.subr.mxu0 0.0
  %892 = vmatpush1.msra.mxu0 %v868
  %893 = vmatprep.subr.mxu0 0.0
  %894 = vmatpush1.msra.mxu0 %v869
  %895 = vmatprep.subr.mxu0 0.0
  %896 = vmatpush1.msra.mxu0 %v870
  %897 = vmatprep.subr.mxu0 0.0
  %898 = vmatpush1.msra.mxu0 %v871
  %899 = vmatprep.subr.mxu0 0.0
  %900 = vmatpush1.msra.mxu0 %v872
  %901 = vmatprep.subr.mxu0 0.0
  %902 = vmatpush1.msra.mxu0 %v873
  %903 = vmatprep.subr.mxu0 0.0
  %904 = vmatpush1.msra.mxu0 %v874
  %905 = vmatprep.subr.mxu0 0.0
  %906 = vmatpush1.msra.mxu0 %v875
  %907 = vmatprep.subr.mxu0 0.0
  %908 = vmatpush1.msra.mxu0 %v876
  %909 = vmatprep.subr.mxu0 0.0
  %910 = vmatpush1.msra.mxu0 %v877
  %911 = vmatprep.subr.mxu0 0.0
  %912 = vmatpush1.msra.mxu0 %v878
  %913 = vmatprep.subr.mxu0 0.0
  %914 = vmatpush1.msra.mxu0 %v879
  %915 = vmatprep.subr.mxu0 0.0
  %916 = vmatpush1.msra.mxu0 %v880
  %917 = vmatprep.subr.mxu0 0.0
  %918 = vmatpush1.msra.mxu0 %v881
  %919 = vmatprep.subr.mxu0 0.0
  %920 = vmatpush1.msra.mxu0 0.0
  %921 = vmatprep.subr.mxu0 0.0
  %922 = vmatpush1.msra.mxu0 0.0
  %923 = vmatprep.subr.mxu0 0.0
  %924 = vmatpush1.msra.mxu0 0.0
  %925 = vmatprep.subr.mxu0 0.0
  %926 = vmatpush1.msra.mxu0 0.0
  %927 = vmatprep.subr.mxu0 0.0
  %928 = vmatpush1.msra.mxu0 0.0
  %929 = vmatprep.subr.mxu0 0.0
  %930 = vmatpush1.msra.mxu0 0.0
  %931 = vmatprep.subr.mxu0 0.0
  %932 = vmatpush1.msra.mxu0 0.0
  %933 = vmatprep.subr.mxu0 0.0
  %934 = vmatpush1.msra.mxu0 0.0
  %935 = vmatprep.subr.mxu0 0.0
  %936 = vmatpush1.msra.mxu0 0.0
  %937 = vmatprep.subr.mxu0 0.0
  %938 = vmatpush1.msra.mxu0 0.0
  %939 = vmatprep.subr.mxu0 0.0
  %940 = vmatpush1.msra.mxu0 0.0
  %941 = vmatprep.subr.mxu0 0.0
  %942 = vmatpush1.msra.mxu0 0.0
  %943 = vmatprep.subr.mxu0 0.0
  %944 = vmatpush1.msra.mxu0 0.0
  %945 = vmatprep.subr.mxu0 0.0
  %946 = vmatpush1.msra.mxu0 0.0
  %947 = vmatprep.subr.mxu0 0.0
  %948 = vmatpush1.msra.mxu0 0.0
  %949 = vmatprep.subr.mxu0 0.0
  %950 = vmatpush1.msra.mxu0 0.0
  %951 = vmatprep.mubr.f32.mxu0 0.0
  %952 = vmatmul.mubr.f32.gmra.mrb[0].mxu0 %v858
  %v953 = vpop.f32.mrb[0].mxu0
  %v954 = vadd.f32 %v886, %v953
  %v955 = vpop.f32.mrb[0].mxu0
  %956 = vmatprep.mubr.f32.mxu0 0.0
  %957 = vmatmul.mubr.f32.gmra.mrb[0].mxu0 %v859
  %v958 = vpop.f32.mrb[0].mxu0
  %v959 = vadd.f32 %v886, %v958
  %v960 = vpop.f32.mrb[0].mxu0
  %961 = vmatprep.mubr.f32.mxu0 0.0
  %962 = vmatmul.mubr.f32.gmra.mrb[0].mxu0 %v860
  %v963 = vpop.f32.mrb[0].mxu0
  %v964 = vadd.f32 %v886, %v963
  %v965 = vpop.f32.mrb[0].mxu0
  %966 = vmatprep.mubr.f32.mxu0 0.0
  %967 = vmatmul.mubr.f32.gmra.mrb[0].mxu0 %v861
  %v968 = vpop.f32.mrb[0].mxu0
  %v969 = vadd.f32 %v886, %v968
  %v970 = vpop.f32.mrb[0].mxu0
  %971 = vmatprep.mubr.f32.mxu0 0.0
  %972 = vmatmul.mubr.f32.gmra.mrb[0].mxu0 %v862
  %v973 = vpop.f32.mrb[0].mxu0
  %v974 = vadd.f32 %v886, %v973
  %v975 = vpop.f32.mrb[0].mxu0
  %976 = vmatprep.mubr.f32.mxu0 0.0
  %977 = vmatmul.mubr.f32.gmra.mrb[0].mxu0 %v863
  %v978 = vpop.f32.mrb[0].mxu0
  %v979 = vadd.f32 %v886, %v978
  %v980 = vpop.f32.mrb[0].mxu0
  %981 = vmatprep.mubr.f32.mxu0 0.0
  %982 = vmatmul.mubr.f32.gmra.mrb[0].mxu0 %v864
  %v983 = vpop.f32.mrb[0].mxu0
  %v984 = vadd.f32 %v886, %v983
  %v985 = vpop.f32.mrb[0].mxu0
  %986 = vmatprep.mubr.f32.mxu0 0.0
  %987 = vmatmul.mubr.f32.gmra.mrb[0].mxu0 %v865
  %v988 = vpop.f32.mrb[0].mxu0
  %v989 = vadd.f32 %v886, %v988
  %v990 = vpop.f32.mrb[0].mxu0
  %991 = vdwg.mxu0
  %vm992 = vcmp.gt.f32.partialorder %v954, 0.0
  %vm993 = vcmp.gt.f32.partialorder %v959, 0.0
  %vm994 = vcmp.gt.f32.partialorder %v964, 0.0
  %vm995 = vcmp.gt.f32.partialorder %v969, 0.0
  %vm996 = vcmp.gt.f32.partialorder %v974, 0.0
  %vm997 = vcmp.gt.f32.partialorder %v979, 0.0
  %vm998 = vcmp.gt.f32.partialorder %v984, 0.0
  %vm999 = vcmp.gt.f32.partialorder %v989, 0.0
  %v1000 = vmul.f32 %v954, 0.2
  %v1001 = vmul.f32 %v959, 0.2
  %v1002 = vmul.f32 %v964, 0.2
  %v1003 = vmul.f32 %v969, 0.2
  %v1004 = vmul.f32 %v974, 0.2
  %v1005 = vmul.f32 %v979, 0.2
  %v1006 = vmul.f32 %v984, 0.2
  %v1007 = vmul.f32 %v989, 0.2
  %v1008 = vsel %vm992, %v954, %v1000
  %v1009 = vsel %vm993, %v959, %v1001
  %v1010 = vsel %vm994, %v964, %v1002
  %v1011 = vsel %vm995, %v969, %v1003
  %v1012 = vsel %vm996, %v974, %v1004
  %v1013 = vsel %vm997, %v979, %v1005
  %v1014 = vsel %vm998, %v984, %v1006
  %v1015 = vsel %vm999, %v989, %v1007
  %v1016 = vld [vmem:[%s1 + $0x180] sm:$0xff]
  %v1017 = vld [vmem:[%s1 + $0x188] sm:$0xff]
  %v1018 = vld [vmem:[%s1 + $0x190] sm:$0xff]
  %v1019 = vld [vmem:[%s1 + $0x198] sm:$0xff]
  %v1020 = vld [vmem:[%s1 + $0x1a0] sm:$0xff]
  %v1021 = vld [vmem:[%s1 + $0x1a8] sm:$0xff]
  %v1022 = vld [vmem:[%s1 + $0x1b0] sm:$0xff]
  %v1023 = vld [vmem:[%s1 + $0x1b8] sm:$0xff]
  %v1024 = vld [vmem:[%s1 + $0x1c0] sm:$0xff]
  %v1025 = vld [vmem:[%s1 + $0x1c8] sm:$0xff]
  %v1026 = vld [vmem:[%s1 + $0x1d0] sm:$0xff]
  %v1027 = vld [vmem:[%s1 + $0x1d8] sm:$0xff]
  %v1028 = vld [vmem:[%s1 + $0x1e0] sm:$0xff]
  %v1029 = vld [vmem:[%s1 + $0x1e8] sm:$0xff]
  %v1030 = vld [vmem:[%s1 + $0x1f0] sm:$0xff]
  %v1031 = vld [vmem:[%s1 + $0x1f8] sm:$0xff]
  %v1032 = vld [vmem:[%s2 + $0x7] sm:$0x1]
  %v1033 = vlaneseq
  %v1034 = vshrl.u32 %v1033, 7
  %v1035 = vsub.s32 0, %v1034
  %v1036 = vrot.slane %v1032, %v1035
  %1037 = vmatprep.subr.mxu0 0.0
  %1038 = vmatpush1.msra.mxu0 %v1016
  %1039 = vmatprep.subr.mxu0 0.0
  %1040 = vmatpush1.msra.mxu0 %v1017
  %1041 = vmatprep.subr.mxu0 0.0
  %1042 = vmatpush1.msra.mxu0 %v1018
  %1043 = vmatprep.subr.mxu0 0.0
  %1044 = vmatpush1.msra.mxu0 %v1019
  %1045 = vmatprep.subr.mxu0 0.0
  %1046 = vmatpush1.msra.mxu0 %v1020
  %1047 = vmatprep.subr.mxu0 0.0
  %1048 = vmatpush1.msra.mxu0 %v1021
  %1049 = vmatprep.subr.mxu0 0.0
  %1050 = vmatpush1.msra.mxu0 %v1022
  %1051 = vmatprep.subr.mxu0 0.0
  %1052 = vmatpush1.msra.mxu0 %v1023
  %1053 = vmatprep.subr.mxu0 0.0
  %1054 = vmatpush1.msra.mxu0 %v1024
  %1055 = vmatprep.subr.mxu0 0.0
  %1056 = vmatpush1.msra.mxu0 %v1025
  %1057 = vmatprep.subr.mxu0 0.0
  %1058 = vmatpush1.msra.mxu0 %v1026
  %1059 = vmatprep.subr.mxu0 0.0
  %1060 = vmatpush1.msra.mxu0 %v1027
  %1061 = vmatprep.subr.mxu0 0.0
  %1062 = vmatpush1.msra.mxu0 %v1028
  %1063 = vmatprep.subr.mxu0 0.0
  %1064 = vmatpush1.msra.mxu0 %v1029
  %1065 = vmatprep.subr.mxu0 0.0
  %1066 = vmatpush1.msra.mxu0 %v1030
  %1067 = vmatprep.subr.mxu0 0.0
  %1068 = vmatpush1.msra.mxu0 %v1031
  %1069 = vmatprep.subr.mxu0 0.0
  %1070 = vmatpush1.msra.mxu0 0.0
  %1071 = vmatprep.subr.mxu0 0.0
  %1072 = vmatpush1.msra.mxu0 0.0
  %1073 = vmatprep.subr.mxu0 0.0
  %1074 = vmatpush1.msra.mxu0 0.0
  %1075 = vmatprep.subr.mxu0 0.0
  %1076 = vmatpush1.msra.mxu0 0.0
  %1077 = vmatprep.subr.mxu0 0.0
  %1078 = vmatpush1.msra.mxu0 0.0
  %1079 = vmatprep.subr.mxu0 0.0
  %1080 = vmatpush1.msra.mxu0 0.0
  %1081 = vmatprep.subr.mxu0 0.0
  %1082 = vmatpush1.msra.mxu0 0.0
  %1083 = vmatprep.subr.mxu0 0.0
  %1084 = vmatpush1.msra.mxu0 0.0
  %1085 = vmatprep.subr.mxu0 0.0
  %1086 = vmatpush1.msra.mxu0 0.0
  %1087 = vmatprep.subr.mxu0 0.0
  %1088 = vmatpush1.msra.mxu0 0.0
  %1089 = vmatprep.subr.mxu0 0.0
  %1090 = vmatpush1.msra.mxu0 0.0
  %1091 = vmatprep.subr.mxu0 0.0
  %1092 = vmatpush1.msra.mxu0 0.0
  %1093 = vmatprep.subr.mxu0 0.0
  %1094 = vmatpush1.msra.mxu0 0.0
  %1095 = vmatprep.subr.mxu0 0.0
  %1096 = vmatpush1.msra.mxu0 0.0
  %1097 = vmatprep.subr.mxu0 0.0
  %1098 = vmatpush1.msra.mxu0 0.0
  %1099 = vmatprep.subr.mxu0 0.0
  %1100 = vmatpush1.msra.mxu0 0.0
  %1101 = vmatprep.mubr.f32.mxu0 0.0
  %1102 = vmatmul.mubr.f32.gmra.mrb[0].mxu0 %v1008
  %v1103 = vpop.f32.mrb[0].mxu0
  %v1104 = vadd.f32 %v1036, %v1103
  %v1105 = vpop.f32.mrb[0].mxu0
  %1106 = vmatprep.mubr.f32.mxu0 0.0
  %1107 = vmatmul.mubr.f32.gmra.mrb[0].mxu0 %v1009
  %v1108 = vpop.f32.mrb[0].mxu0
  %v1109 = vadd.f32 %v1036, %v1108
  %v1110 = vpop.f32.mrb[0].mxu0
  %1111 = vmatprep.mubr.f32.mxu0 0.0
  %1112 = vmatmul.mubr.f32.gmra.mrb[0].mxu0 %v1010
  %v1113 = vpop.f32.mrb[0].mxu0
  %v1114 = vadd.f32 %v1036, %v1113
  %v1115 = vpop.f32.mrb[0].mxu0
  %1116 = vmatprep.mubr.f32.mxu0 0.0
  %1117 = vmatmul.mubr.f32.gmra.mrb[0].mxu0 %v1011
  %v1118 = vpop.f32.mrb[0].mxu0
  %v1119 = vadd.f32 %v1036, %v1118
  %v1120 = vpop.f32.mrb[0].mxu0
  %1121 = vmatprep.mubr.f32.mxu0 0.0
  %1122 = vmatmul.mubr.f32.gmra.mrb[0].mxu0 %v1012
  %v1123 = vpop.f32.mrb[0].mxu0
  %v1124 = vadd.f32 %v1036, %v1123
  %v1125 = vpop.f32.mrb[0].mxu0
  %1126 = vmatprep.mubr.f32.mxu0 0.0
  %1127 = vmatmul.mubr.f32.gmra.mrb[0].mxu0 %v1013
  %v1128 = vpop.f32.mrb[0].mxu0
  %v1129 = vadd.f32 %v1036, %v1128
  %v1130 = vpop.f32.mrb[0].mxu0
  %1131 = vmatprep.mubr.f32.mxu0 0.0
  %1132 = vmatmul.mubr.f32.gmra.mrb[0].mxu0 %v1014
  %v1133 = vpop.f32.mrb[0].mxu0
  %v1134 = vadd.f32 %v1036, %v1133
  %v1135 = vpop.f32.mrb[0].mxu0
  %1136 = vmatprep.mubr.f32.mxu0 0.0
  %1137 = vmatmul.mubr.f32.gmra.mrb[0].mxu0 %v1015
  %v1138 = vpop.f32.mrb[0].mxu0
  %v1139 = vadd.f32 %v1036, %v1138
  %v1140 = vpop.f32.mrb[0].mxu0
  %1141 = vdwg.mxu0
  %v1142 = vmul.f32 %v1104, 0.5
  %v1143 = vmul.f32 %v1109, 0.5
  %v1144 = vmul.f32 %v1114, 0.5
  %v1145 = vmul.f32 %v1119, 0.5
  %v1146 = vmul.f32 %v1124, 0.5
  %v1147 = vmul.f32 %v1129, 0.5
  %v1148 = vmul.f32 %v1134, 0.5
  %v1149 = vmul.f32 %v1139, 0.5
  %v1150 = vtanh.pop %v1142
  %v1151 = vtanh.pop %v1143
  %v1152 = vtanh.pop %v1144
  %v1153 = vtanh.pop %v1145
  %v1154 = vtanh.pop %v1146
  %v1155 = vtanh.pop %v1147
  %v1156 = vtanh.pop %v1148
  %v1157 = vtanh.pop %v1149
  %v1158 = vadd.f32 %v1150, 1.0
  %v1159 = vadd.f32 %v1151, 1.0
  %v1160 = vadd.f32 %v1152, 1.0
  %v1161 = vadd.f32 %v1153, 1.0
  %v1162 = vadd.f32 %v1154, 1.0
  %v1163 = vadd.f32 %v1155, 1.0
  %v1164 = vadd.f32 %v1156, 1.0
  %v1165 = vadd.f32 %v1157, 1.0
  %v1166 = vmul.f32 %v1158, 0.5
  %v1167 = vmul.f32 %v1159, 0.5
  %v1168 = vmul.f32 %v1160, 0.5
  %v1169 = vmul.f32 %v1161, 0.5
  %v1170 = vmul.f32 %v1162, 0.5
  %v1171 = vmul.f32 %v1163, 0.5
  %v1172 = vmul.f32 %v1164, 0.5
  %v1173 = vmul.f32 %v1165, 0.5
  %v1174 = vmul.f32 %v858, %v1166
  %v1175 = vmul.f32 %v859, %v1167
  %v1176 = vmul.f32 %v860, %v1168
  %v1177 = vmul.f32 %v861, %v1169
  %v1178 = vmul.f32 %v862, %v1170
  %v1179 = vmul.f32 %v863, %v1171
  %v1180 = vmul.f32 %v864, %v1172
  %v1181 = vmul.f32 %v865, %v1173
  %v1182 = vld [vmem:[%s1 + $0x200] sm:$0xff]
  %v1183 = vld [vmem:[%s1 + $0x208] sm:$0xff]
  %v1184 = vld [vmem:[%s1 + $0x210] sm:$0xff]
  %v1185 = vld [vmem:[%s1 + $0x218] sm:$0xff]
  %v1186 = vld [vmem:[%s1 + $0x220] sm:$0xff]
  %v1187 = vld [vmem:[%s1 + $0x228] sm:$0xff]
  %v1188 = vld [vmem:[%s1 + $0x230] sm:$0xff]
  %v1189 = vld [vmem:[%s1 + $0x238] sm:$0xff]
  %v1190 = vld [vmem:[%s1 + $0x240] sm:$0xff]
  %v1191 = vld [vmem:[%s1 + $0x248] sm:$0xff]
  %v1192 = vld [vmem:[%s1 + $0x250] sm:$0xff]
  %v1193 = vld [vmem:[%s1 + $0x258] sm:$0xff]
  %v1194 = vld [vmem:[%s1 + $0x260] sm:$0xff]
  %v1195 = vld [vmem:[%s1 + $0x268] sm:$0xff]
  %v1196 = vld [vmem:[%s1 + $0x270] sm:$0xff]
  %v1197 = vld [vmem:[%s1 + $0x278] sm:$0xff]
  %v1198 = vld [vmem:[%s2 + $0x8] sm:$0x1]
  %v1199 = vlaneseq
  %v1200 = vshrl.u32 %v1199, 7
  %v1201 = vsub.s32 0, %v1200
  %v1202 = vrot.slane %v1198, %v1201
  %1203 = vmatprep.subr.mxu0 0.0
  %1204 = vmatpush1.msra.mxu0 %v1182
  %1205 = vmatprep.subr.mxu0 0.0
  %1206 = vmatpush1.msra.mxu0 %v1183
  %1207 = vmatprep.subr.mxu0 0.0
  %1208 = vmatpush1.msra.mxu0 %v1184
  %1209 = vmatprep.subr.mxu0 0.0
  %1210 = vmatpush1.msra.mxu0 %v1185
  %1211 = vmatprep.subr.mxu0 0.0
  %1212 = vmatpush1.msra.mxu0 %v1186
  %1213 = vmatprep.subr.mxu0 0.0
  %1214 = vmatpush1.msra.mxu0 %v1187
  %1215 = vmatprep.subr.mxu0 0.0
  %1216 = vmatpush1.msra.mxu0 %v1188
  %1217 = vmatprep.subr.mxu0 0.0
  %1218 = vmatpush1.msra.mxu0 %v1189
  %1219 = vmatprep.subr.mxu0 0.0
  %1220 = vmatpush1.msra.mxu0 %v1190
  %1221 = vmatprep.subr.mxu0 0.0
  %1222 = vmatpush1.msra.mxu0 %v1191
  %1223 = vmatprep.subr.mxu0 0.0
  %1224 = vmatpush1.msra.mxu0 %v1192
  %1225 = vmatprep.subr.mxu0 0.0
  %1226 = vmatpush1.msra.mxu0 %v1193
  %1227 = vmatprep.subr.mxu0 0.0
  %1228 = vmatpush1.msra.mxu0 %v1194
  %1229 = vmatprep.subr.mxu0 0.0
  %1230 = vmatpush1.msra.mxu0 %v1195
  %1231 = vmatprep.subr.mxu0 0.0
  %1232 = vmatpush1.msra.mxu0 %v1196
  %1233 = vmatprep.subr.mxu0 0.0
  %1234 = vmatpush1.msra.mxu0 %v1197
  %1235 = vmatprep.subr.mxu0 0.0
  %1236 = vmatpush1.msra.mxu0 0.0
  %1237 = vmatprep.subr.mxu0 0.0
  %1238 = vmatpush1.msra.mxu0 0.0
  %1239 = vmatprep.subr.mxu0 0.0
  %1240 = vmatpush1.msra.mxu0 0.0
  %1241 = vmatprep.subr.mxu0 0.0
  %1242 = vmatpush1.msra.mxu0 0.0
  %1243 = vmatprep.subr.mxu0 0.0
  %1244 = vmatpush1.msra.mxu0 0.0
  %1245 = vmatprep.subr.mxu0 0.0
  %1246 = vmatpush1.msra.mxu0 0.0
  %1247 = vmatprep.subr.mxu0 0.0
  %1248 = vmatpush1.msra.mxu0 0.0
  %1249 = vmatprep.subr.mxu0 0.0
  %1250 = vmatpush1.msra.mxu0 0.0
  %1251 = vmatprep.subr.mxu0 0.0
  %1252 = vmatpush1.msra.mxu0 0.0
  %1253 = vmatprep.subr.mxu0 0.0
  %1254 = vmatpush1.msra.mxu0 0.0
  %1255 = vmatprep.subr.mxu0 0.0
  %1256 = vmatpush1.msra.mxu0 0.0
  %1257 = vmatprep.subr.mxu0 0.0
  %1258 = vmatpush1.msra.mxu0 0.0
  %1259 = vmatprep.subr.mxu0 0.0
  %1260 = vmatpush1.msra.mxu0 0.0
  %1261 = vmatprep.subr.mxu0 0.0
  %1262 = vmatpush1.msra.mxu0 0.0
  %1263 = vmatprep.subr.mxu0 0.0
  %1264 = vmatpush1.msra.mxu0 0.0
  %1265 = vmatprep.subr.mxu0 0.0
  %1266 = vmatpush1.msra.mxu0 0.0
  %1267 = vmatprep.mubr.f32.mxu0 0.0
  %1268 = vmatmul.mubr.f32.gmra.mrb[0].mxu0 %v1174
  %v1269 = vpop.f32.mrb[0].mxu0
  %v1270 = vadd.f32 %v1202, %v1269
  %v1271 = vpop.f32.mrb[0].mxu0
  %1272 = vmatprep.mubr.f32.mxu0 0.0
  %1273 = vmatmul.mubr.f32.gmra.mrb[0].mxu0 %v1175
  %v1274 = vpop.f32.mrb[0].mxu0
  %v1275 = vadd.f32 %v1202, %v1274
  %v1276 = vpop.f32.mrb[0].mxu0
  %1277 = vmatprep.mubr.f32.mxu0 0.0
  %1278 = vmatmul.mubr.f32.gmra.mrb[0].mxu0 %v1176
  %v1279 = vpop.f32.mrb[0].mxu0
  %v1280 = vadd.f32 %v1202, %v1279
  %v1281 = vpop.f32.mrb[0].mxu0
  %1282 = vmatprep.mubr.f32.mxu0 0.0
  %1283 = vmatmul.mubr.f32.gmra.mrb[0].mxu0 %v1177
  %v1284 = vpop.f32.mrb[0].mxu0
  %v1285 = vadd.f32 %v1202, %v1284
  %v1286 = vpop.f32.mrb[0].mxu0
  %1287 = vmatprep.mubr.f32.mxu0 0.0
  %1288 = vmatmul.mubr.f32.gmra.mrb[0].mxu0 %v1178
  %v1289 = vpop.f32.mrb[0].mxu0
  %v1290 = vadd.f32 %v1202, %v1289
  %v1291 = vpop.f32.mrb[0].mxu0
  %1292 = vmatprep.mubr.f32.mxu0 0.0
  %1293 = vmatmul.mubr.f32.gmra.mrb[0].mxu0 %v1179
  %v1294 = vpop.f32.mrb[0].mxu0
  %v1295 = vadd.f32 %v1202, %v1294
  %v1296 = vpop.f32.mrb[0].mxu0
  %1297 = vmatprep.mubr.f32.mxu0 0.0
  %1298 = vmatmul.mubr.f32.gmra.mrb[0].mxu0 %v1180
  %v1299 = vpop.f32.mrb[0].mxu0
  %v1300 = vadd.f32 %v1202, %v1299
  %v1301 = vpop.f32.mrb[0].mxu0
  %1302 = vmatprep.mubr.f32.mxu0 0.0
  %1303 = vmatmul.mubr.f32.gmra.mrb[0].mxu0 %v1181
  %v1304 = vpop.f32.mrb[0].mxu0
  %v1305 = vadd.f32 %v1202, %v1304
  %v1306 = vpop.f32.mrb[0].mxu0
  %1307 = vdwg.mxu0
  %v1308 = vld [vmem:[%s1 + $0x700] sm:$0xff]
  %v1309 = vld [vmem:[%s1 + $0x708] sm:$0xff]
  %v1310 = vld [vmem:[%s1 + $0x710] sm:$0xff]
  %v1311 = vld [vmem:[%s1 + $0x718] sm:$0xff]
  %v1312 = vld [vmem:[%s1 + $0x720] sm:$0xff]
  %v1313 = vld [vmem:[%s1 + $0x728] sm:$0xff]
  %v1314 = vld [vmem:[%s1 + $0x730] sm:$0xff]
  %v1315 = vld [vmem:[%s1 + $0x738] sm:$0xff]
  %v1316 = vld [vmem:[%s1 + $0x740] sm:$0xff]
  %v1317 = vld [vmem:[%s1 + $0x748] sm:$0xff]
  %v1318 = vld [vmem:[%s1 + $0x750] sm:$0xff]
  %v1319 = vld [vmem:[%s1 + $0x758] sm:$0xff]
  %v1320 = vld [vmem:[%s1 + $0x760] sm:$0xff]
  %v1321 = vld [vmem:[%s1 + $0x768] sm:$0xff]
  %v1322 = vld [vmem:[%s1 + $0x770] sm:$0xff]
  %v1323 = vld [vmem:[%s1 + $0x778] sm:$0xff]
  %1324 = vmatprep.subr.mxu0 0.0
  %1325 = vmatpush1.msra.mxu0 %v1308
  %1326 = vmatprep.subr.mxu0 0.0
  %1327 = vmatpush1.msra.mxu0 %v1309
  %1328 = vmatprep.subr.mxu0 0.0
  %1329 = vmatpush1.msra.mxu0 %v1310
  %1330 = vmatprep.subr.mxu0 0.0
  %1331 = vmatpush1.msra.mxu0 %v1311
  %1332 = vmatprep.subr.mxu0 0.0
  %1333 = vmatpush1.msra.mxu0 %v1312
  %1334 = vmatprep.subr.mxu0 0.0
  %1335 = vmatpush1.msra.mxu0 %v1313
  %1336 = vmatprep.subr.mxu0 0.0
  %1337 = vmatpush1.msra.mxu0 %v1314
  %1338 = vmatprep.subr.mxu0 0.0
  %1339 = vmatpush1.msra.mxu0 %v1315
  %1340 = vmatprep.subr.mxu0 0.0
  %1341 = vmatpush1.msra.mxu0 %v1316
  %1342 = vmatprep.subr.mxu0 0.0
  %1343 = vmatpush1.msra.mxu0 %v1317
  %1344 = vmatprep.subr.mxu0 0.0
  %1345 = vmatpush1.msra.mxu0 %v1318
  %1346 = vmatprep.subr.mxu0 0.0
  %1347 = vmatpush1.msra.mxu0 %v1319
  %1348 = vmatprep.subr.mxu0 0.0
  %1349 = vmatpush1.msra.mxu0 %v1320
  %1350 = vmatprep.subr.mxu0 0.0
  %1351 = vmatpush1.msra.mxu0 %v1321
  %1352 = vmatprep.subr.mxu0 0.0
  %1353 = vmatpush1.msra.mxu0 %v1322
  %1354 = vmatprep.subr.mxu0 0.0
  %1355 = vmatpush1.msra.mxu0 %v1323
  %1356 = vmatprep.subr.mxu0 0.0
  %1357 = vmatpush1.msra.mxu0 0.0
  %1358 = vmatprep.subr.mxu0 0.0
  %1359 = vmatpush1.msra.mxu0 0.0
  %1360 = vmatprep.subr.mxu0 0.0
  %1361 = vmatpush1.msra.mxu0 0.0
  %1362 = vmatprep.subr.mxu0 0.0
  %1363 = vmatpush1.msra.mxu0 0.0
  %1364 = vmatprep.subr.mxu0 0.0
  %1365 = vmatpush1.msra.mxu0 0.0
  %1366 = vmatprep.subr.mxu0 0.0
  %1367 = vmatpush1.msra.mxu0 0.0
  %1368 = vmatprep.subr.mxu0 0.0
  %1369 = vmatpush1.msra.mxu0 0.0
  %1370 = vmatprep.subr.mxu0 0.0
  %1371 = vmatpush1.msra.mxu0 0.0
  %1372 = vmatprep.subr.mxu0 0.0
  %1373 = vmatpush1.msra.mxu0 0.0
  %1374 = vmatprep.subr.mxu0 0.0
  %1375 = vmatpush1.msra.mxu0 0.0
  %1376 = vmatprep.subr.mxu0 0.0
  %1377 = vmatpush1.msra.mxu0 0.0
  %1378 = vmatprep.subr.mxu0 0.0
  %1379 = vmatpush1.msra.mxu0 0.0
  %1380 = vmatprep.subr.mxu0 0.0
  %1381 = vmatpush1.msra.mxu0 0.0
  %1382 = vmatprep.subr.mxu0 0.0
  %1383 = vmatpush1.msra.mxu0 0.0
  %1384 = vmatprep.subr.mxu0 0.0
  %1385 = vmatpush1.msra.mxu0 0.0
  %1386 = vmatprep.subr.mxu0 0.0
  %1387 = vmatpush1.msra.mxu0 0.0
  %1388 = vmatprep.mubr.f32.mxu0 0.0
  %1389 = vmatmul.mubr.f32.gmra.mrb[0].mxu0 %v1270
  %v1390 = vpop.f32.mrb[0].mxu0
  %v1391 = vadd.f32 0.0, %v1390
  %v1392 = vpop.f32.mrb[0].mxu0
  %1393 = vmatprep.mubr.f32.mxu0 0.0
  %1394 = vmatmul.mubr.f32.gmra.mrb[0].mxu0 %v1275
  %v1395 = vpop.f32.mrb[0].mxu0
  %v1396 = vadd.f32 0.0, %v1395
  %v1397 = vpop.f32.mrb[0].mxu0
  %1398 = vmatprep.mubr.f32.mxu0 0.0
  %1399 = vmatmul.mubr.f32.gmra.mrb[0].mxu0 %v1280
  %v1400 = vpop.f32.mrb[0].mxu0
  %v1401 = vadd.f32 0.0, %v1400
  %v1402 = vpop.f32.mrb[0].mxu0
  %1403 = vmatprep.mubr.f32.mxu0 0.0
  %1404 = vmatmul.mubr.f32.gmra.mrb[0].mxu0 %v1285
  %v1405 = vpop.f32.mrb[0].mxu0
  %v1406 = vadd.f32 0.0, %v1405
  %v1407 = vpop.f32.mrb[0].mxu0
  %1408 = vmatprep.mubr.f32.mxu0 0.0
  %1409 = vmatmul.mubr.f32.gmra.mrb[0].mxu0 %v1290
  %v1410 = vpop.f32.mrb[0].mxu0
  %v1411 = vadd.f32 0.0, %v1410
  %v1412 = vpop.f32.mrb[0].mxu0
  %1413 = vmatprep.mubr.f32.mxu0 0.0
  %1414 = vmatmul.mubr.f32.gmra.mrb[0].mxu0 %v1295
  %v1415 = vpop.f32.mrb[0].mxu0
  %v1416 = vadd.f32 0.0, %v1415
  %v1417 = vpop.f32.mrb[0].mxu0
  %1418 = vmatprep.mubr.f32.mxu0 0.0
  %1419 = vmatmul.mubr.f32.gmra.mrb[0].mxu0 %v1300
  %v1420 = vpop.f32.mrb[0].mxu0
  %v1421 = vadd.f32 0.0, %v1420
  %v1422 = vpop.f32.mrb[0].mxu0
  %1423 = vmatprep.mubr.f32.mxu0 0.0
  %1424 = vmatmul.mubr.f32.gmra.mrb[0].mxu0 %v1305
  %v1425 = vpop.f32.mrb[0].mxu0
  %v1426 = vadd.f32 0.0, %v1425
  %v1427 = vpop.f32.mrb[0].mxu0
  %1428 = vdwg.mxu0
  %v1429 = vsub.f32 %v1270, %v1391
  %v1430 = vsub.f32 %v1275, %v1396
  %v1431 = vsub.f32 %v1280, %v1401
  %v1432 = vsub.f32 %v1285, %v1406
  %v1433 = vsub.f32 %v1290, %v1411
  %v1434 = vsub.f32 %v1295, %v1416
  %v1435 = vsub.f32 %v1300, %v1421
  %v1436 = vsub.f32 %v1305, %v1426
  %v1437 = vmul.f32 %v1429, %v1429
  %v1438 = vmul.f32 %v1430, %v1430
  %v1439 = vmul.f32 %v1431, %v1431
  %v1440 = vmul.f32 %v1432, %v1432
  %v1441 = vmul.f32 %v1433, %v1433
  %v1442 = vmul.f32 %v1434, %v1434
  %v1443 = vmul.f32 %v1435, %v1435
  %v1444 = vmul.f32 %v1436, %v1436
  %1445 = vmatprep.subr.mxu0 0.0
  %1446 = vmatpush1.msra.mxu0 %v1308
  %1447 = vmatprep.subr.mxu0 0.0
  %1448 = vmatpush1.msra.mxu0 %v1309
  %1449 = vmatprep.subr.mxu0 0.0
  %1450 = vmatpush1.msra.mxu0 %v1310
  %1451 = vmatprep.subr.mxu0 0.0
  %1452 = vmatpush1.msra.mxu0 %v1311
  %1453 = vmatprep.subr.mxu0 0.0
  %1454 = vmatpush1.msra.mxu0 %v1312
  %1455 = vmatprep.subr.mxu0 0.0
  %1456 = vmatpush1.msra.mxu0 %v1313
  %1457 = vmatprep.subr.mxu0 0.0
  %1458 = vmatpush1.msra.mxu0 %v1314
  %1459 = vmatprep.subr.mxu0 0.0
  %1460 = vmatpush1.msra.mxu0 %v1315
  %1461 = vmatprep.subr.mxu0 0.0
  %1462 = vmatpush1.msra.mxu0 %v1316
  %1463 = vmatprep.subr.mxu0 0.0
  %1464 = vmatpush1.msra.mxu0 %v1317
  %1465 = vmatprep.subr.mxu0 0.0
  %1466 = vmatpush1.msra.mxu0 %v1318
  %1467 = vmatprep.subr.mxu0 0.0
  %1468 = vmatpush1.msra.mxu0 %v1319
  %1469 = vmatprep.subr.mxu0 0.0
  %1470 = vmatpush1.msra.mxu0 %v1320
  %1471 = vmatprep.subr.mxu0 0.0
  %1472 = vmatpush1.msra.mxu0 %v1321
  %1473 = vmatprep.subr.mxu0 0.0
  %1474 = vmatpush1.msra.mxu0 %v1322
  %1475 = vmatprep.subr.mxu0 0.0
  %1476 = vmatpush1.msra.mxu0 %v1323
  %1477 = vmatprep.subr.mxu0 0.0
  %1478 = vmatpush1.msra.mxu0 0.0
  %1479 = vmatprep.subr.mxu0 0.0
  %1480 = vmatpush1.msra.mxu0 0.0
  %1481 = vmatprep.subr.mxu0 0.0
  %1482 = vmatpush1.msra.mxu0 0.0
  %1483 = vmatprep.subr.mxu0 0.0
  %1484 = vmatpush1.msra.mxu0 0.0
  %1485 = vmatprep.subr.mxu0 0.0
  %1486 = vmatpush1.msra.mxu0 0.0
  %1487 = vmatprep.subr.mxu0 0.0
  %1488 = vmatpush1.msra.mxu0 0.0
  %1489 = vmatprep.subr.mxu0 0.0
  %1490 = vmatpush1.msra.mxu0 0.0
  %1491 = vmatprep.subr.mxu0 0.0
  %1492 = vmatpush1.msra.mxu0 0.0
  %1493 = vmatprep.subr.mxu0 0.0
  %1494 = vmatpush1.msra.mxu0 0.0
  %1495 = vmatprep.subr.mxu0 0.0
  %1496 = vmatpush1.msra.mxu0 0.0
  %1497 = vmatprep.subr.mxu0 0.0
  %1498 = vmatpush1.msra.mxu0 0.0
  %1499 = vmatprep.subr.mxu0 0.0
  %1500 = vmatpush1.msra.mxu0 0.0
  %1501 = vmatprep.subr.mxu0 0.0
  %1502 = vmatpush1.msra.mxu0 0.0
  %1503 = vmatprep.subr.mxu0 0.0
  %1504 = vmatpush1.msra.mxu0 0.0
  %1505 = vmatprep.subr.mxu0 0.0
  %1506 = vmatpush1.msra.mxu0 0.0
  %1507 = vmatprep.subr.mxu0 0.0
  %1508 = vmatpush1.msra.mxu0 0.0
  %1509 = vmatprep.mubr.f32.mxu0 0.0
  %1510 = vmatmul.mubr.f32.gmra.mrb[0].mxu0 %v1437
  %v1511 = vpop.f32.mrb[0].mxu0
  %v1512 = vadd.f32 1e-05, %v1511
  %v1513 = vpop.f32.mrb[0].mxu0
  %1514 = vmatprep.mubr.f32.mxu0 0.0
  %1515 = vmatmul.mubr.f32.gmra.mrb[0].mxu0 %v1438
  %v1516 = vpop.f32.mrb[0].mxu0
  %v1517 = vadd.f32 1e-05, %v1516
  %v1518 = vpop.f32.mrb[0].mxu0
  %1519 = vmatprep.mubr.f32.mxu0 0.0
  %1520 = vmatmul.mubr.f32.gmra.mrb[0].mxu0 %v1439
  %v1521 = vpop.f32.mrb[0].mxu0
  %v1522 = vadd.f32 1e-05, %v1521
  %v1523 = vpop.f32.mrb[0].mxu0
  %1524 = vmatprep.mubr.f32.mxu0 0.0
  %1525 = vmatmul.mubr.f32.gmra.mrb[0].mxu0 %v1440
  %v1526 = vpop.f32.mrb[0].mxu0
  %v1527 = vadd.f32 1e-05, %v1526
  %v1528 = vpop.f32.mrb[0].mxu0
  %1529 = vmatprep.mubr.f32.mxu0 0.0
  %1530 = vmatmul.mubr.f32.gmra.mrb[0].mxu0 %v1441
  %v1531 = vpop.f32.mrb[0].mxu0
  %v1532 = vadd.f32 1e-05, %v1531
  %v1533 = vpop.f32.mrb[0].mxu0
  %1534 = vmatprep.mubr.f32.mxu0 0.0
  %1535 = vmatmul.mubr.f32.gmra.mrb[0].mxu0 %v1442
  %v1536 = vpop.f32.mrb[0].mxu0
  %v1537 = vadd.f32 1e-05, %v1536
  %v1538 = vpop.f32.mrb[0].mxu0
  %1539 = vmatprep.mubr.f32.mxu0 0.0
  %1540 = vmatmul.mubr.f32.gmra.mrb[0].mxu0 %v1443
  %v1541 = vpop.f32.mrb[0].mxu0
  %v1542 = vadd.f32 1e-05, %v1541
  %v1543 = vpop.f32.mrb[0].mxu0
  %1544 = vmatprep.mubr.f32.mxu0 0.0
  %1545 = vmatmul.mubr.f32.gmra.mrb[0].mxu0 %v1444
  %v1546 = vpop.f32.mrb[0].mxu0
  %v1547 = vadd.f32 1e-05, %v1546
  %v1548 = vpop.f32.mrb[0].mxu0
  %1549 = vdwg.mxu0
  %v1550 = vrsqrt.pop %v1512
  %v1551 = vrsqrt.pop %v1517
  %v1552 = vrsqrt.pop %v1522
  %v1553 = vrsqrt.pop %v1527
  %v1554 = vrsqrt.pop %v1532
  %v1555 = vrsqrt.pop %v1537
  %v1556 = vrsqrt.pop %v1542
  %v1557 = vrsqrt.pop %v1547
  %v1558 = vmul.f32 %v1429, %v1550
  %v1559 = vmul.f32 %v1430, %v1551
  %v1560 = vmul.f32 %v1431, %v1552
  %v1561 = vmul.f32 %v1432, %v1553
  %v1562 = vmul.f32 %v1433, %v1554
  %v1563 = vmul.f32 %v1434, %v1555
  %v1564 = vmul.f32 %v1435, %v1556
  %v1565 = vmul.f32 %v1436, %v1557
  %v1566 = vld [vmem:[%s2 + $0x9] sm:$0x1]
  %v1567 = vlaneseq
  %v1568 = vshrl.u32 %v1567, 7
  %v1569 = vsub.s32 0, %v1568
  %v1570 = vrot.slane %v1566, %v1569
  %v1571 = vmul.f32 %v1558, %v1570
  %v1572 = vmul.f32 %v1559, %v1570
  %v1573 = vmul.f32 %v1560, %v1570
  %v1574 = vmul.f32 %v1561, %v1570
  %v1575 = vmul.f32 %v1562, %v1570
  %v1576 = vmul.f32 %v1563, %v1570
  %v1577 = vmul.f32 %v1564, %v1570
  %v1578 = vmul.f32 %v1565, %v1570
  %v1579 = vld [vmem:[%s2 + $0xa] sm:$0x1]
  %v1580 = vlaneseq
  %v1581 = vshrl.u32 %v1580, 7
  %v1582 = vsub.s32 0, %v1581
  %v1583 = vrot.slane %v1579, %v1582
  %v1584 = vadd.f32 %v1571, %v1583
  %v1585 = vadd.f32 %v1572, %v1583
  %v1586 = vadd.f32 %v1573, %v1583
  %v1587 = vadd.f32 %v1574, %v1583
  %v1588 = vadd.f32 %v1575, %v1583
  %v1589 = vadd.f32 %v1576, %v1583
  %v1590 = vadd.f32 %v1577, %v1583
  %v1591 = vadd.f32 %v1578, %v1583
  %vm1592 = vcmp.gt.f32.partialorder %v1584, 0.0
  %vm1593 = vcmp.gt.f32.partialorder %v1585, 0.0
  %vm1594 = vcmp.gt.f32.partialorder %v1586, 0.0
  %vm1595 = vcmp.gt.f32.partialorder %v1587, 0.0
  %vm1596 = vcmp.gt.f32.partialorder %v1588, 0.0
  %vm1597 = vcmp.gt.f32.partialorder %v1589, 0.0
  %vm1598 = vcmp.gt.f32.partialorder %v1590, 0.0
  %vm1599 = vcmp.gt.f32.partialorder %v1591, 0.0
  %v1600 = vmul.f32 %v1584, 0.2
  %v1601 = vmul.f32 %v1585, 0.2
  %v1602 = vmul.f32 %v1586, 0.2
  %v1603 = vmul.f32 %v1587, 0.2
  %v1604 = vmul.f32 %v1588, 0.2
  %v1605 = vmul.f32 %v1589, 0.2
  %v1606 = vmul.f32 %v1590, 0.2
  %v1607 = vmul.f32 %v1591, 0.2
  %v1608 = vsel %vm1592, %v1584, %v1600
  %v1609 = vsel %vm1593, %v1585, %v1601
  %v1610 = vsel %vm1594, %v1586, %v1602
  %v1611 = vsel %vm1595, %v1587, %v1603
  %v1612 = vsel %vm1596, %v1588, %v1604
  %v1613 = vsel %vm1597, %v1589, %v1605
  %v1614 = vsel %vm1598, %v1590, %v1606
  %v1615 = vsel %vm1599, %v1591, %v1607
  %v1616 = vld [vmem:[%s1 + $0x280] sm:$0xff]
  %v1617 = vld [vmem:[%s1 + $0x288] sm:$0xff]
  %v1618 = vld [vmem:[%s1 + $0x290] sm:$0xff]
  %v1619 = vld [vmem:[%s1 + $0x298] sm:$0xff]
  %v1620 = vld [vmem:[%s1 + $0x2a0] sm:$0xff]
  %v1621 = vld [vmem:[%s1 + $0x2a8] sm:$0xff]
  %v1622 = vld [vmem:[%s1 + $0x2b0] sm:$0xff]
  %v1623 = vld [vmem:[%s1 + $0x2b8] sm:$0xff]
  %v1624 = vld [vmem:[%s1 + $0x2c0] sm:$0xff]
  %v1625 = vld [vmem:[%s1 + $0x2c8] sm:$0xff]
  %v1626 = vld [vmem:[%s1 + $0x2d0] sm:$0xff]
  %v1627 = vld [vmem:[%s1 + $0x2d8] sm:$0xff]
  %v1628 = vld [vmem:[%s1 + $0x2e0] sm:$0xff]
  %v1629 = vld [vmem:[%s1 + $0x2e8] sm:$0xff]
  %v1630 = vld [vmem:[%s1 + $0x2f0] sm:$0xff]
  %v1631 = vld [vmem:[%s1 + $0x2f8] sm:$0xff]
  %v1632 = vld [vmem:[%s2 + $0xb] sm:$0x1]
  %v1633 = vlaneseq
  %v1634 = vshrl.u32 %v1633, 7
  %v1635 = vsub.s32 0, %v1634
  %v1636 = vrot.slane %v1632, %v1635
  %1637 = vmatprep.subr.mxu0 0.0
  %1638 = vmatpush1.msra.mxu0 %v1616
  %1639 = vmatprep.subr.mxu0 0.0
  %1640 = vmatpush1.msra.mxu0 %v1617
  %1641 = vmatprep.subr.mxu0 0.0
  %1642 = vmatpush1.msra.mxu0 %v1618
  %1643 = vmatprep.subr.mxu0 0.0
  %1644 = vmatpush1.msra.mxu0 %v1619
  %1645 = vmatprep.subr.mxu0 0.0
  %1646 = vmatpush1.msra.mxu0 %v1620
  %1647 = vmatprep.subr.mxu0 0.0
  %1648 = vmatpush1.msra.mxu0 %v1621
  %1649 = vmatprep.subr.mxu0 0.0
  %1650 = vmatpush1.msra.mxu0 %v1622
  %1651 = vmatprep.subr.mxu0 0.0
  %1652 = vmatpush1.msra.mxu0 %v1623
  %1653 = vmatprep.subr.mxu0 0.0
  %1654 = vmatpush1.msra.mxu0 %v1624
  %1655 = vmatprep.subr.mxu0 0.0
  %1656 = vmatpush1.msra.mxu0 %v1625
  %1657 = vmatprep.subr.mxu0 0.0
  %1658 = vmatpush1.msra.mxu0 %v1626
  %1659 = vmatprep.subr.mxu0 0.0
  %1660 = vmatpush1.msra.mxu0 %v1627
  %1661 = vmatprep.subr.mxu0 0.0
  %1662 = vmatpush1.msra.mxu0 %v1628
  %1663 = vmatprep.subr.mxu0 0.0
  %1664 = vmatpush1.msra.mxu0 %v1629
  %1665 = vmatprep.subr.mxu0 0.0
  %1666 = vmatpush1.msra.mxu0 %v1630
  %1667 = vmatprep.subr.mxu0 0.0
  %1668 = vmatpush1.msra.mxu0 %v1631
  %1669 = vmatprep.subr.mxu0 0.0
  %1670 = vmatpush1.msra.mxu0 0.0
  %1671 = vmatprep.subr.mxu0 0.0
  %1672 = vmatpush1.msra.mxu0 0.0
  %1673 = vmatprep.subr.mxu0 0.0
  %1674 = vmatpush1.msra.mxu0 0.0
  %1675 = vmatprep.subr.mxu0 0.0
  %1676 = vmatpush1.msra.mxu0 0.0
  %1677 = vmatprep.subr.mxu0 0.0
  %1678 = vmatpush1.msra.mxu0 0.0
  %1679 = vmatprep.subr.mxu0 0.0
  %1680 = vmatpush1.msra.mxu0 0.0
  %1681 = vmatprep.subr.mxu0 0.0
  %1682 = vmatpush1.msra.mxu0 0.0
  %1683 = vmatprep.subr.mxu0 0.0
  %1684 = vmatpush1.msra.mxu0 0.0
  %1685 = vmatprep.subr.mxu0 0.0
  %1686 = vmatpush1.msra.mxu0 0.0
  %1687 = vmatprep.subr.mxu0 0.0
  %1688 = vmatpush1.msra.mxu0 0.0
  %1689 = vmatprep.subr.mxu0 0.0
  %1690 = vmatpush1.msra.mxu0 0.0
  %1691 = vmatprep.subr.mxu0 0.0
  %1692 = vmatpush1.msra.mxu0 0.0
  %1693 = vmatprep.subr.mxu0 0.0
  %1694 = vmatpush1.msra.mxu0 0.0
  %1695 = vmatprep.subr.mxu0 0.0
  %1696 = vmatpush1.msra.mxu0 0.0
  %1697 = vmatprep.subr.mxu0 0.0
  %1698 = vmatpush1.msra.mxu0 0.0
  %1699 = vmatprep.subr.mxu0 0.0
  %1700 = vmatpush1.msra.mxu0 0.0
  %1701 = vmatprep.mubr.f32.mxu0 0.0
  %1702 = vmatmul.mubr.f32.gmra.mrb[0].mxu0 %v1608
  %v1703 = vpop.f32.mrb[0].mxu0
  %v1704 = vadd.f32 %v1636, %v1703
  %v1705 = vpop.f32.mrb[0].mxu0
  %1706 = vmatprep.mubr.f32.mxu0 0.0
  %1707 = vmatmul.mubr.f32.gmra.mrb[0].mxu0 %v1609
  %v1708 = vpop.f32.mrb[0].mxu0
  %v1709 = vadd.f32 %v1636, %v1708
  %v1710 = vpop.f32.mrb[0].mxu0
  %1711 = vmatprep.mubr.f32.mxu0 0.0
  %1712 = vmatmul.mubr.f32.gmra.mrb[0].mxu0 %v1610
  %v1713 = vpop.f32.mrb[0].mxu0
  %v1714 = vadd.f32 %v1636, %v1713
  %v1715 = vpop.f32.mrb[0].mxu0
  %1716 = vmatprep.mubr.f32.mxu0 0.0
  %1717 = vmatmul.mubr.f32.gmra.mrb[0].mxu0 %v1611
  %v1718 = vpop.f32.mrb[0].mxu0
  %v1719 = vadd.f32 %v1636, %v1718
  %v1720 = vpop.f32.mrb[0].mxu0
  %1721 = vmatprep.mubr.f32.mxu0 0.0
  %1722 = vmatmul.mubr.f32.gmra.mrb[0].mxu0 %v1612
  %v1723 = vpop.f32.mrb[0].mxu0
  %v1724 = vadd.f32 %v1636, %v1723
  %v1725 = vpop.f32.mrb[0].mxu0
  %1726 = vmatprep.mubr.f32.mxu0 0.0
  %1727 = vmatmul.mubr.f32.gmra.mrb[0].mxu0 %v1613
  %v1728 = vpop.f32.mrb[0].mxu0
  %v1729 = vadd.f32 %v1636, %v1728
  %v1730 = vpop.f32.mrb[0].mxu0
  %1731 = vmatprep.mubr.f32.mxu0 0.0
  %1732 = vmatmul.mubr.f32.gmra.mrb[0].mxu0 %v1614
  %v1733 = vpop.f32.mrb[0].mxu0
  %v1734 = vadd.f32 %v1636, %v1733
  %v1735 = vpop.f32.mrb[0].mxu0
  %1736 = vmatprep.mubr.f32.mxu0 0.0
  %1737 = vmatmul.mubr.f32.gmra.mrb[0].mxu0 %v1615
  %v1738 = vpop.f32.mrb[0].mxu0
  %v1739 = vadd.f32 %v1636, %v1738
  %v1740 = vpop.f32.mrb[0].mxu0
  %1741 = vdwg.mxu0
  %v1742 = vld [vmem:[%s1 + $0x300] sm:$0xff]
  %v1743 = vld [vmem:[%s1 + $0x308] sm:$0xff]
  %v1744 = vld [vmem:[%s1 + $0x310] sm:$0xff]
  %v1745 = vld [vmem:[%s1 + $0x318] sm:$0xff]
  %v1746 = vld [vmem:[%s1 + $0x320] sm:$0xff]
  %v1747 = vld [vmem:[%s1 + $0x328] sm:$0xff]
  %v1748 = vld [vmem:[%s1 + $0x330] sm:$0xff]
  %v1749 = vld [vmem:[%s1 + $0x338] sm:$0xff]
  %v1750 = vld [vmem:[%s1 + $0x340] sm:$0xff]
  %v1751 = vld [vmem:[%s1 + $0x348] sm:$0xff]
  %v1752 = vld [vmem:[%s1 + $0x350] sm:$0xff]
  %v1753 = vld [vmem:[%s1 + $0x358] sm:$0xff]
  %v1754 = vld [vmem:[%s1 + $0x360] sm:$0xff]
  %v1755 = vld [vmem:[%s1 + $0x368] sm:$0xff]
  %v1756 = vld [vmem:[%s1 + $0x370] sm:$0xff]
  %v1757 = vld [vmem:[%s1 + $0x378] sm:$0xff]
  %v1758 = vld [vmem:[%s2 + $0xc] sm:$0x1]
  %v1759 = vlaneseq
  %v1760 = vshrl.u32 %v1759, 7
  %v1761 = vsub.s32 0, %v1760
  %v1762 = vrot.slane %v1758, %v1761
  %1763 = vmatprep.subr.mxu0 0.0
  %1764 = vmatpush1.msra.mxu0 %v1742
  %1765 = vmatprep.subr.mxu0 0.0
  %1766 = vmatpush1.msra.mxu0 %v1743
  %1767 = vmatprep.subr.mxu0 0.0
  %1768 = vmatpush1.msra.mxu0 %v1744
  %1769 = vmatprep.subr.mxu0 0.0
  %1770 = vmatpush1.msra.mxu0 %v1745
  %1771 = vmatprep.subr.mxu0 0.0
  %1772 = vmatpush1.msra.mxu0 %v1746
  %1773 = vmatprep.subr.mxu0 0.0
  %1774 = vmatpush1.msra.mxu0 %v1747
  %1775 = vmatprep.subr.mxu0 0.0
  %1776 = vmatpush1.msra.mxu0 %v1748
  %1777 = vmatprep.subr.mxu0 0.0
  %1778 = vmatpush1.msra.mxu0 %v1749
  %1779 = vmatprep.subr.mxu0 0.0
  %1780 = vmatpush1.msra.mxu0 %v1750
  %1781 = vmatprep.subr.mxu0 0.0
  %1782 = vmatpush1.msra.mxu0 %v1751
  %1783 = vmatprep.subr.mxu0 0.0
  %1784 = vmatpush1.msra.mxu0 %v1752
  %1785 = vmatprep.subr.mxu0 0.0
  %1786 = vmatpush1.msra.mxu0 %v1753
  %1787 = vmatprep.subr.mxu0 0.0
  %1788 = vmatpush1.msra.mxu0 %v1754
  %1789 = vmatprep.subr.mxu0 0.0
  %1790 = vmatpush1.msra.mxu0 %v1755
  %1791 = vmatprep.subr.mxu0 0.0
  %1792 = vmatpush1.msra.mxu0 %v1756
  %1793 = vmatprep.subr.mxu0 0.0
  %1794 = vmatpush1.msra.mxu0 %v1757
  %1795 = vmatprep.subr.mxu0 0.0
  %1796 = vmatpush1.msra.mxu0 0.0
  %1797 = vmatprep.subr.mxu0 0.0
  %1798 = vmatpush1.msra.mxu0 0.0
  %1799 = vmatprep.subr.mxu0 0.0
  %1800 = vmatpush1.msra.mxu0 0.0
  %1801 = vmatprep.subr.mxu0 0.0
  %1802 = vmatpush1.msra.mxu0 0.0
  %1803 = vmatprep.subr.mxu0 0.0
  %1804 = vmatpush1.msra.mxu0 0.0
  %1805 = vmatprep.subr.mxu0 0.0
  %1806 = vmatpush1.msra.mxu0 0.0
  %1807 = vmatprep.subr.mxu0 0.0
  %1808 = vmatpush1.msra.mxu0 0.0
  %1809 = vmatprep.subr.mxu0 0.0
  %1810 = vmatpush1.msra.mxu0 0.0
  %1811 = vmatprep.subr.mxu0 0.0
  %1812 = vmatpush1.msra.mxu0 0.0
  %1813 = vmatprep.subr.mxu0 0.0
  %1814 = vmatpush1.msra.mxu0 0.0
  %1815 = vmatprep.subr.mxu0 0.0
  %1816 = vmatpush1.msra.mxu0 0.0
  %1817 = vmatprep.subr.mxu0 0.0
  %1818 = vmatpush1.msra.mxu0 0.0
  %1819 = vmatprep.subr.mxu0 0.0
  %1820 = vmatpush1.msra.mxu0 0.0
  %1821 = vmatprep.subr.mxu0 0.0
  %1822 = vmatpush1.msra.mxu0 0.0
  %1823 = vmatprep.subr.mxu0 0.0
  %1824 = vmatpush1.msra.mxu0 0.0
  %1825 = vmatprep.subr.mxu0 0.0
  %1826 = vmatpush1.msra.mxu0 0.0
  %1827 = vmatprep.mubr.f32.mxu0 0.0
  %1828 = vmatmul.mubr.f32.gmra.mrb[0].mxu0 %v1608
  %v1829 = vpop.f32.mrb[0].mxu0
  %v1830 = vadd.f32 %v1762, %v1829
  %v1831 = vpop.f32.mrb[0].mxu0
  %1832 = vmatprep.mubr.f32.mxu0 0.0
  %1833 = vmatmul.mubr.f32.gmra.mrb[0].mxu0 %v1609
  %v1834 = vpop.f32.mrb[0].mxu0
  %v1835 = vadd.f32 %v1762, %v1834
  %v1836 = vpop.f32.mrb[0].mxu0
  %1837 = vmatprep.mubr.f32.mxu0 0.0
  %1838 = vmatmul.mubr.f32.gmra.mrb[0].mxu0 %v1610
  %v1839 = vpop.f32.mrb[0].mxu0
  %v1840 = vadd.f32 %v1762, %v1839
  %v1841 = vpop.f32.mrb[0].mxu0
  %1842 = vmatprep.mubr.f32.mxu0 0.0
  %1843 = vmatmul.mubr.f32.gmra.mrb[0].mxu0 %v1611
  %v1844 = vpop.f32.mrb[0].mxu0
  %v1845 = vadd.f32 %v1762, %v1844
  %v1846 = vpop.f32.mrb[0].mxu0
  %1847 = vmatprep.mubr.f32.mxu0 0.0
  %1848 = vmatmul.mubr.f32.gmra.mrb[0].mxu0 %v1612
  %v1849 = vpop.f32.mrb[0].mxu0
  %v1850 = vadd.f32 %v1762, %v1849
  %v1851 = vpop.f32.mrb[0].mxu0
  %1852 = vmatprep.mubr.f32.mxu0 0.0
  %1853 = vmatmul.mubr.f32.gmra.mrb[0].mxu0 %v1613
  %v1854 = vpop.f32.mrb[0].mxu0
  %v1855 = vadd.f32 %v1762, %v1854
  %v1856 = vpop.f32.mrb[0].mxu0
  %1857 = vmatprep.mubr.f32.mxu0 0.0
  %1858 = vmatmul.mubr.f32.gmra.mrb[0].mxu0 %v1614
  %v1859 = vpop.f32.mrb[0].mxu0
  %v1860 = vadd.f32 %v1762, %v1859
  %v1861 = vpop.f32.mrb[0].mxu0
  %1862 = vmatprep.mubr.f32.mxu0 0.0
  %1863 = vmatmul.mubr.f32.gmra.mrb[0].mxu0 %v1615
  %v1864 = vpop.f32.mrb[0].mxu0
  %v1865 = vadd.f32 %v1762, %v1864
  %v1866 = vpop.f32.mrb[0].mxu0
  %1867 = vdwg.mxu0
  %v1868 = vmul.f32 %v1830, 0.5
  %v1869 = vmul.f32 %v1835, 0.5
  %v1870 = vmul.f32 %v1840, 0.5
  %v1871 = vmul.f32 %v1845, 0.5
  %v1872 = vmul.f32 %v1850, 0.5
  %v1873 = vmul.f32 %v1855, 0.5
  %v1874 = vmul.f32 %v1860, 0.5
  %v1875 = vmul.f32 %v1865, 0.5
  %v1876 = vmul.f32 %v1868, 1.442695
  %v1877 = vpow.pop %v1876
  %v1878 = vmul.f32 %v1869, 1.442695
  %v1879 = vpow.pop %v1878
  %v1880 = vmul.f32 %v1870, 1.442695
  %v1881 = vpow.pop %v1880
  %v1882 = vmul.f32 %v1871, 1.442695
  %v1883 = vpow.pop %v1882
  %v1884 = vmul.f32 %v1872, 1.442695
  %v1885 = vpow.pop %v1884
  %v1886 = vmul.f32 %v1873, 1.442695
  %v1887 = vpow.pop %v1886
  %v1888 = vmul.f32 %v1874, 1.442695
  %v1889 = vpow.pop %v1888
  %v1890 = vmul.f32 %v1875, 1.442695
  %v1891 = vpow.pop %v1890
  %v1892 = vmul.f32 %v15, %v1877
  %v1893 = vmul.f32 %v17, %v1879
  %v1894 = vmul.f32 %v19, %v1881
  %v1895 = vmul.f32 %v21, %v1883
  %v1896 = vmul.f32 %v23, %v1885
  %v1897 = vmul.f32 %v25, %v1887
  %v1898 = vmul.f32 %v27, %v1889
  %v1899 = vmul.f32 %v29, %v1891
  %v1900 = vadd.f32 %v1704, %v1892
  %v1901 = vadd.f32 %v1709, %v1893
  %v1902 = vadd.f32 %v1714, %v1894
  %v1903 = vadd.f32 %v1719, %v1895
  %v1904 = vadd.f32 %v1724, %v1896
  %v1905 = vadd.f32 %v1729, %v1897
  %v1906 = vadd.f32 %v1734, %v1898
  %v1907 = vadd.f32 %v1739, %v1899
  %v1908 = vld [vmem:[%s1 + $0x380] sm:$0xff]
  %v1909 = vld [vmem:[%s1 + $0x388] sm:$0xff]
  %v1910 = vld [vmem:[%s1 + $0x390] sm:$0xff]
  %v1911 = vld [vmem:[%s1 + $0x398] sm:$0xff]
  %v1912 = vld [vmem:[%s1 + $0x3a0] sm:$0xff]
  %v1913 = vld [vmem:[%s1 + $0x3a8] sm:$0xff]
  %v1914 = vld [vmem:[%s1 + $0x3b0] sm:$0xff]
  %v1915 = vld [vmem:[%s1 + $0x3b8] sm:$0xff]
  %v1916 = vld [vmem:[%s1 + $0x3c0] sm:$0xff]
  %v1917 = vld [vmem:[%s1 + $0x3c8] sm:$0xff]
  %v1918 = vld [vmem:[%s1 + $0x3d0] sm:$0xff]
  %v1919 = vld [vmem:[%s1 + $0x3d8] sm:$0xff]
  %v1920 = vld [vmem:[%s1 + $0x3e0] sm:$0xff]
  %v1921 = vld [vmem:[%s1 + $0x3e8] sm:$0xff]
  %v1922 = vld [vmem:[%s1 + $0x3f0] sm:$0xff]
  %v1923 = vld [vmem:[%s1 + $0x3f8] sm:$0xff]
  %v1924 = vld [vmem:[%s2 + $0xd] sm:$0x1]
  %v1925 = vlaneseq
  %v1926 = vshrl.u32 %v1925, 7
  %v1927 = vsub.s32 0, %v1926
  %v1928 = vrot.slane %v1924, %v1927
  %1929 = vmatprep.subr.mxu0 0.0
  %1930 = vmatpush1.msra.mxu0 %v1908
  %1931 = vmatprep.subr.mxu0 0.0
  %1932 = vmatpush1.msra.mxu0 %v1909
  %1933 = vmatprep.subr.mxu0 0.0
  %1934 = vmatpush1.msra.mxu0 %v1910
  %1935 = vmatprep.subr.mxu0 0.0
  %1936 = vmatpush1.msra.mxu0 %v1911
  %1937 = vmatprep.subr.mxu0 0.0
  %1938 = vmatpush1.msra.mxu0 %v1912
  %1939 = vmatprep.subr.mxu0 0.0
  %1940 = vmatpush1.msra.mxu0 %v1913
  %1941 = vmatprep.subr.mxu0 0.0
  %1942 = vmatpush1.msra.mxu0 %v1914
  %1943 = vmatprep.subr.mxu0 0.0
  %1944 = vmatpush1.msra.mxu0 %v1915
  %1945 = vmatprep.subr.mxu0 0.0
  %1946 = vmatpush1.msra.mxu0 %v1916
  %1947 = vmatprep.subr.mxu0 0.0
  %1948 = vmatpush1.msra.mxu0 %v1917
  %1949 = vmatprep.subr.mxu0 0.0
  %1950 = vmatpush1.msra.mxu0 %v1918
  %1951 = vmatprep.subr.mxu0 0.0
  %1952 = vmatpush1.msra.mxu0 %v1919
  %1953 = vmatprep.subr.mxu0 0.0
  %1954 = vmatpush1.msra.mxu0 %v1920
  %1955 = vmatprep.subr.mxu0 0.0
  %1956 = vmatpush1.msra.mxu0 %v1921
  %1957 = vmatprep.subr.mxu0 0.0
  %1958 = vmatpush1.msra.mxu0 %v1922
  %1959 = vmatprep.subr.mxu0 0.0
  %1960 = vmatpush1.msra.mxu0 %v1923
  %1961 = vmatprep.subr.mxu0 0.0
  %1962 = vmatpush1.msra.mxu0 0.0
  %1963 = vmatprep.subr.mxu0 0.0
  %1964 = vmatpush1.msra.mxu0 0.0
  %1965 = vmatprep.subr.mxu0 0.0
  %1966 = vmatpush1.msra.mxu0 0.0
  %1967 = vmatprep.subr.mxu0 0.0
  %1968 = vmatpush1.msra.mxu0 0.0
  %1969 = vmatprep.subr.mxu0 0.0
  %1970 = vmatpush1.msra.mxu0 0.0
  %1971 = vmatprep.subr.mxu0 0.0
  %1972 = vmatpush1.msra.mxu0 0.0
  %1973 = vmatprep.subr.mxu0 0.0
  %1974 = vmatpush1.msra.mxu0 0.0
  %1975 = vmatprep.subr.mxu0 0.0
  %1976 = vmatpush1.msra.mxu0 0.0
  %1977 = vmatprep.subr.mxu0 0.0
  %1978 = vmatpush1.msra.mxu0 0.0
  %1979 = vmatprep.subr.mxu0 0.0
  %1980 = vmatpush1.msra.mxu0 0.0
  %1981 = vmatprep.subr.mxu0 0.0
  %1982 = vmatpush1.msra.mxu0 0.0
  %1983 = vmatprep.subr.mxu0 0.0
  %1984 = vmatpush1.msra.mxu0 0.0
  %1985 = vmatprep.subr.mxu0 0.0
  %1986 = vmatpush1.msra.mxu0 0.0
  %1987 = vmatprep.subr.mxu0 0.0
  %1988 = vmatpush1.msra.mxu0 0.0
  %1989 = vmatprep.subr.mxu0 0.0
  %1990 = vmatpush1.msra.mxu0 0.0
  %1991 = vmatprep.subr.mxu0 0.0
  %1992 = vmatpush1.msra.mxu0 0.0
  %1993 = vmatprep.mubr.f32.mxu0 0.0
  %1994 = vmatmul.mubr.f32.gmra.mrb[0].mxu0 %v1900
  %v1995 = vpop.f32.mrb[0].mxu0
  %v1996 = vadd.f32 %v1928, %v1995
  %v1997 = vpop.f32.mrb[0].mxu0
  %1998 = vmatprep.mubr.f32.mxu0 0.0
  %1999 = vmatmul.mubr.f32.gmra.mrb[0].mxu0 %v1901
  %v2000 = vpop.f32.mrb[0].mxu0
  %v2001 = vadd.f32 %v1928, %v2000
  %v2002 = vpop.f32.mrb[0].mxu0
  %2003 = vmatprep.mubr.f32.mxu0 0.0
  %2004 = vmatmul.mubr.f32.gmra.mrb[0].mxu0 %v1902
  %v2005 = vpop.f32.mrb[0].mxu0
  %v2006 = vadd.f32 %v1928, %v2005
  %v2007 = vpop.f32.mrb[0].mxu0
  %2008 = vmatprep.mubr.f32.mxu0 0.0
  %2009 = vmatmul.mubr.f32.gmra.mrb[0].mxu0 %v1903
  %v2010 = vpop.f32.mrb[0].mxu0
  %v2011 = vadd.f32 %v1928, %v2010
  %v2012 = vpop.f32.mrb[0].mxu0
  %2013 = vmatprep.mubr.f32.mxu0 0.0
  %2014 = vmatmul.mubr.f32.gmra.mrb[0].mxu0 %v1904
  %v2015 = vpop.f32.mrb[0].mxu0
  %v2016 = vadd.f32 %v1928, %v2015
  %v2017 = vpop.f32.mrb[0].mxu0
  %2018 = vmatprep.mubr.f32.mxu0 0.0
  %2019 = vmatmul.mubr.f32.gmra.mrb[0].mxu0 %v1905
  %v2020 = vpop.f32.mrb[0].mxu0
  %v2021 = vadd.f32 %v1928, %v2020
  %v2022 = vpop.f32.mrb[0].mxu0
  %2023 = vmatprep.mubr.f32.mxu0 0.0
  %2024 = vmatmul.mubr.f32.gmra.mrb[0].mxu0 %v1906
  %v2025 = vpop.f32.mrb[0].mxu0
  %v2026 = vadd.f32 %v1928, %v2025
  %v2027 = vpop.f32.mrb[0].mxu0
  %2028 = vmatprep.mubr.f32.mxu0 0.0
  %2029 = vmatmul.mubr.f32.gmra.mrb[0].mxu0 %v1907
  %v2030 = vpop.f32.mrb[0].mxu0
  %v2031 = vadd.f32 %v1928, %v2030
  %v2032 = vpop.f32.mrb[0].mxu0
  %2033 = vdwg.mxu0
  %2034 = vmatprep.subr.mxu0 0.0
  %2035 = vmatpush1.msra.mxu0 %v1308
  %2036 = vmatprep.subr.mxu0 0.0
  %2037 = vmatpush1.msra.mxu0 %v1309
  %2038 = vmatprep.subr.mxu0 0.0
  %2039 = vmatpush1.msra.mxu0 %v1310
  %2040 = vmatprep.subr.mxu0 0.0
  %2041 = vmatpush1.msra.mxu0 %v1311
  %2042 = vmatprep.subr.mxu0 0.0
  %2043 = vmatpush1.msra.mxu0 %v1312
  %2044 = vmatprep.subr.mxu0 0.0
  %2045 = vmatpush1.msra.mxu0 %v1313
  %2046 = vmatprep.subr.mxu0 0.0
  %2047 = vmatpush1.msra.mxu0 %v1314
  %2048 = vmatprep.subr.mxu0 0.0
  %2049 = vmatpush1.msra.mxu0 %v1315
  %2050 = vmatprep.subr.mxu0 0.0
  %2051 = vmatpush1.msra.mxu0 %v1316
  %2052 = vmatprep.subr.mxu0 0.0
  %2053 = vmatpush1.msra.mxu0 %v1317
  %2054 = vmatprep.subr.mxu0 0.0
  %2055 = vmatpush1.msra.mxu0 %v1318
  %2056 = vmatprep.subr.mxu0 0.0
  %2057 = vmatpush1.msra.mxu0 %v1319
  %2058 = vmatprep.subr.mxu0 0.0
  %2059 = vmatpush1.msra.mxu0 %v1320
  %2060 = vmatprep.subr.mxu0 0.0
  %2061 = vmatpush1.msra.mxu0 %v1321
  %2062 = vmatprep.subr.mxu0 0.0
  %2063 = vmatpush1.msra.mxu0 %v1322
  %2064 = vmatprep.subr.mxu0 0.0
  %2065 = vmatpush1.msra.mxu0 %v1323
  %2066 = vmatprep.subr.mxu0 0.0
  %2067 = vmatpush1.msra.mxu0 0.0
  %2068 = vmatprep.subr.mxu0 0.0
  %2069 = vmatpush1.msra.mxu0 0.0
  %2070 = vmatprep.subr.mxu0 0.0
  %2071 = vmatpush1.msra.mxu0 0.0
  %2072 = vmatprep.subr.mxu0 0.0
  %2073 = vmatpush1.msra.mxu0 0.0
  %2074 = vmatprep.subr.mxu0 0.0
  %2075 = vmatpush1.msra.mxu0 0.0
  %2076 = vmatprep.subr.mxu0 0.0
  %2077 = vmatpush1.msra.mxu0 0.0
  %2078 = vmatprep.subr.mxu0 0.0
  %2079 = vmatpush1.msra.mxu0 0.0
  %2080 = vmatprep.subr.mxu0 0.0
  %2081 = vmatpush1.msra.mxu0 0.0
  %2082 = vmatprep.subr.mxu0 0.0
  %2083 = vmatpush1.msra.mxu0 0.0
  %2084 = vmatprep.subr.mxu0 0.0
  %2085 = vmatpush1.msra.mxu0 0.0
  %2086 = vmatprep.subr.mxu0 0.0
  %2087 = vmatpush1.msra.mxu0 0.0
  %2088 = vmatprep.subr.mxu0 0.0
  %2089 = vmatpush1.msra.mxu0 0.0
  %2090 = vmatprep.subr.mxu0 0.0
  %2091 = vmatpush1.msra.mxu0 0.0
  %2092 = vmatprep.subr.mxu0 0.0
  %2093 = vmatpush1.msra.mxu0 0.0
  %2094 = vmatprep.subr.mxu0 0.0
  %2095 = vmatpush1.msra.mxu0 0.0
  %2096 = vmatprep.subr.mxu0 0.0
  %2097 = vmatpush1.msra.mxu0 0.0
  %2098 = vmatprep.mubr.f32.mxu0 0.0
  %2099 = vmatmul.mubr.f32.gmra.mrb[0].mxu0 %v1996
  %v2100 = vpop.f32.mrb[0].mxu0
  %v2101 = vadd.f32 0.0, %v2100
  %v2102 = vpop.f32.mrb[0].mxu0
  %2103 = vmatprep.mubr.f32.mxu0 0.0
  %2104 = vmatmul.mubr.f32.gmra.mrb[0].mxu0 %v2001
  %v2105 = vpop.f32.mrb[0].mxu0
  %v2106 = vadd.f32 0.0, %v2105
  %v2107 = vpop.f32.mrb[0].mxu0
  %2108 = vmatprep.mubr.f32.mxu0 0.0
  %2109 = vmatmul.mubr.f32.gmra.mrb[0].mxu0 %v2006
  %v2110 = vpop.f32.mrb[0].mxu0
  %v2111 = vadd.f32 0.0, %v2110
  %v2112 = vpop.f32.mrb[0].mxu0
  %2113 = vmatprep.mubr.f32.mxu0 0.0
  %2114 = vmatmul.mubr.f32.gmra.mrb[0].mxu0 %v2011
  %v2115 = vpop.f32.mrb[0].mxu0
  %v2116 = vadd.f32 0.0, %v2115
  %v2117 = vpop.f32.mrb[0].mxu0
  %2118 = vmatprep.mubr.f32.mxu0 0.0
  %2119 = vmatmul.mubr.f32.gmra.mrb[0].mxu0 %v2016
  %v2120 = vpop.f32.mrb[0].mxu0
  %v2121 = vadd.f32 0.0, %v2120
  %v2122 = vpop.f32.mrb[0].mxu0
  %2123 = vmatprep.mubr.f32.mxu0 0.0
  %2124 = vmatmul.mubr.f32.gmra.mrb[0].mxu0 %v2021
  %v2125 = vpop.f32.mrb[0].mxu0
  %v2126 = vadd.f32 0.0, %v2125
  %v2127 = vpop.f32.mrb[0].mxu0
  %2128 = vmatprep.mubr.f32.mxu0 0.0
  %2129 = vmatmul.mubr.f32.gmra.mrb[0].mxu0 %v2026
  %v2130 = vpop.f32.mrb[0].mxu0
  %v2131 = vadd.f32 0.0, %v2130
  %v2132 = vpop.f32.mrb[0].mxu0
  %2133 = vmatprep.mubr.f32.mxu0 0.0
  %2134 = vmatmul.mubr.f32.gmra.mrb[0].mxu0 %v2031
  %v2135 = vpop.f32.mrb[0].mxu0
  %v2136 = vadd.f32 0.0, %v2135
  %v2137 = vpop.f32.mrb[0].mxu0
  %2138 = vdwg.mxu0
  %v2139 = vsub.f32 %v1996, %v2101
  %v2140 = vsub.f32 %v2001, %v2106
  %v2141 = vsub.f32 %v2006, %v2111
  %v2142 = vsub.f32 %v2011, %v2116
  %v2143 = vsub.f32 %v2016, %v2121
  %v2144 = vsub.f32 %v2021, %v2126
  %v2145 = vsub.f32 %v2026, %v2131
  %v2146 = vsub.f32 %v2031, %v2136
  %v2147 = vmul.f32 %v2139, %v2139
  %v2148 = vmul.f32 %v2140, %v2140
  %v2149 = vmul.f32 %v2141, %v2141
  %v2150 = vmul.f32 %v2142, %v2142
  %v2151 = vmul.f32 %v2143, %v2143
  %v2152 = vmul.f32 %v2144, %v2144
  %v2153 = vmul.f32 %v2145, %v2145
  %v2154 = vmul.f32 %v2146, %v2146
  %2155 = vmatprep.subr.mxu0 0.0
  %2156 = vmatpush1.msra.mxu0 %v1308
  %2157 = vmatprep.subr.mxu0 0.0
  %2158 = vmatpush1.msra.mxu0 %v1309
  %2159 = vmatprep.subr.mxu0 0.0
  %2160 = vmatpush1.msra.mxu0 %v1310
  %2161 = vmatprep.subr.mxu0 0.0
  %2162 = vmatpush1.msra.mxu0 %v1311
  %2163 = vmatprep.subr.mxu0 0.0
  %2164 = vmatpush1.msra.mxu0 %v1312
  %2165 = vmatprep.subr.mxu0 0.0
  %2166 = vmatpush1.msra.mxu0 %v1313
  %2167 = vmatprep.subr.mxu0 0.0
  %2168 = vmatpush1.msra.mxu0 %v1314
  %2169 = vmatprep.subr.mxu0 0.0
  %2170 = vmatpush1.msra.mxu0 %v1315
  %2171 = vmatprep.subr.mxu0 0.0
  %2172 = vmatpush1.msra.mxu0 %v1316
  %2173 = vmatprep.subr.mxu0 0.0
  %2174 = vmatpush1.msra.mxu0 %v1317
  %2175 = vmatprep.subr.mxu0 0.0
  %2176 = vmatpush1.msra.mxu0 %v1318
  %2177 = vmatprep.subr.mxu0 0.0
  %2178 = vmatpush1.msra.mxu0 %v1319
  %2179 = vmatprep.subr.mxu0 0.0
  %2180 = vmatpush1.msra.mxu0 %v1320
  %2181 = vmatprep.subr.mxu0 0.0
  %2182 = vmatpush1.msra.mxu0 %v1321
  %2183 = vmatprep.subr.mxu0 0.0
  %2184 = vmatpush1.msra.mxu0 %v1322
  %2185 = vmatprep.subr.mxu0 0.0
  %2186 = vmatpush1.msra.mxu0 %v1323
  %2187 = vmatprep.subr.mxu0 0.0
  %2188 = vmatpush1.msra.mxu0 0.0
  %2189 = vmatprep.subr.mxu0 0.0
  %2190 = vmatpush1.msra.mxu0 0.0
  %2191 = vmatprep.subr.mxu0 0.0
  %2192 = vmatpush1.msra.mxu0 0.0
  %2193 = vmatprep.subr.mxu0 0.0
  %2194 = vmatpush1.msra.mxu0 0.0
  %2195 = vmatprep.subr.mxu0 0.0
  %2196 = vmatpush1.msra.mxu0 0.0
  %2197 = vmatprep.subr.mxu0 0.0
  %2198 = vmatpush1.msra.mxu0 0.0
  %2199 = vmatprep.subr.mxu0 0.0
  %2200 = vmatpush1.msra.mxu0 0.0
  %2201 = vmatprep.subr.mxu0 0.0
  %2202 = vmatpush1.msra.mxu0 0.0
  %2203 = vmatprep.subr.mxu0 0.0
  %2204 = vmatpush1.msra.mxu0 0.0
  %2205 = vmatprep.subr.mxu0 0.0
  %2206 = vmatpush1.msra.mxu0 0.0
  %2207 = vmatprep.subr.mxu0 0.0
  %2208 = vmatpush1.msra.mxu0 0.0
  %2209 = vmatprep.subr.mxu0 0.0
  %2210 = vmatpush1.msra.mxu0 0.0
  %2211 = vmatprep.subr.mxu0 0.0
  %2212 = vmatpush1.msra.mxu0 0.0
  %2213 = vmatprep.subr.mxu0 0.0
  %2214 = vmatpush1.msra.mxu0 0.0
  %2215 = vmatprep.subr.mxu0 0.0
  %2216 = vmatpush1.msra.mxu0 0.0
  %2217 = vmatprep.subr.mxu0 0.0
  %2218 = vmatpush1.msra.mxu0 0.0
  %2219 = vmatprep.mubr.f32.mxu0 0.0
  %2220 = vmatmul.mubr.f32.gmra.mrb[0].mxu0 %v2147
  %v2221 = vpop.f32.mrb[0].mxu0
  %v2222 = vadd.f32 1e-05, %v2221
  %v2223 = vpop.f32.mrb[0].mxu0
  %2224 = vmatprep.mubr.f32.mxu0 0.0
  %2225 = vmatmul.mubr.f32.gmra.mrb[0].mxu0 %v2148
  %v2226 = vpop.f32.mrb[0].mxu0
  %v2227 = vadd.f32 1e-05, %v2226
  %v2228 = vpop.f32.mrb[0].mxu0
  %2229 = vmatprep.mubr.f32.mxu0 0.0
  %2230 = vmatmul.mubr.f32.gmra.mrb[0].mxu0 %v2149
  %v2231 = vpop.f32.mrb[0].mxu0
  %v2232 = vadd.f32 1e-05, %v2231
  %v2233 = vpop.f32.mrb[0].mxu0
  %2234 = vmatprep.mubr.f32.mxu0 0.0
  %2235 = vmatmul.mubr.f32.gmra.mrb[0].mxu0 %v2150
  %v2236 = vpop.f32.mrb[0].mxu0
  %v2237 = vadd.f32 1e-05, %v2236
  %v2238 = vpop.f32.mrb[0].mxu0
  %2239 = vmatprep.mubr.f32.mxu0 0.0
  %2240 = vmatmul.mubr.f32.gmra.mrb[0].mxu0 %v2151
  %v2241 = vpop.f32.mrb[0].mxu0
  %v2242 = vadd.f32 1e-05, %v2241
  %v2243 = vpop.f32.mrb[0].mxu0
  %2244 = vmatprep.mubr.f32.mxu0 0.0
  %2245 = vmatmul.mubr.f32.gmra.mrb[0].mxu0 %v2152
  %v2246 = vpop.f32.mrb[0].mxu0
  %v2247 = vadd.f32 1e-05, %v2246
  %v2248 = vpop.f32.mrb[0].mxu0
  %2249 = vmatprep.mubr.f32.mxu0 0.0
  %2250 = vmatmul.mubr.f32.gmra.mrb[0].mxu0 %v2153
  %v2251 = vpop.f32.mrb[0].mxu0
  %v2252 = vadd.f32 1e-05, %v2251
  %v2253 = vpop.f32.mrb[0].mxu0
  %2254 = vmatprep.mubr.f32.mxu0 0.0
  %2255 = vmatmul.mubr.f32.gmra.mrb[0].mxu0 %v2154
  %v2256 = vpop.f32.mrb[0].mxu0
  %v2257 = vadd.f32 1e-05, %v2256
  %v2258 = vpop.f32.mrb[0].mxu0
  %2259 = vdwg.mxu0
  %v2260 = vrsqrt.pop %v2222
  %v2261 = vrsqrt.pop %v2227
  %v2262 = vrsqrt.pop %v2232
  %v2263 = vrsqrt.pop %v2237
  %v2264 = vrsqrt.pop %v2242
  %v2265 = vrsqrt.pop %v2247
  %v2266 = vrsqrt.pop %v2252
  %v2267 = vrsqrt.pop %v2257
  %v2268 = vmul.f32 %v2139, %v2260
  %v2269 = vmul.f32 %v2140, %v2261
  %v2270 = vmul.f32 %v2141, %v2262
  %v2271 = vmul.f32 %v2142, %v2263
  %v2272 = vmul.f32 %v2143, %v2264
  %v2273 = vmul.f32 %v2144, %v2265
  %v2274 = vmul.f32 %v2145, %v2266
  %v2275 = vmul.f32 %v2146, %v2267
  %v2276 = vld [vmem:[%s2 + $0xe] sm:$0x1]
  %v2277 = vlaneseq
  %v2278 = vshrl.u32 %v2277, 7
  %v2279 = vsub.s32 0, %v2278
  %v2280 = vrot.slane %v2276, %v2279
  %v2281 = vmul.f32 %v2268, %v2280
  %v2282 = vmul.f32 %v2269, %v2280
  %v2283 = vmul.f32 %v2270, %v2280
  %v2284 = vmul.f32 %v2271, %v2280
  %v2285 = vmul.f32 %v2272, %v2280
  %v2286 = vmul.f32 %v2273, %v2280
  %v2287 = vmul.f32 %v2274, %v2280
  %v2288 = vmul.f32 %v2275, %v2280
  %v2289 = vld [vmem:[%s2 + $0xf] sm:$0x1]
  %v2290 = vlaneseq
  %v2291 = vshrl.u32 %v2290, 7
  %v2292 = vsub.s32 0, %v2291
  %v2293 = vrot.slane %v2289, %v2292
  %v2294 = vadd.f32 %v2281, %v2293
  %v2295 = vadd.f32 %v2282, %v2293
  %v2296 = vadd.f32 %v2283, %v2293
  %v2297 = vadd.f32 %v2284, %v2293
  %v2298 = vadd.f32 %v2285, %v2293
  %v2299 = vadd.f32 %v2286, %v2293
  %v2300 = vadd.f32 %v2287, %v2293
  %v2301 = vadd.f32 %v2288, %v2293
  %vm2302 = vcmp.gt.f32.partialorder %v2294, 0.0
  %vm2303 = vcmp.gt.f32.partialorder %v2295, 0.0
  %vm2304 = vcmp.gt.f32.partialorder %v2296, 0.0
  %vm2305 = vcmp.gt.f32.partialorder %v2297, 0.0
  %vm2306 = vcmp.gt.f32.partialorder %v2298, 0.0
  %vm2307 = vcmp.gt.f32.partialorder %v2299, 0.0
  %vm2308 = vcmp.gt.f32.partialorder %v2300, 0.0
  %vm2309 = vcmp.gt.f32.partialorder %v2301, 0.0
  %v2310 = vmul.f32 %v2294, 0.2
  %v2311 = vmul.f32 %v2295, 0.2
  %v2312 = vmul.f32 %v2296, 0.2
  %v2313 = vmul.f32 %v2297, 0.2
  %v2314 = vmul.f32 %v2298, 0.2
  %v2315 = vmul.f32 %v2299, 0.2
  %v2316 = vmul.f32 %v2300, 0.2
  %v2317 = vmul.f32 %v2301, 0.2
  %v2318 = vsel %vm2302, %v2294, %v2310
  %v2319 = vsel %vm2303, %v2295, %v2311
  %v2320 = vsel %vm2304, %v2296, %v2312
  %v2321 = vsel %vm2305, %v2297, %v2313
  %v2322 = vsel %vm2306, %v2298, %v2314
  %v2323 = vsel %vm2307, %v2299, %v2315
  %v2324 = vsel %vm2308, %v2300, %v2316
  %v2325 = vsel %vm2309, %v2301, %v2317
  %v2326 = vld [vmem:[%s1 + $0x400] sm:$0xff]
  %v2327 = vld [vmem:[%s1 + $0x408] sm:$0xff]
  %v2328 = vld [vmem:[%s1 + $0x410] sm:$0xff]
  %v2329 = vld [vmem:[%s1 + $0x418] sm:$0xff]
  %v2330 = vld [vmem:[%s1 + $0x420] sm:$0xff]
  %v2331 = vld [vmem:[%s1 + $0x428] sm:$0xff]
  %v2332 = vld [vmem:[%s1 + $0x430] sm:$0xff]
  %v2333 = vld [vmem:[%s1 + $0x438] sm:$0xff]
  %v2334 = vld [vmem:[%s1 + $0x440] sm:$0xff]
  %v2335 = vld [vmem:[%s1 + $0x448] sm:$0xff]
  %v2336 = vld [vmem:[%s1 + $0x450] sm:$0xff]
  %v2337 = vld [vmem:[%s1 + $0x458] sm:$0xff]
  %v2338 = vld [vmem:[%s1 + $0x460] sm:$0xff]
  %v2339 = vld [vmem:[%s1 + $0x468] sm:$0xff]
  %v2340 = vld [vmem:[%s1 + $0x470] sm:$0xff]
  %v2341 = vld [vmem:[%s1 + $0x478] sm:$0xff]
  %v2342 = vld [vmem:[%s2 + $0x10] sm:$0x1]
  %v2343 = vlaneseq
  %v2344 = vshrl.u32 %v2343, 7
  %v2345 = vsub.s32 0, %v2344
  %v2346 = vrot.slane %v2342, %v2345
  %2347 = vmatprep.subr.mxu0 0.0
  %2348 = vmatpush1.msra.mxu0 %v2326
  %2349 = vmatprep.subr.mxu0 0.0
  %2350 = vmatpush1.msra.mxu0 %v2327
  %2351 = vmatprep.subr.mxu0 0.0
  %2352 = vmatpush1.msra.mxu0 %v2328
  %2353 = vmatprep.subr.mxu0 0.0
  %2354 = vmatpush1.msra.mxu0 %v2329
  %2355 = vmatprep.subr.mxu0 0.0
  %2356 = vmatpush1.msra.mxu0 %v2330
  %2357 = vmatprep.subr.mxu0 0.0
  %2358 = vmatpush1.msra.mxu0 %v2331
  %2359 = vmatprep.subr.mxu0 0.0
  %2360 = vmatpush1.msra.mxu0 %v2332
  %2361 = vmatprep.subr.mxu0 0.0
  %2362 = vmatpush1.msra.mxu0 %v2333
  %2363 = vmatprep.subr.mxu0 0.0
  %2364 = vmatpush1.msra.mxu0 %v2334
  %2365 = vmatprep.subr.mxu0 0.0
  %2366 = vmatpush1.msra.mxu0 %v2335
  %2367 = vmatprep.subr.mxu0 0.0
  %2368 = vmatpush1.msra.mxu0 %v2336
  %2369 = vmatprep.subr.mxu0 0.0
  %2370 = vmatpush1.msra.mxu0 %v2337
  %2371 = vmatprep.subr.mxu0 0.0
  %2372 = vmatpush1.msra.mxu0 %v2338
  %2373 = vmatprep.subr.mxu0 0.0
  %2374 = vmatpush1.msra.mxu0 %v2339
  %2375 = vmatprep.subr.mxu0 0.0
  %2376 = vmatpush1.msra.mxu0 %v2340
  %2377 = vmatprep.subr.mxu0 0.0
  %2378 = vmatpush1.msra.mxu0 %v2341
  %2379 = vmatprep.subr.mxu0 0.0
  %2380 = vmatpush1.msra.mxu0 0.0
  %2381 = vmatprep.subr.mxu0 0.0
  %2382 = vmatpush1.msra.mxu0 0.0
  %2383 = vmatprep.subr.mxu0 0.0
  %2384 = vmatpush1.msra.mxu0 0.0
  %2385 = vmatprep.subr.mxu0 0.0
  %2386 = vmatpush1.msra.mxu0 0.0
  %2387 = vmatprep.subr.mxu0 0.0
  %2388 = vmatpush1.msra.mxu0 0.0
  %2389 = vmatprep.subr.mxu0 0.0
  %2390 = vmatpush1.msra.mxu0 0.0
  %2391 = vmatprep.subr.mxu0 0.0
  %2392 = vmatpush1.msra.mxu0 0.0
  %2393 = vmatprep.subr.mxu0 0.0
  %2394 = vmatpush1.msra.mxu0 0.0
  %2395 = vmatprep.subr.mxu0 0.0
  %2396 = vmatpush1.msra.mxu0 0.0
  %2397 = vmatprep.subr.mxu0 0.0
  %2398 = vmatpush1.msra.mxu0 0.0
  %2399 = vmatprep.subr.mxu0 0.0
  %2400 = vmatpush1.msra.mxu0 0.0
  %2401 = vmatprep.subr.mxu0 0.0
  %2402 = vmatpush1.msra.mxu0 0.0
  %2403 = vmatprep.subr.mxu0 0.0
  %2404 = vmatpush1.msra.mxu0 0.0
  %2405 = vmatprep.subr.mxu0 0.0
  %2406 = vmatpush1.msra.mxu0 0.0
  %2407 = vmatprep.subr.mxu0 0.0
  %2408 = vmatpush1.msra.mxu0 0.0
  %2409 = vmatprep.subr.mxu0 0.0
  %2410 = vmatpush1.msra.mxu0 0.0
  %2411 = vmatprep.mubr.f32.mxu0 0.0
  %2412 = vmatmul.mubr.f32.gmra.mrb[0].mxu0 %v2318
  %v2413 = vpop.f32.mrb[0].mxu0
  %v2414 = vadd.f32 %v2346, %v2413
  %v2415 = vpop.f32.mrb[0].mxu0
  %2416 = vmatprep.mubr.f32.mxu0 0.0
  %2417 = vmatmul.mubr.f32.gmra.mrb[0].mxu0 %v2319
  %v2418 = vpop.f32.mrb[0].mxu0
  %v2419 = vadd.f32 %v2346, %v2418
  %v2420 = vpop.f32.mrb[0].mxu0
  %2421 = vmatprep.mubr.f32.mxu0 0.0
  %2422 = vmatmul.mubr.f32.gmra.mrb[0].mxu0 %v2320
  %v2423 = vpop.f32.mrb[0].mxu0
  %v2424 = vadd.f32 %v2346, %v2423
  %v2425 = vpop.f32.mrb[0].mxu0
  %2426 = vmatprep.mubr.f32.mxu0 0.0
  %2427 = vmatmul.mubr.f32.gmra.mrb[0].mxu0 %v2321
  %v2428 = vpop.f32.mrb[0].mxu0
  %v2429 = vadd.f32 %v2346, %v2428
  %v2430 = vpop.f32.mrb[0].mxu0
  %2431 = vmatprep.mubr.f32.mxu0 0.0
  %2432 = vmatmul.mubr.f32.gmra.mrb[0].mxu0 %v2322
  %v2433 = vpop.f32.mrb[0].mxu0
  %v2434 = vadd.f32 %v2346, %v2433
  %v2435 = vpop.f32.mrb[0].mxu0
  %2436 = vmatprep.mubr.f32.mxu0 0.0
  %2437 = vmatmul.mubr.f32.gmra.mrb[0].mxu0 %v2323
  %v2438 = vpop.f32.mrb[0].mxu0
  %v2439 = vadd.f32 %v2346, %v2438
  %v2440 = vpop.f32.mrb[0].mxu0
  %2441 = vmatprep.mubr.f32.mxu0 0.0
  %2442 = vmatmul.mubr.f32.gmra.mrb[0].mxu0 %v2324
  %v2443 = vpop.f32.mrb[0].mxu0
  %v2444 = vadd.f32 %v2346, %v2443
  %v2445 = vpop.f32.mrb[0].mxu0
  %2446 = vmatprep.mubr.f32.mxu0 0.0
  %2447 = vmatmul.mubr.f32.gmra.mrb[0].mxu0 %v2325
  %v2448 = vpop.f32.mrb[0].mxu0
  %v2449 = vadd.f32 %v2346, %v2448
  %v2450 = vpop.f32.mrb[0].mxu0
  %2451 = vdwg.mxu0
  %2452 = vmatprep.subr.mxu0 0.0
  %2453 = vmatpush1.msra.mxu0 %v156
  %2454 = vmatprep.subr.mxu0 0.0
  %2455 = vmatpush1.msra.mxu0 %v157
  %2456 = vmatprep.subr.mxu0 0.0
  %2457 = vmatpush1.msra.mxu0 %v158
  %2458 = vmatprep.subr.mxu0 0.0
  %2459 = vmatpush1.msra.mxu0 %v159
  %2460 = vmatprep.subr.mxu0 0.0
  %2461 = vmatpush1.msra.mxu0 %v160
  %2462 = vmatprep.subr.mxu0 0.0
  %2463 = vmatpush1.msra.mxu0 %v161
  %2464 = vmatprep.subr.mxu0 0.0
  %2465 = vmatpush1.msra.mxu0 %v162
  %2466 = vmatprep.subr.mxu0 0.0
  %2467 = vmatpush1.msra.mxu0 %v163
  %2468 = vmatprep.subr.mxu0 0.0
  %2469 = vmatpush1.msra.mxu0 %v164
  %2470 = vmatprep.subr.mxu0 0.0
  %2471 = vmatpush1.msra.mxu0 %v165
  %2472 = vmatprep.subr.mxu0 0.0
  %2473 = vmatpush1.msra.mxu0 %v166
  %2474 = vmatprep.subr.mxu0 0.0
  %2475 = vmatpush1.msra.mxu0 %v167
  %2476 = vmatprep.subr.mxu0 0.0
  %2477 = vmatpush1.msra.mxu0 %v168
  %2478 = vmatprep.subr.mxu0 0.0
  %2479 = vmatpush1.msra.mxu0 %v169
  %2480 = vmatprep.subr.mxu0 0.0
  %2481 = vmatpush1.msra.mxu0 %v170
  %2482 = vmatprep.subr.mxu0 0.0
  %2483 = vmatpush1.msra.mxu0 %v171
  %2484 = vmatprep.subr.mxu0 0.0
  %2485 = vmatpush1.msra.mxu0 0.0
  %2486 = vmatprep.subr.mxu0 0.0
  %2487 = vmatpush1.msra.mxu0 0.0
  %2488 = vmatprep.subr.mxu0 0.0
  %2489 = vmatpush1.msra.mxu0 0.0
  %2490 = vmatprep.subr.mxu0 0.0
  %2491 = vmatpush1.msra.mxu0 0.0
  %2492 = vmatprep.subr.mxu0 0.0
  %2493 = vmatpush1.msra.mxu0 0.0
  %2494 = vmatprep.subr.mxu0 0.0
  %2495 = vmatpush1.msra.mxu0 0.0
  %2496 = vmatprep.subr.mxu0 0.0
  %2497 = vmatpush1.msra.mxu0 0.0
  %2498 = vmatprep.subr.mxu0 0.0
  %2499 = vmatpush1.msra.mxu0 0.0
  %2500 = vmatprep.subr.mxu0 0.0
  %2501 = vmatpush1.msra.mxu0 0.0
  %2502 = vmatprep.subr.mxu0 0.0
  %2503 = vmatpush1.msra.mxu0 0.0
  %2504 = vmatprep.subr.mxu0 0.0
  %2505 = vmatpush1.msra.mxu0 0.0
  %2506 = vmatprep.subr.mxu0 0.0
  %2507 = vmatpush1.msra.mxu0 0.0
  %2508 = vmatprep.subr.mxu0 0.0
  %2509 = vmatpush1.msra.mxu0 0.0
  %2510 = vmatprep.subr.mxu0 0.0
  %2511 = vmatpush1.msra.mxu0 0.0
  %2512 = vmatprep.subr.mxu0 0.0
  %2513 = vmatpush1.msra.mxu0 0.0
  %2514 = vmatprep.subr.mxu0 0.0
  %2515 = vmatpush1.msra.mxu0 0.0
  %2516 = vmatprep.mubr.f32.mxu0 0.0
  %2517 = vmatmul.mubr.f32.gmra.mrb[0].mxu0 %v2414
  %v2518 = vpop.f32.mrb[0].mxu0
  %v2519 = vadd.f32 0.0, %v2518
  %v2520 = vpop.f32.mrb[0].mxu0
  %2521 = vmatprep.mubr.f32.mxu0 0.0
  %2522 = vmatmul.mubr.f32.gmra.mrb[0].mxu0 %v2419
  %v2523 = vpop.f32.mrb[0].mxu0
  %v2524 = vadd.f32 0.0, %v2523
  %v2525 = vpop.f32.mrb[0].mxu0
  %2526 = vmatprep.mubr.f32.mxu0 0.0
  %2527 = vmatmul.mubr.f32.gmra.mrb[0].mxu0 %v2424
  %v2528 = vpop.f32.mrb[0].mxu0
  %v2529 = vadd.f32 0.0, %v2528
  %v2530 = vpop.f32.mrb[0].mxu0
  %2531 = vmatprep.mubr.f32.mxu0 0.0
  %2532 = vmatmul.mubr.f32.gmra.mrb[0].mxu0 %v2429
  %v2533 = vpop.f32.mrb[0].mxu0
  %v2534 = vadd.f32 0.0, %v2533
  %v2535 = vpop.f32.mrb[0].mxu0
  %2536 = vmatprep.mubr.f32.mxu0 0.0
  %2537 = vmatmul.mubr.f32.gmra.mrb[0].mxu0 %v2434
  %v2538 = vpop.f32.mrb[0].mxu0
  %v2539 = vadd.f32 0.0, %v2538
  %v2540 = vpop.f32.mrb[0].mxu0
  %2541 = vmatprep.mubr.f32.mxu0 0.0
  %2542 = vmatmul.mubr.f32.gmra.mrb[0].mxu0 %v2439
  %v2543 = vpop.f32.mrb[0].mxu0
  %v2544 = vadd.f32 0.0, %v2543
  %v2545 = vpop.f32.mrb[0].mxu0
  %2546 = vmatprep.mubr.f32.mxu0 0.0
  %2547 = vmatmul.mubr.f32.gmra.mrb[0].mxu0 %v2444
  %v2548 = vpop.f32.mrb[0].mxu0
  %v2549 = vadd.f32 0.0, %v2548
  %v2550 = vpop.f32.mrb[0].mxu0
  %2551 = vmatprep.mubr.f32.mxu0 0.0
  %2552 = vmatmul.mubr.f32.gmra.mrb[0].mxu0 %v2449
  %v2553 = vpop.f32.mrb[0].mxu0
  %v2554 = vadd.f32 0.0, %v2553
  %v2555 = vpop.f32.mrb[0].mxu0
  %2556 = vdwg.mxu0
  %v2557 = vsub.f32 %v2414, %v2519
  %v2558 = vsub.f32 %v2419, %v2524
  %v2559 = vsub.f32 %v2424, %v2529
  %v2560 = vsub.f32 %v2429, %v2534
  %v2561 = vsub.f32 %v2434, %v2539
  %v2562 = vsub.f32 %v2439, %v2544
  %v2563 = vsub.f32 %v2444, %v2549
  %v2564 = vsub.f32 %v2449, %v2554
  %v2565 = vmul.f32 %v2557, %v2557
  %v2566 = vmul.f32 %v2558, %v2558
  %v2567 = vmul.f32 %v2559, %v2559
  %v2568 = vmul.f32 %v2560, %v2560
  %v2569 = vmul.f32 %v2561, %v2561
  %v2570 = vmul.f32 %v2562, %v2562
  %v2571 = vmul.f32 %v2563, %v2563
  %v2572 = vmul.f32 %v2564, %v2564
  %2573 = vmatprep.subr.mxu0 0.0
  %2574 = vmatpush1.msra.mxu0 %v156
  %2575 = vmatprep.subr.mxu0 0.0
  %2576 = vmatpush1.msra.mxu0 %v157
  %2577 = vmatprep.subr.mxu0 0.0
  %2578 = vmatpush1.msra.mxu0 %v158
  %2579 = vmatprep.subr.mxu0 0.0
  %2580 = vmatpush1.msra.mxu0 %v159
  %2581 = vmatprep.subr.mxu0 0.0
  %2582 = vmatpush1.msra.mxu0 %v160
  %2583 = vmatprep.subr.mxu0 0.0
  %2584 = vmatpush1.msra.mxu0 %v161
  %2585 = vmatprep.subr.mxu0 0.0
  %2586 = vmatpush1.msra.mxu0 %v162
  %2587 = vmatprep.subr.mxu0 0.0
  %2588 = vmatpush1.msra.mxu0 %v163
  %2589 = vmatprep.subr.mxu0 0.0
  %2590 = vmatpush1.msra.mxu0 %v164
  %2591 = vmatprep.subr.mxu0 0.0
  %2592 = vmatpush1.msra.mxu0 %v165
  %2593 = vmatprep.subr.mxu0 0.0
  %2594 = vmatpush1.msra.mxu0 %v166
  %2595 = vmatprep.subr.mxu0 0.0
  %2596 = vmatpush1.msra.mxu0 %v167
  %2597 = vmatprep.subr.mxu0 0.0
  %2598 = vmatpush1.msra.mxu0 %v168
  %2599 = vmatprep.subr.mxu0 0.0
  %2600 = vmatpush1.msra.mxu0 %v169
  %2601 = vmatprep.subr.mxu0 0.0
  %2602 = vmatpush1.msra.mxu0 %v170
  %2603 = vmatprep.subr.mxu0 0.0
  %2604 = vmatpush1.msra.mxu0 %v171
  %2605 = vmatprep.subr.mxu0 0.0
  %2606 = vmatpush1.msra.mxu0 0.0
  %2607 = vmatprep.subr.mxu0 0.0
  %2608 = vmatpush1.msra.mxu0 0.0
  %2609 = vmatprep.subr.mxu0 0.0
  %2610 = vmatpush1.msra.mxu0 0.0
  %2611 = vmatprep.subr.mxu0 0.0
  %2612 = vmatpush1.msra.mxu0 0.0
  %2613 = vmatprep.subr.mxu0 0.0
  %2614 = vmatpush1.msra.mxu0 0.0
  %2615 = vmatprep.subr.mxu0 0.0
  %2616 = vmatpush1.msra.mxu0 0.0
  %2617 = vmatprep.subr.mxu0 0.0
  %2618 = vmatpush1.msra.mxu0 0.0
  %2619 = vmatprep.subr.mxu0 0.0
  %2620 = vmatpush1.msra.mxu0 0.0
  %2621 = vmatprep.subr.mxu0 0.0
  %2622 = vmatpush1.msra.mxu0 0.0
  %2623 = vmatprep.subr.mxu0 0.0
  %2624 = vmatpush1.msra.mxu0 0.0
  %2625 = vmatprep.subr.mxu0 0.0
  %2626 = vmatpush1.msra.mxu0 0.0
  %2627 = vmatprep.subr.mxu0 0.0
  %2628 = vmatpush1.msra.mxu0 0.0
  %2629 = vmatprep.subr.mxu0 0.0
  %2630 = vmatpush1.msra.mxu0 0.0
  %2631 = vmatprep.subr.mxu0 0.0
  %2632 = vmatpush1.msra.mxu0 0.0
  %2633 = vmatprep.subr.mxu0 0.0
  %2634 = vmatpush1.msra.mxu0 0.0
  %2635 = vmatprep.subr.mxu0 0.0
  %2636 = vmatpush1.msra.mxu0 0.0
  %2637 = vmatprep.mubr.f32.mxu0 0.0
  %2638 = vmatmul.mubr.f32.gmra.mrb[0].mxu0 %v2565
  %v2639 = vpop.f32.mrb[0].mxu0
  %v2640 = vadd.f32 1e-05, %v2639
  %v2641 = vpop.f32.mrb[0].mxu0
  %2642 = vmatprep.mubr.f32.mxu0 0.0
  %2643 = vmatmul.mubr.f32.gmra.mrb[0].mxu0 %v2566
  %v2644 = vpop.f32.mrb[0].mxu0
  %v2645 = vadd.f32 1e-05, %v2644
  %v2646 = vpop.f32.mrb[0].mxu0
  %2647 = vmatprep.mubr.f32.mxu0 0.0
  %2648 = vmatmul.mubr.f32.gmra.mrb[0].mxu0 %v2567
  %v2649 = vpop.f32.mrb[0].mxu0
  %v2650 = vadd.f32 1e-05, %v2649
  %v2651 = vpop.f32.mrb[0].mxu0
  %2652 = vmatprep.mubr.f32.mxu0 0.0
  %2653 = vmatmul.mubr.f32.gmra.mrb[0].mxu0 %v2568
  %v2654 = vpop.f32.mrb[0].mxu0
  %v2655 = vadd.f32 1e-05, %v2654
  %v2656 = vpop.f32.mrb[0].mxu0
  %2657 = vmatprep.mubr.f32.mxu0 0.0
  %2658 = vmatmul.mubr.f32.gmra.mrb[0].mxu0 %v2569
  %v2659 = vpop.f32.mrb[0].mxu0
  %v2660 = vadd.f32 1e-05, %v2659
  %v2661 = vpop.f32.mrb[0].mxu0
  %2662 = vmatprep.mubr.f32.mxu0 0.0
  %2663 = vmatmul.mubr.f32.gmra.mrb[0].mxu0 %v2570
  %v2664 = vpop.f32.mrb[0].mxu0
  %v2665 = vadd.f32 1e-05, %v2664
  %v2666 = vpop.f32.mrb[0].mxu0
  %2667 = vmatprep.mubr.f32.mxu0 0.0
  %2668 = vmatmul.mubr.f32.gmra.mrb[0].mxu0 %v2571
  %v2669 = vpop.f32.mrb[0].mxu0
  %v2670 = vadd.f32 1e-05, %v2669
  %v2671 = vpop.f32.mrb[0].mxu0
  %2672 = vmatprep.mubr.f32.mxu0 0.0
  %2673 = vmatmul.mubr.f32.gmra.mrb[0].mxu0 %v2572
  %v2674 = vpop.f32.mrb[0].mxu0
  %v2675 = vadd.f32 1e-05, %v2674
  %v2676 = vpop.f32.mrb[0].mxu0
  %2677 = vdwg.mxu0
  %v2678 = vrsqrt.pop %v2640
  %v2679 = vrsqrt.pop %v2645
  %v2680 = vrsqrt.pop %v2650
  %v2681 = vrsqrt.pop %v2655
  %v2682 = vrsqrt.pop %v2660
  %v2683 = vrsqrt.pop %v2665
  %v2684 = vrsqrt.pop %v2670
  %v2685 = vrsqrt.pop %v2675
  %v2686 = vmul.f32 %v2557, %v2678
  %v2687 = vmul.f32 %v2558, %v2679
  %v2688 = vmul.f32 %v2559, %v2680
  %v2689 = vmul.f32 %v2560, %v2681
  %v2690 = vmul.f32 %v2561, %v2682
  %v2691 = vmul.f32 %v2562, %v2683
  %v2692 = vmul.f32 %v2563, %v2684
  %v2693 = vmul.f32 %v2564, %v2685
  %v2694 = vld [vmem:[%s2 + $0x11] sm:$0x1]
  %v2695 = vlaneseq
  %v2696 = vshrl.u32 %v2695, 7
  %v2697 = vsub.s32 0, %v2696
  %v2698 = vrot.slane %v2694, %v2697
  %v2699 = vmul.f32 %v2686, %v2698
  %v2700 = vmul.f32 %v2687, %v2698
  %v2701 = vmul.f32 %v2688, %v2698
  %v2702 = vmul.f32 %v2689, %v2698
  %v2703 = vmul.f32 %v2690, %v2698
  %v2704 = vmul.f32 %v2691, %v2698
  %v2705 = vmul.f32 %v2692, %v2698
  %v2706 = vmul.f32 %v2693, %v2698
  %v2707 = vld [vmem:[%s2 + $0x12] sm:$0x1]
  %v2708 = vlaneseq
  %v2709 = vshrl.u32 %v2708, 7
  %v2710 = vsub.s32 0, %v2709
  %v2711 = vrot.slane %v2707, %v2710
  %v2712 = vadd.f32 %v2699, %v2711
  %v2713 = vadd.f32 %v2700, %v2711
  %v2714 = vadd.f32 %v2701, %v2711
  %v2715 = vadd.f32 %v2702, %v2711
  %v2716 = vadd.f32 %v2703, %v2711
  %v2717 = vadd.f32 %v2704, %v2711
  %v2718 = vadd.f32 %v2705, %v2711
  %v2719 = vadd.f32 %v2706, %v2711
  %vm2720 = vcmp.gt.f32.partialorder %v2712, 0.0
  %vm2721 = vcmp.gt.f32.partialorder %v2713, 0.0
  %vm2722 = vcmp.gt.f32.partialorder %v2714, 0.0
  %vm2723 = vcmp.gt.f32.partialorder %v2715, 0.0
  %vm2724 = vcmp.gt.f32.partialorder %v2716, 0.0
  %vm2725 = vcmp.gt.f32.partialorder %v2717, 0.0
  %vm2726 = vcmp.gt.f32.partialorder %v2718, 0.0
  %vm2727 = vcmp.gt.f32.partialorder %v2719, 0.0
  %v2728 = vmul.f32 %v2712, 0.2
  %v2729 = vmul.f32 %v2713, 0.2
  %v2730 = vmul.f32 %v2714, 0.2
  %v2731 = vmul.f32 %v2715, 0.2
  %v2732 = vmul.f32 %v2716, 0.2
  %v2733 = vmul.f32 %v2717, 0.2
  %v2734 = vmul.f32 %v2718, 0.2
  %v2735 = vmul.f32 %v2719, 0.2
  %v2736 = vsel %vm2720, %v2712, %v2728
  %v2737 = vsel %vm2721, %v2713, %v2729
  %v2738 = vsel %vm2722, %v2714, %v2730
  %v2739 = vsel %vm2723, %v2715, %v2731
  %v2740 = vsel %vm2724, %v2716, %v2732
  %v2741 = vsel %vm2725, %v2717, %v2733
  %v2742 = vsel %vm2726, %v2718, %v2734
  %v2743 = vsel %vm2727, %v2719, %v2735
  %v2744 = vld [vmem:[%s1 + $0x480] sm:$0xff]
  %v2745 = vld [vmem:[%s1 + $0x488] sm:$0xff]
  %v2746 = vld [vmem:[%s1 + $0x490] sm:$0xff]
  %v2747 = vld [vmem:[%s1 + $0x498] sm:$0xff]
  %v2748 = vld [vmem:[%s1 + $0x4a0] sm:$0xff]
  %v2749 = vld [vmem:[%s1 + $0x4a8] sm:$0xff]
  %v2750 = vld [vmem:[%s1 + $0x4b0] sm:$0xff]
  %v2751 = vld [vmem:[%s1 + $0x4b8] sm:$0xff]
  %v2752 = vld [vmem:[%s1 + $0x4c0] sm:$0xff]
  %v2753 = vld [vmem:[%s1 + $0x4c8] sm:$0xff]
  %v2754 = vld [vmem:[%s1 + $0x4d0] sm:$0xff]
  %v2755 = vld [vmem:[%s1 + $0x4d8] sm:$0xff]
  %v2756 = vld [vmem:[%s1 + $0x4e0] sm:$0xff]
  %v2757 = vld [vmem:[%s1 + $0x4e8] sm:$0xff]
  %v2758 = vld [vmem:[%s1 + $0x4f0] sm:$0xff]
  %v2759 = vld [vmem:[%s1 + $0x4f8] sm:$0xff]
  %v2760 = vld [vmem:[%s2 + $0x13] sm:$0x1]
  %v2761 = vlaneseq
  %v2762 = vshrl.u32 %v2761, 7
  %v2763 = vsub.s32 0, %v2762
  %v2764 = vrot.slane %v2760, %v2763
  %2765 = vmatprep.subr.mxu0 0.0
  %2766 = vmatpush1.msra.mxu0 %v2744
  %2767 = vmatprep.subr.mxu0 0.0
  %2768 = vmatpush1.msra.mxu0 %v2745
  %2769 = vmatprep.subr.mxu0 0.0
  %2770 = vmatpush1.msra.mxu0 %v2746
  %2771 = vmatprep.subr.mxu0 0.0
  %2772 = vmatpush1.msra.mxu0 %v2747
  %2773 = vmatprep.subr.mxu0 0.0
  %2774 = vmatpush1.msra.mxu0 %v2748
  %2775 = vmatprep.subr.mxu0 0.0
  %2776 = vmatpush1.msra.mxu0 %v2749
  %2777 = vmatprep.subr.mxu0 0.0
  %2778 = vmatpush1.msra.mxu0 %v2750
  %2779 = vmatprep.subr.mxu0 0.0
  %2780 = vmatpush1.msra.mxu0 %v2751
  %2781 = vmatprep.subr.mxu0 0.0
  %2782 = vmatpush1.msra.mxu0 %v2752
  %2783 = vmatprep.subr.mxu0 0.0
  %2784 = vmatpush1.msra.mxu0 %v2753
  %2785 = vmatprep.subr.mxu0 0.0
  %2786 = vmatpush1.msra.mxu0 %v2754
  %2787 = vmatprep.subr.mxu0 0.0
  %2788 = vmatpush1.msra.mxu0 %v2755
  %2789 = vmatprep.subr.mxu0 0.0
  %2790 = vmatpush1.msra.mxu0 %v2756
  %2791 = vmatprep.subr.mxu0 0.0
  %2792 = vmatpush1.msra.mxu0 %v2757
  %2793 = vmatprep.subr.mxu0 0.0
  %2794 = vmatpush1.msra.mxu0 %v2758
  %2795 = vmatprep.subr.mxu0 0.0
  %2796 = vmatpush1.msra.mxu0 %v2759
  %2797 = vmatprep.subr.mxu0 0.0
  %2798 = vmatpush1.msra.mxu0 0.0
  %2799 = vmatprep.subr.mxu0 0.0
  %2800 = vmatpush1.msra.mxu0 0.0
  %2801 = vmatprep.subr.mxu0 0.0
  %2802 = vmatpush1.msra.mxu0 0.0
  %2803 = vmatprep.subr.mxu0 0.0
  %2804 = vmatpush1.msra.mxu0 0.0
  %2805 = vmatprep.subr.mxu0 0.0
  %2806 = vmatpush1.msra.mxu0 0.0
  %2807 = vmatprep.subr.mxu0 0.0
  %2808 = vmatpush1.msra.mxu0 0.0
  %2809 = vmatprep.subr.mxu0 0.0
  %2810 = vmatpush1.msra.mxu0 0.0
  %2811 = vmatprep.subr.mxu0 0.0
  %2812 = vmatpush1.msra.mxu0 0.0
  %2813 = vmatprep.subr.mxu0 0.0
  %2814 = vmatpush1.msra.mxu0 0.0
  %2815 = vmatprep.subr.mxu0 0.0
  %2816 = vmatpush1.msra.mxu0 0.0
  %2817 = vmatprep.subr.mxu0 0.0
  %2818 = vmatpush1.msra.mxu0 0.0
  %2819 = vmatprep.subr.mxu0 0.0
  %2820 = vmatpush1.msra.mxu0 0.0
  %2821 = vmatprep.subr.mxu0 0.0
  %2822 = vmatpush1.msra.mxu0 0.0
  %2823 = vmatprep.subr.mxu0 0.0
  %2824 = vmatpush1.msra.mxu0 0.0
  %2825 = vmatprep.subr.mxu0 0.0
  %2826 = vmatpush1.msra.mxu0 0.0
  %2827 = vmatprep.subr.mxu0 0.0
  %2828 = vmatpush1.msra.mxu0 0.0
  %2829 = vmatprep.mubr.f32.mxu0 0.0
  %2830 = vmatmul.mubr.f32.gmra.mrb[0].mxu0 %v2736
  %v2831 = vpop.f32.mrb[0].mxu0
  %v2832 = vadd.f32 %v2764, %v2831
  %v2833 = vpop.f32.mrb[0].mxu0
  %2834 = vmatprep.mubr.f32.mxu0 0.0
  %2835 = vmatmul.mubr.f32.gmra.mrb[0].mxu0 %v2737
  %v2836 = vpop.f32.mrb[0].mxu0
  %v2837 = vadd.f32 %v2764, %v2836
  %v2838 = vpop.f32.mrb[0].mxu0
  %2839 = vmatprep.mubr.f32.mxu0 0.0
  %2840 = vmatmul.mubr.f32.gmra.mrb[0].mxu0 %v2738
  %v2841 = vpop.f32.mrb[0].mxu0
  %v2842 = vadd.f32 %v2764, %v2841
  %v2843 = vpop.f32.mrb[0].mxu0
  %2844 = vmatprep.mubr.f32.mxu0 0.0
  %2845 = vmatmul.mubr.f32.gmra.mrb[0].mxu0 %v2739
  %v2846 = vpop.f32.mrb[0].mxu0
  %v2847 = vadd.f32 %v2764, %v2846
  %v2848 = vpop.f32.mrb[0].mxu0
  %2849 = vmatprep.mubr.f32.mxu0 0.0
  %2850 = vmatmul.mubr.f32.gmra.mrb[0].mxu0 %v2740
  %v2851 = vpop.f32.mrb[0].mxu0
  %v2852 = vadd.f32 %v2764, %v2851
  %v2853 = vpop.f32.mrb[0].mxu0
  %2854 = vmatprep.mubr.f32.mxu0 0.0
  %2855 = vmatmul.mubr.f32.gmra.mrb[0].mxu0 %v2741
  %v2856 = vpop.f32.mrb[0].mxu0
  %v2857 = vadd.f32 %v2764, %v2856
  %v2858 = vpop.f32.mrb[0].mxu0
  %2859 = vmatprep.mubr.f32.mxu0 0.0
  %2860 = vmatmul.mubr.f32.gmra.mrb[0].mxu0 %v2742
  %v2861 = vpop.f32.mrb[0].mxu0
  %v2862 = vadd.f32 %v2764, %v2861
  %v2863 = vpop.f32.mrb[0].mxu0
  %2864 = vmatprep.mubr.f32.mxu0 0.0
  %2865 = vmatmul.mubr.f32.gmra.mrb[0].mxu0 %v2743
  %v2866 = vpop.f32.mrb[0].mxu0
  %v2867 = vadd.f32 %v2764, %v2866
  %v2868 = vpop.f32.mrb[0].mxu0
  %2869 = vdwg.mxu0
  %2870 = vmatprep.subr.mxu0 0.0
  %2871 = vmatpush1.msra.mxu0 %v156
  %2872 = vmatprep.subr.mxu0 0.0
  %2873 = vmatpush1.msra.mxu0 %v157
  %2874 = vmatprep.subr.mxu0 0.0
  %2875 = vmatpush1.msra.mxu0 %v158
  %2876 = vmatprep.subr.mxu0 0.0
  %2877 = vmatpush1.msra.mxu0 %v159
  %2878 = vmatprep.subr.mxu0 0.0
  %2879 = vmatpush1.msra.mxu0 %v160
  %2880 = vmatprep.subr.mxu0 0.0
  %2881 = vmatpush1.msra.mxu0 %v161
  %2882 = vmatprep.subr.mxu0 0.0
  %2883 = vmatpush1.msra.mxu0 %v162
  %2884 = vmatprep.subr.mxu0 0.0
  %2885 = vmatpush1.msra.mxu0 %v163
  %2886 = vmatprep.subr.mxu0 0.0
  %2887 = vmatpush1.msra.mxu0 %v164
  %2888 = vmatprep.subr.mxu0 0.0
  %2889 = vmatpush1.msra.mxu0 %v165
  %2890 = vmatprep.subr.mxu0 0.0
  %2891 = vmatpush1.msra.mxu0 %v166
  %2892 = vmatprep.subr.mxu0 0.0
  %2893 = vmatpush1.msra.mxu0 %v167
  %2894 = vmatprep.subr.mxu0 0.0
  %2895 = vmatpush1.msra.mxu0 %v168
  %2896 = vmatprep.subr.mxu0 0.0
  %2897 = vmatpush1.msra.mxu0 %v169
  %2898 = vmatprep.subr.mxu0 0.0
  %2899 = vmatpush1.msra.mxu0 %v170
  %2900 = vmatprep.subr.mxu0 0.0
  %2901 = vmatpush1.msra.mxu0 %v171
  %2902 = vmatprep.subr.mxu0 0.0
  %2903 = vmatpush1.msra.mxu0 0.0
  %2904 = vmatprep.subr.mxu0 0.0
  %2905 = vmatpush1.msra.mxu0 0.0
  %2906 = vmatprep.subr.mxu0 0.0
  %2907 = vmatpush1.msra.mxu0 0.0
  %2908 = vmatprep.subr.mxu0 0.0
  %2909 = vmatpush1.msra.mxu0 0.0
  %2910 = vmatprep.subr.mxu0 0.0
  %2911 = vmatpush1.msra.mxu0 0.0
  %2912 = vmatprep.subr.mxu0 0.0
  %2913 = vmatpush1.msra.mxu0 0.0
  %2914 = vmatprep.subr.mxu0 0.0
  %2915 = vmatpush1.msra.mxu0 0.0
  %2916 = vmatprep.subr.mxu0 0.0
  %2917 = vmatpush1.msra.mxu0 0.0
  %2918 = vmatprep.subr.mxu0 0.0
  %2919 = vmatpush1.msra.mxu0 0.0
  %2920 = vmatprep.subr.mxu0 0.0
  %2921 = vmatpush1.msra.mxu0 0.0
  %2922 = vmatprep.subr.mxu0 0.0
  %2923 = vmatpush1.msra.mxu0 0.0
  %2924 = vmatprep.subr.mxu0 0.0
  %2925 = vmatpush1.msra.mxu0 0.0
  %2926 = vmatprep.subr.mxu0 0.0
  %2927 = vmatpush1.msra.mxu0 0.0
  %2928 = vmatprep.subr.mxu0 0.0
  %2929 = vmatpush1.msra.mxu0 0.0
  %2930 = vmatprep.subr.mxu0 0.0
  %2931 = vmatpush1.msra.mxu0 0.0
  %2932 = vmatprep.subr.mxu0 0.0
  %2933 = vmatpush1.msra.mxu0 0.0
  %2934 = vmatprep.mubr.f32.mxu0 0.0
  %2935 = vmatmul.mubr.f32.gmra.mrb[0].mxu0 %v2832
  %v2936 = vpop.f32.mrb[0].mxu0
  %v2937 = vadd.f32 0.0, %v2936
  %v2938 = vpop.f32.mrb[0].mxu0
  %2939 = vmatprep.mubr.f32.mxu0 0.0
  %2940 = vmatmul.mubr.f32.gmra.mrb[0].mxu0 %v2837
  %v2941 = vpop.f32.mrb[0].mxu0
  %v2942 = vadd.f32 0.0, %v2941
  %v2943 = vpop.f32.mrb[0].mxu0
  %2944 = vmatprep.mubr.f32.mxu0 0.0
  %2945 = vmatmul.mubr.f32.gmra.mrb[0].mxu0 %v2842
  %v2946 = vpop.f32.mrb[0].mxu0
  %v2947 = vadd.f32 0.0, %v2946
  %v2948 = vpop.f32.mrb[0].mxu0
  %2949 = vmatprep.mubr.f32.mxu0 0.0
  %2950 = vmatmul.mubr.f32.gmra.mrb[0].mxu0 %v2847
  %v2951 = vpop.f32.mrb[0].mxu0
  %v2952 = vadd.f32 0.0, %v2951
  %v2953 = vpop.f32.mrb[0].mxu0
  %2954 = vmatprep.mubr.f32.mxu0 0.0
  %2955 = vmatmul.mubr.f32.gmra.mrb[0].mxu0 %v2852
  %v2956 = vpop.f32.mrb[0].mxu0
  %v2957 = vadd.f32 0.0, %v2956
  %v2958 = vpop.f32.mrb[0].mxu0
  %2959 = vmatprep.mubr.f32.mxu0 0.0
  %2960 = vmatmul.mubr.f32.gmra.mrb[0].mxu0 %v2857
  %v2961 = vpop.f32.mrb[0].mxu0
  %v2962 = vadd.f32 0.0, %v2961
  %v2963 = vpop.f32.mrb[0].mxu0
  %2964 = vmatprep.mubr.f32.mxu0 0.0
  %2965 = vmatmul.mubr.f32.gmra.mrb[0].mxu0 %v2862
  %v2966 = vpop.f32.mrb[0].mxu0
  %v2967 = vadd.f32 0.0, %v2966
  %v2968 = vpop.f32.mrb[0].mxu0
  %2969 = vmatprep.mubr.f32.mxu0 0.0
  %2970 = vmatmul.mubr.f32.gmra.mrb[0].mxu0 %v2867
  %v2971 = vpop.f32.mrb[0].mxu0
  %v2972 = vadd.f32 0.0, %v2971
  %v2973 = vpop.f32.mrb[0].mxu0
  %2974 = vdwg.mxu0
  %v2975 = vsub.f32 %v2832, %v2937
  %v2976 = vsub.f32 %v2837, %v2942
  %v2977 = vsub.f32 %v2842, %v2947
  %v2978 = vsub.f32 %v2847, %v2952
  %v2979 = vsub.f32 %v2852, %v2957
  %v2980 = vsub.f32 %v2857, %v2962
  %v2981 = vsub.f32 %v2862, %v2967
  %v2982 = vsub.f32 %v2867, %v2972
  %v2983 = vmul.f32 %v2975, %v2975
  %v2984 = vmul.f32 %v2976, %v2976
  %v2985 = vmul.f32 %v2977, %v2977
  %v2986 = vmul.f32 %v2978, %v2978
  %v2987 = vmul.f32 %v2979, %v2979
  %v2988 = vmul.f32 %v2980, %v2980
  %v2989 = vmul.f32 %v2981, %v2981
  %v2990 = vmul.f32 %v2982, %v2982
  %2991 = vmatprep.subr.mxu0 0.0
  %2992 = vmatpush1.msra.mxu0 %v156
  %2993 = vmatprep.subr.mxu0 0.0
  %2994 = vmatpush1.msra.mxu0 %v157
  %2995 = vmatprep.subr.mxu0 0.0
  %2996 = vmatpush1.msra.mxu0 %v158
  %2997 = vmatprep.subr.mxu0 0.0
  %2998 = vmatpush1.msra.mxu0 %v159
  %2999 = vmatprep.subr.mxu0 0.0
  %3000 = vmatpush1.msra.mxu0 %v160
  %3001 = vmatprep.subr.mxu0 0.0
  %3002 = vmatpush1.msra.mxu0 %v161
  %3003 = vmatprep.subr.mxu0 0.0
  %3004 = vmatpush1.msra.mxu0 %v162
  %3005 = vmatprep.subr.mxu0 0.0
  %3006 = vmatpush1.msra.mxu0 %v163
  %3007 = vmatprep.subr.mxu0 0.0
  %3008 = vmatpush1.msra.mxu0 %v164
  %3009 = vmatprep.subr.mxu0 0.0
  %3010 = vmatpush1.msra.mxu0 %v165
  %3011 = vmatprep.subr.mxu0 0.0
  %3012 = vmatpush1.msra.mxu0 %v166
  %3013 = vmatprep.subr.mxu0 0.0
  %3014 = vmatpush1.msra.mxu0 %v167
  %3015 = vmatprep.subr.mxu0 0.0
  %3016 = vmatpush1.msra.mxu0 %v168
  %3017 = vmatprep.subr.mxu0 0.0
  %3018 = vmatpush1.msra.mxu0 %v169
  %3019 = vmatprep.subr.mxu0 0.0
  %3020 = vmatpush1.msra.mxu0 %v170
  %3021 = vmatprep.subr.mxu0 0.0
  %3022 = vmatpush1.msra.mxu0 %v171
  %3023 = vmatprep.subr.mxu0 0.0
  %3024 = vmatpush1.msra.mxu0 0.0
  %3025 = vmatprep.subr.mxu0 0.0
  %3026 = vmatpush1.msra.mxu0 0.0
  %3027 = vmatprep.subr.mxu0 0.0
  %3028 = vmatpush1.msra.mxu0 0.0
  %3029 = vmatprep.subr.mxu0 0.0
  %3030 = vmatpush1.msra.mxu0 0.0
  %3031 = vmatprep.subr.mxu0 0.0
  %3032 = vmatpush1.msra.mxu0 0.0
  %3033 = vmatprep.subr.mxu0 0.0
  %3034 = vmatpush1.msra.mxu0 0.0
  %3035 = vmatprep.subr.mxu0 0.0
  %3036 = vmatpush1.msra.mxu0 0.0
  %3037 = vmatprep.subr.mxu0 0.0
  %3038 = vmatpush1.msra.mxu0 0.0
  %3039 = vmatprep.subr.mxu0 0.0
  %3040 = vmatpush1.msra.mxu0 0.0
  %3041 = vmatprep.subr.mxu0 0.0
  %3042 = vmatpush1.msra.mxu0 0.0
  %3043 = vmatprep.subr.mxu0 0.0
  %3044 = vmatpush1.msra.mxu0 0.0
  %3045 = vmatprep.subr.mxu0 0.0
  %3046 = vmatpush1.msra.mxu0 0.0
  %3047 = vmatprep.subr.mxu0 0.0
  %3048 = vmatpush1.msra.mxu0 0.0
  %3049 = vmatprep.subr.mxu0 0.0
  %3050 = vmatpush1.msra.mxu0 0.0
  %3051 = vmatprep.subr.mxu0 0.0
  %3052 = vmatpush1.msra.mxu0 0.0
  %3053 = vmatprep.subr.mxu0 0.0
  %3054 = vmatpush1.msra.mxu0 0.0
  %3055 = vmatprep.mubr.f32.mxu0 0.0
  %3056 = vmatmul.mubr.f32.gmra.mrb[0].mxu0 %v2983
  %v3057 = vpop.f32.mrb[0].mxu0
  %v3058 = vadd.f32 1e-05, %v3057
  %v3059 = vpop.f32.mrb[0].mxu0
  %3060 = vmatprep.mubr.f32.mxu0 0.0
  %3061 = vmatmul.mubr.f32.gmra.mrb[0].mxu0 %v2984
  %v3062 = vpop.f32.mrb[0].mxu0
  %v3063 = vadd.f32 1e-05, %v3062
  %v3064 = vpop.f32.mrb[0].mxu0
  %3065 = vmatprep.mubr.f32.mxu0 0.0
  %3066 = vmatmul.mubr.f32.gmra.mrb[0].mxu0 %v2985
  %v3067 = vpop.f32.mrb[0].mxu0
  %v3068 = vadd.f32 1e-05, %v3067
  %v3069 = vpop.f32.mrb[0].mxu0
  %3070 = vmatprep.mubr.f32.mxu0 0.0
  %3071 = vmatmul.mubr.f32.gmra.mrb[0].mxu0 %v2986
  %v3072 = vpop.f32.mrb[0].mxu0
  %v3073 = vadd.f32 1e-05, %v3072
  %v3074 = vpop.f32.mrb[0].mxu0
  %3075 = vmatprep.mubr.f32.mxu0 0.0
  %3076 = vmatmul.mubr.f32.gmra.mrb[0].mxu0 %v2987
  %v3077 = vpop.f32.mrb[0].mxu0
  %v3078 = vadd.f32 1e-05, %v3077
  %v3079 = vpop.f32.mrb[0].mxu0
  %3080 = vmatprep.mubr.f32.mxu0 0.0
  %3081 = vmatmul.mubr.f32.gmra.mrb[0].mxu0 %v2988
  %v3082 = vpop.f32.mrb[0].mxu0
  %v3083 = vadd.f32 1e-05, %v3082
  %v3084 = vpop.f32.mrb[0].mxu0
  %3085 = vmatprep.mubr.f32.mxu0 0.0
  %3086 = vmatmul.mubr.f32.gmra.mrb[0].mxu0 %v2989
  %v3087 = vpop.f32.mrb[0].mxu0
  %v3088 = vadd.f32 1e-05, %v3087
  %v3089 = vpop.f32.mrb[0].mxu0
  %3090 = vmatprep.mubr.f32.mxu0 0.0
  %3091 = vmatmul.mubr.f32.gmra.mrb[0].mxu0 %v2990
  %v3092 = vpop.f32.mrb[0].mxu0
  %v3093 = vadd.f32 1e-05, %v3092
  %v3094 = vpop.f32.mrb[0].mxu0
  %3095 = vdwg.mxu0
  %v3096 = vrsqrt.pop %v3058
  %v3097 = vrsqrt.pop %v3063
  %v3098 = vrsqrt.pop %v3068
  %v3099 = vrsqrt.pop %v3073
  %v3100 = vrsqrt.pop %v3078
  %v3101 = vrsqrt.pop %v3083
  %v3102 = vrsqrt.pop %v3088
  %v3103 = vrsqrt.pop %v3093
  %v3104 = vmul.f32 %v2975, %v3096
  %v3105 = vmul.f32 %v2976, %v3097
  %v3106 = vmul.f32 %v2977, %v3098
  %v3107 = vmul.f32 %v2978, %v3099
  %v3108 = vmul.f32 %v2979, %v3100
  %v3109 = vmul.f32 %v2980, %v3101
  %v3110 = vmul.f32 %v2981, %v3102
  %v3111 = vmul.f32 %v2982, %v3103
  %v3112 = vld [vmem:[%s2 + $0x14] sm:$0x1]
  %v3113 = vlaneseq
  %v3114 = vshrl.u32 %v3113, 7
  %v3115 = vsub.s32 0, %v3114
  %v3116 = vrot.slane %v3112, %v3115
  %v3117 = vmul.f32 %v3104, %v3116
  %v3118 = vmul.f32 %v3105, %v3116
  %v3119 = vmul.f32 %v3106, %v3116
  %v3120 = vmul.f32 %v3107, %v3116
  %v3121 = vmul.f32 %v3108, %v3116
  %v3122 = vmul.f32 %v3109, %v3116
  %v3123 = vmul.f32 %v3110, %v3116
  %v3124 = vmul.f32 %v3111, %v3116
  %v3125 = vld [vmem:[%s2 + $0x15] sm:$0x1]
  %v3126 = vlaneseq
  %v3127 = vshrl.u32 %v3126, 7
  %v3128 = vsub.s32 0, %v3127
  %v3129 = vrot.slane %v3125, %v3128
  %v3130 = vadd.f32 %v3117, %v3129
  %v3131 = vadd.f32 %v3118, %v3129
  %v3132 = vadd.f32 %v3119, %v3129
  %v3133 = vadd.f32 %v3120, %v3129
  %v3134 = vadd.f32 %v3121, %v3129
  %v3135 = vadd.f32 %v3122, %v3129
  %v3136 = vadd.f32 %v3123, %v3129
  %v3137 = vadd.f32 %v3124, %v3129
  %v3138 = vld [vmem:[%s1 + $0x500] sm:$0xff]
  %v3139 = vld [vmem:[%s1 + $0x508] sm:$0xff]
  %v3140 = vld [vmem:[%s1 + $0x510] sm:$0xff]
  %v3141 = vld [vmem:[%s1 + $0x518] sm:$0xff]
  %v3142 = vld [vmem:[%s1 + $0x520] sm:$0xff]
  %v3143 = vld [vmem:[%s1 + $0x528] sm:$0xff]
  %v3144 = vld [vmem:[%s1 + $0x530] sm:$0xff]
  %v3145 = vld [vmem:[%s1 + $0x538] sm:$0xff]
  %v3146 = vld [vmem:[%s1 + $0x540] sm:$0xff]
  %v3147 = vld [vmem:[%s1 + $0x548] sm:$0xff]
  %v3148 = vld [vmem:[%s1 + $0x550] sm:$0xff]
  %v3149 = vld [vmem:[%s1 + $0x558] sm:$0xff]
  %v3150 = vld [vmem:[%s1 + $0x560] sm:$0xff]
  %v3151 = vld [vmem:[%s1 + $0x568] sm:$0xff]
  %v3152 = vld [vmem:[%s1 + $0x570] sm:$0xff]
  %v3153 = vld [vmem:[%s1 + $0x578] sm:$0xff]
  %v3154 = vld [vmem:[%s2 + $0x16] sm:$0x1]
  %v3155 = vlaneseq
  %v3156 = vshrl.u32 %v3155, 7
  %v3157 = vsub.s32 0, %v3156
  %v3158 = vrot.slane %v3154, %v3157
  %3159 = vmatprep.subr.mxu0 0.0
  %3160 = vmatpush1.msra.mxu0 %v3138
  %3161 = vmatprep.subr.mxu0 0.0
  %3162 = vmatpush1.msra.mxu0 %v3139
  %3163 = vmatprep.subr.mxu0 0.0
  %3164 = vmatpush1.msra.mxu0 %v3140
  %3165 = vmatprep.subr.mxu0 0.0
  %3166 = vmatpush1.msra.mxu0 %v3141
  %3167 = vmatprep.subr.mxu0 0.0
  %3168 = vmatpush1.msra.mxu0 %v3142
  %3169 = vmatprep.subr.mxu0 0.0
  %3170 = vmatpush1.msra.mxu0 %v3143
  %3171 = vmatprep.subr.mxu0 0.0
  %3172 = vmatpush1.msra.mxu0 %v3144
  %3173 = vmatprep.subr.mxu0 0.0
  %3174 = vmatpush1.msra.mxu0 %v3145
  %3175 = vmatprep.subr.mxu0 0.0
  %3176 = vmatpush1.msra.mxu0 %v3146
  %3177 = vmatprep.subr.mxu0 0.0
  %3178 = vmatpush1.msra.mxu0 %v3147
  %3179 = vmatprep.subr.mxu0 0.0
  %3180 = vmatpush1.msra.mxu0 %v3148
  %3181 = vmatprep.subr.mxu0 0.0
  %3182 = vmatpush1.msra.mxu0 %v3149
  %3183 = vmatprep.subr.mxu0 0.0
  %3184 = vmatpush1.msra.mxu0 %v3150
  %3185 = vmatprep.subr.mxu0 0.0
  %3186 = vmatpush1.msra.mxu0 %v3151
  %3187 = vmatprep.subr.mxu0 0.0
  %3188 = vmatpush1.msra.mxu0 %v3152
  %3189 = vmatprep.subr.mxu0 0.0
  %3190 = vmatpush1.msra.mxu0 %v3153
  %3191 = vmatprep.subr.mxu0 0.0
  %3192 = vmatpush1.msra.mxu0 0.0
  %3193 = vmatprep.subr.mxu0 0.0
  %3194 = vmatpush1.msra.mxu0 0.0
  %3195 = vmatprep.subr.mxu0 0.0
  %3196 = vmatpush1.msra.mxu0 0.0
  %3197 = vmatprep.subr.mxu0 0.0
  %3198 = vmatpush1.msra.mxu0 0.0
  %3199 = vmatprep.subr.mxu0 0.0
  %3200 = vmatpush1.msra.mxu0 0.0
  %3201 = vmatprep.subr.mxu0 0.0
  %3202 = vmatpush1.msra.mxu0 0.0
  %3203 = vmatprep.subr.mxu0 0.0
  %3204 = vmatpush1.msra.mxu0 0.0
  %3205 = vmatprep.subr.mxu0 0.0
  %3206 = vmatpush1.msra.mxu0 0.0
  %3207 = vmatprep.subr.mxu0 0.0
  %3208 = vmatpush1.msra.mxu0 0.0
  %3209 = vmatprep.subr.mxu0 0.0
  %3210 = vmatpush1.msra.mxu0 0.0
  %3211 = vmatprep.subr.mxu0 0.0
  %3212 = vmatpush1.msra.mxu0 0.0
  %3213 = vmatprep.subr.mxu0 0.0
  %3214 = vmatpush1.msra.mxu0 0.0
  %3215 = vmatprep.subr.mxu0 0.0
  %3216 = vmatpush1.msra.mxu0 0.0
  %3217 = vmatprep.subr.mxu0 0.0
  %3218 = vmatpush1.msra.mxu0 0.0
  %3219 = vmatprep.subr.mxu0 0.0
  %3220 = vmatpush1.msra.mxu0 0.0
  %3221 = vmatprep.subr.mxu0 0.0
  %3222 = vmatpush1.msra.mxu0 0.0
  %3223 = vmatprep.mubr.f32.mxu0 0.0
  %3224 = vmatmul.mubr.f32.gmra.mrb[0].mxu0 %v3130
  %v3225 = vpop.f32.mrb[0].mxu0
  %v3226 = vadd.f32 %v3158, %v3225
  %v3227 = vpop.f32.mrb[0].mxu0
  %3228 = vmatprep.mubr.f32.mxu0 0.0
  %3229 = vmatmul.mubr.f32.gmra.mrb[0].mxu0 %v3131
  %v3230 = vpop.f32.mrb[0].mxu0
  %v3231 = vadd.f32 %v3158, %v3230
  %v3232 = vpop.f32.mrb[0].mxu0
  %3233 = vmatprep.mubr.f32.mxu0 0.0
  %3234 = vmatmul.mubr.f32.gmra.mrb[0].mxu0 %v3132
  %v3235 = vpop.f32.mrb[0].mxu0
  %v3236 = vadd.f32 %v3158, %v3235
  %v3237 = vpop.f32.mrb[0].mxu0
  %3238 = vmatprep.mubr.f32.mxu0 0.0
  %3239 = vmatmul.mubr.f32.gmra.mrb[0].mxu0 %v3133
  %v3240 = vpop.f32.mrb[0].mxu0
  %v3241 = vadd.f32 %v3158, %v3240
  %v3242 = vpop.f32.mrb[0].mxu0
  %3243 = vmatprep.mubr.f32.mxu0 0.0
  %3244 = vmatmul.mubr.f32.gmra.mrb[0].mxu0 %v3134
  %v3245 = vpop.f32.mrb[0].mxu0
  %v3246 = vadd.f32 %v3158, %v3245
  %v3247 = vpop.f32.mrb[0].mxu0
  %3248 = vmatprep.mubr.f32.mxu0 0.0
  %3249 = vmatmul.mubr.f32.gmra.mrb[0].mxu0 %v3135
  %v3250 = vpop.f32.mrb[0].mxu0
  %v3251 = vadd.f32 %v3158, %v3250
  %v3252 = vpop.f32.mrb[0].mxu0
  %3253 = vmatprep.mubr.f32.mxu0 0.0
  %3254 = vmatmul.mubr.f32.gmra.mrb[0].mxu0 %v3136
  %v3255 = vpop.f32.mrb[0].mxu0
  %v3256 = vadd.f32 %v3158, %v3255
  %v3257 = vpop.f32.mrb[0].mxu0
  %3258 = vmatprep.mubr.f32.mxu0 0.0
  %3259 = vmatmul.mubr.f32.gmra.mrb[0].mxu0 %v3137
  %v3260 = vpop.f32.mrb[0].mxu0
  %v3261 = vadd.f32 %v3158, %v3260
  %v3262 = vpop.f32.mrb[0].mxu0
  %3263 = vdwg.mxu0
  %vm3264 = vcmp.gt.f32.partialorder %v3226, 0.0
  %vm3265 = vcmp.gt.f32.partialorder %v3231, 0.0
  %vm3266 = vcmp.gt.f32.partialorder %v3236, 0.0
  %vm3267 = vcmp.gt.f32.partialorder %v3241, 0.0
  %vm3268 = vcmp.gt.f32.partialorder %v3246, 0.0
  %vm3269 = vcmp.gt.f32.partialorder %v3251, 0.0
  %vm3270 = vcmp.gt.f32.partialorder %v3256, 0.0
  %vm3271 = vcmp.gt.f32.partialorder %v3261, 0.0
  %v3272 = vmul.f32 %v3226, 0.2
  %v3273 = vmul.f32 %v3231, 0.2
  %v3274 = vmul.f32 %v3236, 0.2
  %v3275 = vmul.f32 %v3241, 0.2
  %v3276 = vmul.f32 %v3246, 0.2
  %v3277 = vmul.f32 %v3251, 0.2
  %v3278 = vmul.f32 %v3256, 0.2
  %v3279 = vmul.f32 %v3261, 0.2
  %v3280 = vsel %vm3264, %v3226, %v3272
  %v3281 = vsel %vm3265, %v3231, %v3273
  %v3282 = vsel %vm3266, %v3236, %v3274
  %v3283 = vsel %vm3267, %v3241, %v3275
  %v3284 = vsel %vm3268, %v3246, %v3276
  %v3285 = vsel %vm3269, %v3251, %v3277
  %v3286 = vsel %vm3270, %v3256, %v3278
  %v3287 = vsel %vm3271, %v3261, %v3279
  %v3288 = vld [vmem:[%s1 + $0x580] sm:$0xff]
  %v3289 = vld [vmem:[%s1 + $0x588] sm:$0xff]
  %v3290 = vld [vmem:[%s1 + $0x590] sm:$0xff]
  %v3291 = vld [vmem:[%s1 + $0x598] sm:$0xff]
  %v3292 = vld [vmem:[%s1 + $0x5a0] sm:$0xff]
  %v3293 = vld [vmem:[%s1 + $0x5a8] sm:$0xff]
  %v3294 = vld [vmem:[%s1 + $0x5b0] sm:$0xff]
  %v3295 = vld [vmem:[%s1 + $0x5b8] sm:$0xff]
  %v3296 = vld [vmem:[%s1 + $0x5c0] sm:$0xff]
  %v3297 = vld [vmem:[%s1 + $0x5c8] sm:$0xff]
  %v3298 = vld [vmem:[%s1 + $0x5d0] sm:$0xff]
  %v3299 = vld [vmem:[%s1 + $0x5d8] sm:$0xff]
  %v3300 = vld [vmem:[%s1 + $0x5e0] sm:$0xff]
  %v3301 = vld [vmem:[%s1 + $0x5e8] sm:$0xff]
  %v3302 = vld [vmem:[%s1 + $0x5f0] sm:$0xff]
  %v3303 = vld [vmem:[%s1 + $0x5f8] sm:$0xff]
  %v3304 = vld [vmem:[%s2 + $0x17] sm:$0x1]
  %v3305 = vlaneseq
  %v3306 = vshrl.u32 %v3305, 7
  %v3307 = vsub.s32 0, %v3306
  %v3308 = vrot.slane %v3304, %v3307
  %3309 = vmatprep.subr.mxu0 0.0
  %3310 = vmatpush1.msra.mxu0 %v3288
  %3311 = vmatprep.subr.mxu0 0.0
  %3312 = vmatpush1.msra.mxu0 %v3289
  %3313 = vmatprep.subr.mxu0 0.0
  %3314 = vmatpush1.msra.mxu0 %v3290
  %3315 = vmatprep.subr.mxu0 0.0
  %3316 = vmatpush1.msra.mxu0 %v3291
  %3317 = vmatprep.subr.mxu0 0.0
  %3318 = vmatpush1.msra.mxu0 %v3292
  %3319 = vmatprep.subr.mxu0 0.0
  %3320 = vmatpush1.msra.mxu0 %v3293
  %3321 = vmatprep.subr.mxu0 0.0
  %3322 = vmatpush1.msra.mxu0 %v3294
  %3323 = vmatprep.subr.mxu0 0.0
  %3324 = vmatpush1.msra.mxu0 %v3295
  %3325 = vmatprep.subr.mxu0 0.0
  %3326 = vmatpush1.msra.mxu0 %v3296
  %3327 = vmatprep.subr.mxu0 0.0
  %3328 = vmatpush1.msra.mxu0 %v3297
  %3329 = vmatprep.subr.mxu0 0.0
  %3330 = vmatpush1.msra.mxu0 %v3298
  %3331 = vmatprep.subr.mxu0 0.0
  %3332 = vmatpush1.msra.mxu0 %v3299
  %3333 = vmatprep.subr.mxu0 0.0
  %3334 = vmatpush1.msra.mxu0 %v3300
  %3335 = vmatprep.subr.mxu0 0.0
  %3336 = vmatpush1.msra.mxu0 %v3301
  %3337 = vmatprep.subr.mxu0 0.0
  %3338 = vmatpush1.msra.mxu0 %v3302
  %3339 = vmatprep.subr.mxu0 0.0
  %3340 = vmatpush1.msra.mxu0 %v3303
  %3341 = vmatprep.subr.mxu0 0.0
  %3342 = vmatpush1.msra.mxu0 0.0
  %3343 = vmatprep.subr.mxu0 0.0
  %3344 = vmatpush1.msra.mxu0 0.0
  %3345 = vmatprep.subr.mxu0 0.0
  %3346 = vmatpush1.msra.mxu0 0.0
  %3347 = vmatprep.subr.mxu0 0.0
  %3348 = vmatpush1.msra.mxu0 0.0
  %3349 = vmatprep.subr.mxu0 0.0
  %3350 = vmatpush1.msra.mxu0 0.0
  %3351 = vmatprep.subr.mxu0 0.0
  %3352 = vmatpush1.msra.mxu0 0.0
  %3353 = vmatprep.subr.mxu0 0.0
  %3354 = vmatpush1.msra.mxu0 0.0
  %3355 = vmatprep.subr.mxu0 0.0
  %3356 = vmatpush1.msra.mxu0 0.0
  %3357 = vmatprep.subr.mxu0 0.0
  %3358 = vmatpush1.msra.mxu0 0.0
  %3359 = vmatprep.subr.mxu0 0.0
  %3360 = vmatpush1.msra.mxu0 0.0
  %3361 = vmatprep.subr.mxu0 0.0
  %3362 = vmatpush1.msra.mxu0 0.0
  %3363 = vmatprep.subr.mxu0 0.0
  %3364 = vmatpush1.msra.mxu0 0.0
  %3365 = vmatprep.subr.mxu0 0.0
  %3366 = vmatpush1.msra.mxu0 0.0
  %3367 = vmatprep.subr.mxu0 0.0
  %3368 = vmatpush1.msra.mxu0 0.0
  %3369 = vmatprep.subr.mxu0 0.0
  %3370 = vmatpush1.msra.mxu0 0.0
  %3371 = vmatprep.subr.mxu0 0.0
  %3372 = vmatpush1.msra.mxu0 0.0
  %3373 = vmatprep.mubr.f32.mxu0 0.0
  %3374 = vmatmul.mubr.f32.gmra.mrb[0].mxu0 %v3280
  %v3375 = vpop.f32.mrb[0].mxu0
  %v3376 = vadd.f32 %v3308, %v3375
  %v3377 = vpop.f32.mrb[0].mxu0
  %3378 = vmatprep.mubr.f32.mxu0 0.0
  %3379 = vmatmul.mubr.f32.gmra.mrb[0].mxu0 %v3281
  %v3380 = vpop.f32.mrb[0].mxu0
  %v3381 = vadd.f32 %v3308, %v3380
  %v3382 = vpop.f32.mrb[0].mxu0
  %3383 = vmatprep.mubr.f32.mxu0 0.0
  %3384 = vmatmul.mubr.f32.gmra.mrb[0].mxu0 %v3282
  %v3385 = vpop.f32.mrb[0].mxu0
  %v3386 = vadd.f32 %v3308, %v3385
  %v3387 = vpop.f32.mrb[0].mxu0
  %3388 = vmatprep.mubr.f32.mxu0 0.0
  %3389 = vmatmul.mubr.f32.gmra.mrb[0].mxu0 %v3283
  %v3390 = vpop.f32.mrb[0].mxu0
  %v3391 = vadd.f32 %v3308, %v3390
  %v3392 = vpop.f32.mrb[0].mxu0
  %3393 = vmatprep.mubr.f32.mxu0 0.0
  %3394 = vmatmul.mubr.f32.gmra.mrb[0].mxu0 %v3284
  %v3395 = vpop.f32.mrb[0].mxu0
  %v3396 = vadd.f32 %v3308, %v3395
  %v3397 = vpop.f32.mrb[0].mxu0
  %3398 = vmatprep.mubr.f32.mxu0 0.0
  %3399 = vmatmul.mubr.f32.gmra.mrb[0].mxu0 %v3285
  %v3400 = vpop.f32.mrb[0].mxu0
  %v3401 = vadd.f32 %v3308, %v3400
  %v3402 = vpop.f32.mrb[0].mxu0
  %3403 = vmatprep.mubr.f32.mxu0 0.0
  %3404 = vmatmul.mubr.f32.gmra.mrb[0].mxu0 %v3286
  %v3405 = vpop.f32.mrb[0].mxu0
  %v3406 = vadd.f32 %v3308, %v3405
  %v3407 = vpop.f32.mrb[0].mxu0
  %3408 = vmatprep.mubr.f32.mxu0 0.0
  %3409 = vmatmul.mubr.f32.gmra.mrb[0].mxu0 %v3287
  %v3410 = vpop.f32.mrb[0].mxu0
  %v3411 = vadd.f32 %v3308, %v3410
  %v3412 = vpop.f32.mrb[0].mxu0
  %3413 = vdwg.mxu0
  %v3414 = vmul.f32 %v3376, 0.5
  %v3415 = vmul.f32 %v3381, 0.5
  %v3416 = vmul.f32 %v3386, 0.5
  %v3417 = vmul.f32 %v3391, 0.5
  %v3418 = vmul.f32 %v3396, 0.5
  %v3419 = vmul.f32 %v3401, 0.5
  %v3420 = vmul.f32 %v3406, 0.5
  %v3421 = vmul.f32 %v3411, 0.5
  %v3422 = vtanh.pop %v3414
  %v3423 = vtanh.pop %v3415
  %v3424 = vtanh.pop %v3416
  %v3425 = vtanh.pop %v3417
  %v3426 = vtanh.pop %v3418
  %v3427 = vtanh.pop %v3419
  %v3428 = vtanh.pop %v3420
  %v3429 = vtanh.pop %v3421
  %v3430 = vadd.f32 %v3422, 1.0
  %v3431 = vadd.f32 %v3423, 1.0
  %v3432 = vadd.f32 %v3424, 1.0
  %v3433 = vadd.f32 %v3425, 1.0
  %v3434 = vadd.f32 %v3426, 1.0
  %v3435 = vadd.f32 %v3427, 1.0
  %v3436 = vadd.f32 %v3428, 1.0
  %v3437 = vadd.f32 %v3429, 1.0
  %v3438 = vmul.f32 %v3430, 0.5
  %v3439 = vmul.f32 %v3431, 0.5
  %v3440 = vmul.f32 %v3432, 0.5
  %v3441 = vmul.f32 %v3433, 0.5
  %v3442 = vmul.f32 %v3434, 0.5
  %v3443 = vmul.f32 %v3435, 0.5
  %v3444 = vmul.f32 %v3436, 0.5
  %v3445 = vmul.f32 %v3437, 0.5
  %v3446 = vmul.f32 %v3130, %v3438
  %v3447 = vmul.f32 %v3131, %v3439
  %v3448 = vmul.f32 %v3132, %v3440
  %v3449 = vmul.f32 %v3133, %v3441
  %v3450 = vmul.f32 %v3134, %v3442
  %v3451 = vmul.f32 %v3135, %v3443
  %v3452 = vmul.f32 %v3136, %v3444
  %v3453 = vmul.f32 %v3137, %v3445
  %v3454 = vld [vmem:[%s1 + $0x600] sm:$0xff]
  %v3455 = vld [vmem:[%s1 + $0x608] sm:$0xff]
  %v3456 = vld [vmem:[%s1 + $0x610] sm:$0xff]
  %v3457 = vld [vmem:[%s1 + $0x618] sm:$0xff]
  %v3458 = vld [vmem:[%s1 + $0x620] sm:$0xff]
  %v3459 = vld [vmem:[%s1 + $0x628] sm:$0xff]
  %v3460 = vld [vmem:[%s1 + $0x630] sm:$0xff]
  %v3461 = vld [vmem:[%s1 + $0x638] sm:$0xff]
  %v3462 = vld [vmem:[%s1 + $0x640] sm:$0xff]
  %v3463 = vld [vmem:[%s1 + $0x648] sm:$0xff]
  %v3464 = vld [vmem:[%s1 + $0x650] sm:$0xff]
  %v3465 = vld [vmem:[%s1 + $0x658] sm:$0xff]
  %v3466 = vld [vmem:[%s1 + $0x660] sm:$0xff]
  %v3467 = vld [vmem:[%s1 + $0x668] sm:$0xff]
  %v3468 = vld [vmem:[%s1 + $0x670] sm:$0xff]
  %v3469 = vld [vmem:[%s1 + $0x678] sm:$0xff]
  %v3470 = vld [vmem:[%s2 + $0x18] sm:$0x1]
  %v3471 = vlaneseq
  %v3472 = vshrl.u32 %v3471, 7
  %v3473 = vsub.s32 0, %v3472
  %v3474 = vrot.slane %v3470, %v3473
  %3475 = vmatprep.subr.mxu0 0.0
  %3476 = vmatpush1.msra.mxu0 %v3454
  %3477 = vmatprep.subr.mxu0 0.0
  %3478 = vmatpush1.msra.mxu0 %v3455
  %3479 = vmatprep.subr.mxu0 0.0
  %3480 = vmatpush1.msra.mxu0 %v3456
  %3481 = vmatprep.subr.mxu0 0.0
  %3482 = vmatpush1.msra.mxu0 %v3457
  %3483 = vmatprep.subr.mxu0 0.0
  %3484 = vmatpush1.msra.mxu0 %v3458
  %3485 = vmatprep.subr.mxu0 0.0
  %3486 = vmatpush1.msra.mxu0 %v3459
  %3487 = vmatprep.subr.mxu0 0.0
  %3488 = vmatpush1.msra.mxu0 %v3460
  %3489 = vmatprep.subr.mxu0 0.0
  %3490 = vmatpush1.msra.mxu0 %v3461
  %3491 = vmatprep.subr.mxu0 0.0
  %3492 = vmatpush1.msra.mxu0 %v3462
  %3493 = vmatprep.subr.mxu0 0.0
  %3494 = vmatpush1.msra.mxu0 %v3463
  %3495 = vmatprep.subr.mxu0 0.0
  %3496 = vmatpush1.msra.mxu0 %v3464
  %3497 = vmatprep.subr.mxu0 0.0
  %3498 = vmatpush1.msra.mxu0 %v3465
  %3499 = vmatprep.subr.mxu0 0.0
  %3500 = vmatpush1.msra.mxu0 %v3466
  %3501 = vmatprep.subr.mxu0 0.0
  %3502 = vmatpush1.msra.mxu0 %v3467
  %3503 = vmatprep.subr.mxu0 0.0
  %3504 = vmatpush1.msra.mxu0 %v3468
  %3505 = vmatprep.subr.mxu0 0.0
  %3506 = vmatpush1.msra.mxu0 %v3469
  %3507 = vmatprep.subr.mxu0 0.0
  %3508 = vmatpush1.msra.mxu0 0.0
  %3509 = vmatprep.subr.mxu0 0.0
  %3510 = vmatpush1.msra.mxu0 0.0
  %3511 = vmatprep.subr.mxu0 0.0
  %3512 = vmatpush1.msra.mxu0 0.0
  %3513 = vmatprep.subr.mxu0 0.0
  %3514 = vmatpush1.msra.mxu0 0.0
  %3515 = vmatprep.subr.mxu0 0.0
  %3516 = vmatpush1.msra.mxu0 0.0
  %3517 = vmatprep.subr.mxu0 0.0
  %3518 = vmatpush1.msra.mxu0 0.0
  %3519 = vmatprep.subr.mxu0 0.0
  %3520 = vmatpush1.msra.mxu0 0.0
  %3521 = vmatprep.subr.mxu0 0.0
  %3522 = vmatpush1.msra.mxu0 0.0
  %3523 = vmatprep.subr.mxu0 0.0
  %3524 = vmatpush1.msra.mxu0 0.0
  %3525 = vmatprep.subr.mxu0 0.0
  %3526 = vmatpush1.msra.mxu0 0.0
  %3527 = vmatprep.subr.mxu0 0.0
  %3528 = vmatpush1.msra.mxu0 0.0
  %3529 = vmatprep.subr.mxu0 0.0
  %3530 = vmatpush1.msra.mxu0 0.0
  %3531 = vmatprep.subr.mxu0 0.0
  %3532 = vmatpush1.msra.mxu0 0.0
  %3533 = vmatprep.subr.mxu0 0.0
  %3534 = vmatpush1.msra.mxu0 0.0
  %3535 = vmatprep.subr.mxu0 0.0
  %3536 = vmatpush1.msra.mxu0 0.0
  %3537 = vmatprep.subr.mxu0 0.0
  %3538 = vmatpush1.msra.mxu0 0.0
  %3539 = vmatprep.mubr.f32.mxu0 0.0
  %3540 = vmatmul.mubr.f32.gmra.mrb[0].mxu0 %v3446
  %v3541 = vpop.f32.mrb[0].mxu0
  %v3542 = vadd.f32 %v3474, %v3541
  %v3543 = vpop.f32.mrb[0].mxu0
  %3544 = vmatprep.mubr.f32.mxu0 0.0
  %3545 = vmatmul.mubr.f32.gmra.mrb[0].mxu0 %v3447
  %v3546 = vpop.f32.mrb[0].mxu0
  %v3547 = vadd.f32 %v3474, %v3546
  %v3548 = vpop.f32.mrb[0].mxu0
  %3549 = vmatprep.mubr.f32.mxu0 0.0
  %3550 = vmatmul.mubr.f32.gmra.mrb[0].mxu0 %v3448
  %v3551 = vpop.f32.mrb[0].mxu0
  %v3552 = vadd.f32 %v3474, %v3551
  %v3553 = vpop.f32.mrb[0].mxu0
  %3554 = vmatprep.mubr.f32.mxu0 0.0
  %3555 = vmatmul.mubr.f32.gmra.mrb[0].mxu0 %v3449
  %v3556 = vpop.f32.mrb[0].mxu0
  %v3557 = vadd.f32 %v3474, %v3556
  %v3558 = vpop.f32.mrb[0].mxu0
  %3559 = vmatprep.mubr.f32.mxu0 0.0
  %3560 = vmatmul.mubr.f32.gmra.mrb[0].mxu0 %v3450
  %v3561 = vpop.f32.mrb[0].mxu0
  %v3562 = vadd.f32 %v3474, %v3561
  %v3563 = vpop.f32.mrb[0].mxu0
  %3564 = vmatprep.mubr.f32.mxu0 0.0
  %3565 = vmatmul.mubr.f32.gmra.mrb[0].mxu0 %v3451
  %v3566 = vpop.f32.mrb[0].mxu0
  %v3567 = vadd.f32 %v3474, %v3566
  %v3568 = vpop.f32.mrb[0].mxu0
  %3569 = vmatprep.mubr.f32.mxu0 0.0
  %3570 = vmatmul.mubr.f32.gmra.mrb[0].mxu0 %v3452
  %v3571 = vpop.f32.mrb[0].mxu0
  %v3572 = vadd.f32 %v3474, %v3571
  %v3573 = vpop.f32.mrb[0].mxu0
  %3574 = vmatprep.mubr.f32.mxu0 0.0
  %3575 = vmatmul.mubr.f32.gmra.mrb[0].mxu0 %v3453
  %v3576 = vpop.f32.mrb[0].mxu0
  %v3577 = vadd.f32 %v3474, %v3576
  %v3578 = vpop.f32.mrb[0].mxu0
  %3579 = vdwg.mxu0
  %3580 = vst [vmem:[%s3] sm:$0xff] %v3542
  %3581 = vst [vmem:[%s3 + $0x18] sm:$0xff] %v3547
  %3582 = vst [vmem:[%s3 + $0x30] sm:$0xff] %v3552
  %3583 = vst [vmem:[%s3 + $0x48] sm:$0xff] %v3557
  %3584 = vst [vmem:[%s3 + $0x60] sm:$0xff] %v3562
  %3585 = vst [vmem:[%s3 + $0x78] sm:$0xff] %v3567
  %3586 = vst [vmem:[%s3 + $0x90] sm:$0xff] %v3572
  %3587 = vst [vmem:[%s3 + $0xa8] sm:$0xff] %v3577
  %3588 = vst [vmem:[%s3 + $0x8] sm:$0xff] %v1704
  %3589 = vst [vmem:[%s3 + $0x20] sm:$0xff] %v1709
  %3590 = vst [vmem:[%s3 + $0x38] sm:$0xff] %v1714
  %3591 = vst [vmem:[%s3 + $0x50] sm:$0xff] %v1719
  %3592 = vst [vmem:[%s3 + $0x68] sm:$0xff] %v1724
  %3593 = vst [vmem:[%s3 + $0x80] sm:$0xff] %v1729
  %3594 = vst [vmem:[%s3 + $0x98] sm:$0xff] %v1734
  %3595 = vst [vmem:[%s3 + $0xb0] sm:$0xff] %v1739
  %3596 = vst [vmem:[%s3 + $0x10] sm:$0xff] %v1830
  %3597 = vst [vmem:[%s3 + $0x28] sm:$0xff] %v1835
  %3598 = vst [vmem:[%s3 + $0x40] sm:$0xff] %v1840
  %3599 = vst [vmem:[%s3 + $0x58] sm:$0xff] %v1845
  %3600 = vst [vmem:[%s3 + $0x70] sm:$0xff] %v1850
  %3601 = vst [vmem:[%s3 + $0x88] sm:$0xff] %v1855
  %3602 = vst [vmem:[%s3 + $0xa0] sm:$0xff] %v1860
  %3603 = vst [vmem:[%s3 + $0xb8] sm:$0xff] %v1865
  // Predicated region
  $region14: #{vae_forward.1} parent=0 // pred_check
    _
  $region15: #{vae_forward.1} parent=0 // pred_check_branch
    %3605 = sbr.rel (0) target = $region17
  $region16: #{vae_forward.1} parent=0 // pred_region
    _
  $region17: #{vae_forward.1} parent=0 // pred_fallthru
    _
  // Predicated region
  $region18: #{vae_forward.1} parent=0 // pred_check
    _
  $region19: #{vae_forward.1} parent=0 // pred_check_branch
    %3607 = sbr.rel (0) target = $region21
  $region20: #{vae_forward.1} parent=0 // pred_region
    _
  $region21: #{vae_forward.1} parent=0 // pred_fallthru
    _

</llo_original>
